<compile_context>
chip_gen: v7x
topology: tpu7x:2x2x1
jax: 0.10.0
libtpu: 0.0.40
codegen_flags: <defaults>
</compile_context>

<pallas_src>
import functools

import jax
import jax.numpy as jnp
from jax.experimental import pallas as pl
from jax.experimental.pallas import tpu as pltpu


# ----------------------------- Pallas kernels -------------------------------

def _fused_linear_kernel(x_ref, *rest, prologue, has_bias, relu_out):
    """out = [relu]( [relu(x*scale+shift)] @ W [+ bias] )."""
    o_ref = rest[-1]
    idx = 0
    h = x_ref[...].astype(jnp.float32)
    if prologue:                       # BN (folded to scale/shift) + ReLU
        h = jnp.maximum(h * rest[idx][...] + rest[idx + 1][...], 0.0)
        idx += 2
    acc = jnp.dot(h, rest[idx][...].astype(jnp.float32),
                  preferred_element_type=jnp.float32)
    idx += 1
    if has_bias:
        acc = acc + rest[idx][...]
        idx += 1
    if relu_out:
        acc = jnp.maximum(acc, 0.0)
    o_ref[...] = acc.astype(o_ref.dtype)


def _conv3x3_kernel(x_ref, w_ref, o_ref, *, w_pad, n_rows):
    """Direct 3x3 stride-1 conv on a flattened zero-padded NHWC slab.

    x_ref: ((H+3)*(W+2), Cin) padded image (row-major, pad already applied
           to the post-ReLU activations so zeros are correct).
    w_ref: (9, Cin, Cout) taps in (kh, kw) order.
    o_ref: (H*(W+2), Cout); columns j in {W, W+1} of every row are junk and
           are sliced off by the wrapper.
    Tap (di, dj) is just a constant row shift of di*(W+2)+dj in flat space,
    so the conv is 9 accumulated matmuls over row-windows - no im2col in HBM.
    """
    acc = jnp.zeros(o_ref.shape, jnp.float32)
    for di in range(3):
        for dj in range(3):
            off = di * w_pad + dj
            patch = x_ref[off:off + n_rows, :].astype(jnp.float32)
            acc = acc + jnp.dot(patch,
                                w_ref[di * 3 + dj].astype(jnp.float32),
                                preferred_element_type=jnp.float32)
    o_ref[...] = acc.astype(o_ref.dtype)


def _head_kernel(x_ref, scale_ref, shift_ref, w_ref, b_ref, fi_ref, out_ref):
    """norm5 + ReLU + global average pool + classifier, fused."""
    x = x_ref[...].astype(jnp.float32)                     # (N, H*W, C)
    h = jnp.maximum(x * scale_ref[...] + shift_ref[...], 0.0)
    fi = jnp.mean(h, axis=1)                               # (N, C)
    fi_ref[...] = fi.astype(fi_ref.dtype)
    out_ref[...] = (jnp.dot(fi, w_ref[...],
                            preferred_element_type=jnp.float32)
                    + b_ref[...]).astype(out_ref.dtype)


# --------------------------- Pallas call wrappers ----------------------------

def _row_tile(m, max_tm=512):
    """Bounded row tile; returns (tile, padded_M)."""
    if m <= max_tm:
        return m, m
    for tm in (512, 256, 128, 64, 32, 16, 8):
        if m % tm == 0:
            return tm, m
    tm = 256
    return tm, ((m + tm - 1) // tm) * tm


def fused_linear(x2d, w, *, scale=None, shift=None, bias=None, relu_out=False):
    """[relu]( [relu(x*scale+shift)] @ w [+ bias] ) as one Pallas kernel."""
    M, K = x2d.shape
    _, N = w.shape
    prologue = scale is not None
    has_bias = bias is not None
    tm, Mp = _row_tile(M)
    x_in = x2d if Mp == M else jnp.pad(x2d, ((0, Mp - M), (0, 0)))

    in_specs = [pl.BlockSpec((tm, K), lambda i: (i, 0))]
    args = [x_in]
    if prologue:
        in_specs += [pl.BlockSpec((1, K), lambda i: (0, 0)),
                     pl.BlockSpec((1, K), lambda i: (0, 0))]
        args += [scale.reshape(1, K).astype(jnp.float32),
                 shift.reshape(1, K).astype(jnp.float32)]
    in_specs.append(pl.BlockSpec((K, N), lambda i: (0, 0)))
    args.append(w)
    if has_bias:
        in_specs.append(pl.BlockSpec((1, N), lambda i: (0, 0)))
        args.append(bias.reshape(1, N).astype(jnp.float32))

    out = pl.pallas_call(
        functools.partial(_fused_linear_kernel, prologue=prologue,
                          has_bias=has_bias, relu_out=relu_out),
        out_shape=jax.ShapeDtypeStruct((Mp, N), jnp.float32),
        grid=(Mp // tm,),
        in_specs=in_specs,
        out_specs=pl.BlockSpec((tm, N), lambda i: (i, 0)),
        compiler_params=pltpu.CompilerParams(
            dimension_semantics=("parallel",)),
    )(*args)
    return out[:M] if Mp != M else out


def conv3x3(x_nhwc, w):
    """3x3, stride 1, pad 1 convolution (no bias) on post-ReLU activations."""
    N, H, W, Cin = x_nhwc.shape
    Cout = w.shape[-1]
    Wp = W + 2
    # pad=1 each side; one extra bottom row so the junk output columns never
    # read past the end of the flat slab (they are sliced off anyway).
    xp = jnp.pad(x_nhwc, ((0, 0), (1, 2), (1, 1), (0, 0)))
    x_flat = xp.reshape(N, (H + 3) * Wp, Cin)
    n_rows = H * Wp
    w9 = w.reshape(9, Cin, Cout)

    out_flat = pl.pallas_call(
        functools.partial(_conv3x3_kernel, w_pad=Wp, n_rows=n_rows),
        out_shape=jax.ShapeDtypeStruct((N, n_rows, Cout), jnp.float32),
        grid=(N,),
        in_specs=[
            pl.BlockSpec((None, (H + 3) * Wp, Cin), lambda n: (n, 0, 0)),
            pl.BlockSpec((9, Cin, Cout), lambda n: (0, 0, 0)),
        ],
        out_specs=pl.BlockSpec((None, n_rows, Cout), lambda n: (n, 0, 0)),
        compiler_params=pltpu.CompilerParams(
            dimension_semantics=("parallel",)),
    )(x_flat, w9)
    return out_flat.reshape(N, H, Wp, Cout)[:, :, :W, :]


def head(y_nhwc, bn, w, b):
    """norm5 -> relu -> adaptive_avg_pool2d((1,1)) -> flatten -> classifier."""
    N, H, W, C = y_nhwc.shape
    s, sh = bn_affine(bn)
    nc = w.shape[1]
    x3 = y_nhwc.reshape(N, H * W, C)
    fi, out = pl.pallas_call(
        _head_kernel,
        out_shape=(jax.ShapeDtypeStruct((N, C), jnp.float32),
                   jax.ShapeDtypeStruct((N, nc), jnp.float32)),
        grid=(1,),
        in_specs=[
            pl.BlockSpec((N, H * W, C), lambda i: (0, 0, 0)),
            pl.BlockSpec((1, C), lambda i: (0, 0)),
            pl.BlockSpec((1, C), lambda i: (0, 0)),
            pl.BlockSpec((C, nc), lambda i: (0, 0)),
            pl.BlockSpec((1, nc), lambda i: (0, 0)),
        ],
        out_specs=(pl.BlockSpec((N, C), lambda i: (0, 0)),
                   pl.BlockSpec((N, nc), lambda i: (0, 0))),
        compiler_params=pltpu.CompilerParams(
            dimension_semantics=("arbitrary",)),
    )(x3, s.reshape(1, C), sh.reshape(1, C), w, b.reshape(1, nc))
    return fi, out


# ------------------------------ JAX glue ops ---------------------------------

def bn_affine(bn):
    scale = bn["gamma"] / jnp.sqrt(bn["var"] + bn["eps"])
    shift = bn["beta"] - bn["mean"] * scale
    return scale, shift


def im2col(x, kh, kw, stride, pad):
    """NHWC -> (N*Ho*Wo, kh*kw*C) patches (only used for the one-time stem)."""
    N, H, W, C = x.shape
    xp = jnp.pad(x, ((0, 0), (pad, pad), (pad, pad), (0, 0)))
    Ho = (H + 2 * pad - kh) // stride + 1
    Wo = (W + 2 * pad - kw) // stride + 1
    cols = []
    for i in range(kh):
        for j in range(kw):
            sl = jax.lax.slice(
                xp, (0, i, j, 0),
                (N, i + (Ho - 1) * stride + 1, j + (Wo - 1) * stride + 1, C),
                (1, stride, stride, 1))
            cols.append(sl)
    patches = jnp.concatenate(cols, axis=-1)
    return patches.reshape(N * Ho * Wo, kh * kw * C), (N, Ho, Wo)


def maxpool_3x3_s2_p1(x):  # NHWC, matches nn.MaxPool2d(3, 2, padding=1)
    N, H, W, C = x.shape
    xp = jnp.pad(x, ((0, 0), (1, 1), (1, 1), (0, 0)),
                 constant_values=-jnp.inf)
    Ho = (H + 2 - 3) // 2 + 1
    Wo = (W + 2 - 3) // 2 + 1
    out = None
    for i in range(3):
        for j in range(3):
            sl = jax.lax.slice(
                xp, (0, i, j, 0),
                (N, i + (Ho - 1) * 2 + 1, j + (Wo - 1) * 2 + 1, C),
                (1, 2, 2, 1))
            out = sl if out is None else jnp.maximum(out, sl)
    return out


def avgpool_2x2(x):  # NHWC, matches nn.AvgPool2d(2, 2)
    # TODO(synk): fold this 2x2 reduction into the transition kernel epilogue.
    N, H, W, C = x.shape
    return x.reshape(N, H // 2, 2, W // 2, 2, C).mean(axis=(2, 4))


# ------------------------------ DenseNet model --------------------------------

def init_params(key, growth_rate=8, block_config=(2, 2), num_init_features=16,
                bn_size=2, num_classes=10):
    keys = iter(jax.random.split(key, 64))

    def conv_w(kh, kw, cin, cout):
        std = (2.0 / (cin * kh * kw)) ** 0.5  # kaiming_normal_, fan_in, relu
        return jax.random.normal(next(keys), (kh, kw, cin, cout),
                                 jnp.float32) * std

    def bn(c):
        return dict(gamma=jnp.ones((c,), jnp.float32),
                    beta=jnp.zeros((c,), jnp.float32),
                    mean=jnp.zeros((c,), jnp.float32),
                    var=jnp.ones((c,), jnp.float32),
                    eps=1e-5)

    params = dict(conv0=conv_w(7, 7, 3, num_init_features),
                  norm0=bn(num_init_features), blocks=[])
    num_features = num_init_features
    for i, num_layers in enumerate(block_config):
        layers = []
        for j in range(num_layers):
            cin = num_features + j * growth_rate
            cmid = bn_size * growth_rate
            layers.append(dict(
                norm1=bn(cin),
                conv1=conv_w(1, 1, cin, cmid).reshape(cin, cmid),
                norm2=bn(cmid),
                conv2=conv_w(3, 3, cmid, growth_rate),
            ))
        num_features += num_layers * growth_rate
        block = dict(layers=layers, transition=None)
        if i != len(block_config) - 1:
            block["transition"] = dict(
                norm=bn(num_features),
                conv=conv_w(1, 1, num_features, num_features // 2
                            ).reshape(num_features, num_features // 2),
            )
            num_features //= 2
        params["blocks"].append(block)
    params["norm5"] = bn(num_features)
    std = (1.0 / num_features) ** 0.5
    params["classifier"] = dict(
        w=jax.random.normal(next(keys), (num_features, num_classes),
                            jnp.float32) * std,
        b=jnp.zeros((num_classes,), jnp.float32),  # nn.init.constant_(bias, 0)
    )
    return params


def _dense_layer(features_list, lp):
    x = jnp.concatenate(features_list, axis=-1)   # torch.cat(inputs, 1) in NHWC
    N, H, W, Cin = x.shape
    s1, sh1 = bn_affine(lp["norm1"])
    s2, sh2 = bn_affine(lp["norm2"])
    # Fold norm2 into conv1:  norm2(conv1(h)) = h @ (W1 * s2) + sh2.
    # One kernel computes  relu2(norm2(conv1(relu1(norm1(x))))).
    w1 = lp["conv1"] * s2[None, :]
    bott = fused_linear(x.reshape(N * H * W, Cin), w1,
                        scale=s1, shift=sh1, bias=sh2, relu_out=True)
    h = bott.reshape(N, H, W, -1)
    # conv2 (3x3, pad 1, no bias): direct Pallas conv (no im2col in HBM).
    # drop_rate=0 (default) -> F.dropout is a no-op.
    return conv3x3(h, lp["conv2"])


def _transition(x, tp):
    N, H, W, C = x.shape
    s, sh = bn_affine(tp["norm"])
    y2d = fused_linear(x.reshape(N * H * W, C), tp["conv"], scale=s, shift=sh)
    return avgpool_2x2(y2d.reshape(N, H, W, -1))


def densenet_forward(params, x_nchw):
    x = jnp.transpose(x_nchw, (0, 2, 3, 1)).astype(jnp.float32)  # NCHW -> NHWC
    # conv0 (7x7, s2, p3) + norm0 + relu0 fused into one Pallas matmul kernel
    # (BN scale folded into the weight columns, BN shift as the bias).
    # im2col kept for this one-time 3-channel stem (tiny absolute traffic).
    patches, (N, Ho, Wo) = im2col(x, 7, 7, 2, 3)
    s0, sh0 = bn_affine(params["norm0"])
    C0 = params["conv0"].shape[-1]
    w0 = params["conv0"].reshape(-1, C0) * s0[None, :]
    y2d = fused_linear(patches, w0, bias=sh0, relu_out=True)
    y = maxpool_3x3_s2_p1(y2d.reshape(N, Ho, Wo, C0))

    for block in params["blocks"]:
        feats = [y]
        for lp in block["layers"]:
            feats.append(_dense_layer(feats, lp))
        y = jnp.concatenate(feats, axis=-1)
        if block["transition"] is not None:
            y = _transition(y, block["transition"])

    # norm5 + F.relu + adaptive_avg_pool2d((1,1)) + flatten + classifier,
    # all fused into a single small Pallas kernel.
    fi, out = head(y, params["norm5"],
                   params["classifier"]["w"], params["classifier"]["b"])
    return fi, out


if __name__ == "__main__":
    key = jax.random.PRNGKey(0)
    pkey, xkey = jax.random.split(key)
    params = init_params(pkey, growth_rate=8, block_config=(2, 2),
                         num_init_features=16, bn_size=2, num_classes=10)
    x = jax.random.normal(xkey, (2, 3, 32, 32), jnp.float32)  # NCHW input

    fwd = jax.jit(functools.partial(densenet_forward, params))
    fi, out = fwd(x)
    jax.block_until_ready((fi, out))
    assert fi.shape == (2, 32), fi.shape
    assert out.shape == (2, 10), out.shape
    assert jnp.all(jnp.isfinite(fi)) and jnp.all(jnp.isfinite(out))
    print("KERNEL_OK")
</pallas_src>

<mosaic_0001>
module attributes {stable_mosaic.version = 11 : i64} {
  func.func @_fused_linear_kernel(%arg0: i32, %arg1: memref<512x147xf32, #tpu.memory_space<vmem>>, %arg2: memref<147x16xf32, #tpu.memory_space<vmem>>, %arg3: memref<1x16xf32, #tpu.memory_space<vmem>>, %arg4: memref<512x16xf32, #tpu.memory_space<vmem>>) attributes {dimension_semantics = [#tpu.dimension_semantics<parallel>], iteration_bounds = array<i64: 1>, scalar_prefetch = 0 : i64, scratch_operands = 0 : i64, tpu.core_type = #tpu.core_type<tc>, window_params = [{transform_indices = @transform_0, window_bounds = array<i64: 512, 147>}, {pipeline_mode = #tpu.pipeline_mode<synchronous>, transform_indices = @transform_1, window_bounds = array<i64: 147, 16>}, {pipeline_mode = #tpu.pipeline_mode<synchronous>, transform_indices = @transform_2, window_bounds = array<i64: 1, 16>}, {transform_indices = @transform_3, window_bounds = array<i64: 512, 16>}]} {
    %c0 = arith.constant 0 : index
    %c0_0 = arith.constant 0 : index
    %0 = vector.load %arg1[%c0, %c0_0] : memref<512x147xf32, #tpu.memory_space<vmem>>, vector<512x147xf32>
    %c0_1 = arith.constant 0 : index
    %c0_2 = arith.constant 0 : index
    %1 = vector.load %arg2[%c0_1, %c0_2] : memref<147x16xf32, #tpu.memory_space<vmem>>, vector<147x16xf32>
    %cst = arith.constant dense<0.000000e+00> : vector<512x16xf32>
    %2 = tpu.matmul %0, %1, %cst {dimension_numbers = #tpu.dot_dimension_numbers<[1], [0], [0], [1], [0, 0, 1, 1], [], []>} : vector<512x147xf32>, vector<147x16xf32>, vector<512x16xf32> -> vector<512x16xf32>
    %c0_3 = arith.constant 0 : index
    %c0_4 = arith.constant 0 : index
    %3 = vector.load %arg3[%c0_3, %c0_4] : memref<1x16xf32, #tpu.memory_space<vmem>>, vector<1x16xf32>
    %4 = vector.broadcast %3 : vector<1x16xf32> to vector<512x16xf32>
    %5 = arith.addf %2, %4 : vector<512x16xf32>
    %cst_5 = arith.constant 0.000000e+00 : f32
    %6 = vector.broadcast %cst_5 : f32 to vector<512x16xf32>
    %7 = arith.maximumf %5, %6 : vector<512x16xf32>
    %c0_6 = arith.constant 0 : index
    %c0_7 = arith.constant 0 : index
    %8 = vector.load %arg4[%c0_6, %c0_7] : memref<512x16xf32, #tpu.memory_space<vmem>>, vector<512x16xf32>
    tpu.vector_store %arg4[%c0_6, %c0_7], %7 {strides = array<i32>} : memref<512x16xf32, #tpu.memory_space<vmem>>, vector<512x16xf32>,
    return
  }
  func.func @transform_0(%arg0: i32) -> (i32, i32) {
    %c0_i32 = arith.constant 0 : i32
    %c0_i32_0 = arith.constant 0 : i32
    return %arg0, %c0_i32 : i32, i32
  }
  func.func @transform_1(%arg0: i32) -> (i32, i32) {
    %c0_i32 = arith.constant 0 : i32
    %c0_i32_0 = arith.constant 0 : i32
    %c0_i32_1 = arith.constant 0 : i32
    return %c0_i32, %c0_i32_0 : i32, i32
  }
  func.func @transform_2(%arg0: i32) -> (i32, i32) {
    %c0_i32 = arith.constant 0 : i32
    %c0_i32_0 = arith.constant 0 : i32
    %c0_i32_1 = arith.constant 0 : i32
    return %c0_i32, %c0_i32_0 : i32, i32
  }
  func.func @transform_3(%arg0: i32) -> (i32, i32) {
    %c0_i32 = arith.constant 0 : i32
    %c0_i32_0 = arith.constant 0 : i32
    return %arg0, %c0_i32 : i32, i32
  }
}

module attributes {stable_mosaic.version = 11 : i64} {
  func.func @_fused_linear_kernel(%arg0: i32, %arg1: memref<128x16xf32, #tpu.memory_space<vmem>>, %arg2: memref<1x16xf32, #tpu.memory_space<vmem>>, %arg3: memref<1x16xf32, #tpu.memory_space<vmem>>, %arg4: memref<16x16xf32, #tpu.memory_space<vmem>>, %arg5: memref<1x16xf32, #tpu.memory_space<vmem>>, %arg6: memref<128x16xf32, #tpu.memory_space<vmem>>) attributes {dimension_semantics = [#tpu.dimension_semantics<parallel>], iteration_bounds = array<i64: 1>, scalar_prefetch = 0 : i64, scratch_operands = 0 : i64, tpu.core_type = #tpu.core_type<tc>, window_params = [{transform_indices = @transform_0, window_bounds = array<i64: 128, 16>}, {pipeline_mode = #tpu.pipeline_mode<synchronous>, transform_indices = @transform_1, window_bounds = array<i64: 1, 16>}, {pipeline_mode = #tpu.pipeline_mode<synchronous>, transform_indices = @transform_2, window_bounds = array<i64: 1, 16>}, {pipeline_mode = #tpu.pipeline_mode<synchronous>, transform_indices = @transform_3, window_bounds = array<i64: 16, 16>}, {pipeline_mode = #tpu.pipeline_mode<synchronous>, transform_indices = @transform_4, window_bounds = array<i64: 1, 16>}, {transform_indices = @transform_5, window_bounds = array<i64: 128, 16>}]} {
    %c0 = arith.constant 0 : index
    %c0_0 = arith.constant 0 : index
    %0 = vector.load %arg1[%c0, %c0_0] : memref<128x16xf32, #tpu.memory_space<vmem>>, vector<128x16xf32>
    %c0_1 = arith.constant 0 : index
    %c0_2 = arith.constant 0 : index
    %1 = vector.load %arg2[%c0_1, %c0_2] : memref<1x16xf32, #tpu.memory_space<vmem>>, vector<1x16xf32>
    %2 = vector.broadcast %1 : vector<1x16xf32> to vector<128x16xf32>
    %3 = arith.mulf %0, %2 : vector<128x16xf32>
    %c0_3 = arith.constant 0 : index
    %c0_4 = arith.constant 0 : index
    %4 = vector.load %arg3[%c0_3, %c0_4] : memref<1x16xf32, #tpu.memory_space<vmem>>, vector<1x16xf32>
    %5 = vector.broadcast %4 : vector<1x16xf32> to vector<128x16xf32>
    %6 = arith.addf %3, %5 : vector<128x16xf32>
    %cst = arith.constant 0.000000e+00 : f32
    %7 = vector.broadcast %cst : f32 to vector<128x16xf32>
    %8 = arith.maximumf %6, %7 : vector<128x16xf32>
    %c0_5 = arith.constant 0 : index
    %c0_6 = arith.constant 0 : index
    %9 = vector.load %arg4[%c0_5, %c0_6] : memref<16x16xf32, #tpu.memory_space<vmem>>, vector<16x16xf32>
    %cst_7 = arith.constant dense<0.000000e+00> : vector<128x16xf32>
    %10 = tpu.matmul %8, %9, %cst_7 {dimension_numbers = #tpu.dot_dimension_numbers<[1], [0], [0], [1], [0, 0, 1, 1], [], []>} : vector<128x16xf32>, vector<16x16xf32>, vector<128x16xf32> -> vector<128x16xf32>
    %c0_8 = arith.constant 0 : index
    %c0_9 = arith.constant 0 : index
    %11 = vector.load %arg5[%c0_8, %c0_9] : memref<1x16xf32, #tpu.memory_space<vmem>>, vector<1x16xf32>
    %12 = vector.broadcast %11 : vector<1x16xf32> to vector<128x16xf32>
    %13 = arith.addf %10, %12 : vector<128x16xf32>
    %cst_10 = arith.constant 0.000000e+00 : f32
    %14 = vector.broadcast %cst_10 : f32 to vector<128x16xf32>
    %15 = arith.maximumf %13, %14 : vector<128x16xf32>
    %c0_11 = arith.constant 0 : index
    %c0_12 = arith.constant 0 : index
    %16 = vector.load %arg6[%c0_11, %c0_12] : memref<128x16xf32, #tpu.memory_space<vmem>>, vector<128x16xf32>
    tpu.vector_store %arg6[%c0_11, %c0_12], %15 {strides = array<i32>} : memref<128x16xf32, #tpu.memory_space<vmem>>, vector<128x16xf32>,
    return
  }
  func.func @transform_0(%arg0: i32) -> (i32, i32) {
    %c0_i32 = arith.constant 0 : i32
    %c0_i32_0 = arith.constant 0 : i32
    return %arg0, %c0_i32 : i32, i32
  }
  func.func @transform_1(%arg0: i32) -> (i32, i32) {
    %c0_i32 = arith.constant 0 : i32
    %c0_i32_0 = arith.constant 0 : i32
    %c0_i32_1 = arith.constant 0 : i32
    return %c0_i32, %c0_i32_0 : i32, i32
  }
  func.func @transform_2(%arg0: i32) -> (i32, i32) {
    %c0_i32 = arith.constant 0 : i32
    %c0_i32_0 = arith.constant 0 : i32
    %c0_i32_1 = arith.constant 0 : i32
    return %c0_i32, %c0_i32_0 : i32, i32
  }
  func.func @transform_3(%arg0: i32) -> (i32, i32) {
    %c0_i32 = arith.constant 0 : i32
    %c0_i32_0 = arith.constant 0 : i32
    %c0_i32_1 = arith.constant 0 : i32
    return %c0_i32, %c0_i32_0 : i32, i32
  }
  func.func @transform_4(%arg0: i32) -> (i32, i32) {
    %c0_i32 = arith.constant 0 : i32
    %c0_i32_0 = arith.constant 0 : i32
    %c0_i32_1 = arith.constant 0 : i32
    return %c0_i32, %c0_i32_0 : i32, i32
  }
  func.func @transform_5(%arg0: i32) -> (i32, i32) {
    %c0_i32 = arith.constant 0 : i32
    %c0_i32_0 = arith.constant 0 : i32
    return %arg0, %c0_i32 : i32, i32
  }
}

module attributes {stable_mosaic.version = 11 : i64} {
  func.func @_conv3x3_kernel(%arg0: i32, %arg1: memref<1x110x16xf32, #tpu.memory_space<vmem>>, %arg2: memref<9x16x8xf32, #tpu.memory_space<vmem>>, %arg3: memref<1x80x8xf32, #tpu.memory_space<vmem>>) attributes {dimension_semantics = [#tpu.dimension_semantics<parallel>], iteration_bounds = array<i64: 2>, scalar_prefetch = 0 : i64, scratch_operands = 0 : i64, tpu.core_type = #tpu.core_type<tc>, window_params = [{transform_indices = @transform_0, window_bounds = array<i64: 1, 110, 16>}, {pipeline_mode = #tpu.pipeline_mode<synchronous>, transform_indices = @transform_1, window_bounds = array<i64: 9, 16, 8>}, {transform_indices = @transform_2, window_bounds = array<i64: 1, 80, 8>}]} {
    %cst = arith.constant 0.000000e+00 : f32
    %0 = vector.broadcast %cst : f32 to vector<80x8xf32>
    %c0 = arith.constant 0 : index
    %c0_0 = arith.constant 0 : index
    %c0_1 = arith.constant 0 : index
    %1 = vector.load %arg1[%c0, %c0_0, %c0_1] : memref<1x110x16xf32, #tpu.memory_space<vmem>>, vector<1x80x16xf32>
    %2 = vector.shape_cast %1 : vector<1x80x16xf32> to vector<80x16xf32>
    %c0_2 = arith.constant 0 : index
    %c0_3 = arith.constant 0 : index
    %c0_4 = arith.constant 0 : index
    %3 = vector.load %arg2[%c0_2, %c0_3, %c0_4] : memref<9x16x8xf32, #tpu.memory_space<vmem>>, vector<1x16x8xf32>
    %4 = vector.shape_cast %3 : vector<1x16x8xf32> to vector<16x8xf32>
    %cst_5 = arith.constant dense<0.000000e+00> : vector<80x8xf32>
    %5 = tpu.matmul %2, %4, %cst_5 {dimension_numbers = #tpu.dot_dimension_numbers<[1], [0], [0], [1], [0, 0, 1, 1], [], []>} : vector<80x16xf32>, vector<16x8xf32>, vector<80x8xf32> -> vector<80x8xf32>
    %6 = arith.addf %0, %5 : vector<80x8xf32>
    %c0_6 = arith.constant 0 : index
    %c1 = arith.constant 1 : index
    %c0_7 = arith.constant 0 : index
    %7 = vector.load %arg1[%c0_6, %c1, %c0_7] : memref<1x110x16xf32, #tpu.memory_space<vmem>>, vector<1x80x16xf32>
    %8 = vector.shape_cast %7 : vector<1x80x16xf32> to vector<80x16xf32>
    %c1_8 = arith.constant 1 : index
    %c0_9 = arith.constant 0 : index
    %c0_10 = arith.constant 0 : index
    %9 = vector.load %arg2[%c1_8, %c0_9, %c0_10] : memref<9x16x8xf32, #tpu.memory_space<vmem>>, vector<1x16x8xf32>
    %10 = vector.shape_cast %9 : vector<1x16x8xf32> to vector<16x8xf32>
    %cst_11 = arith.constant dense<0.000000e+00> : vector<80x8xf32>
    %11 = tpu.matmul %8, %10, %cst_11 {dimension_numbers = #tpu.dot_dimension_numbers<[1], [0], [0], [1], [0, 0, 1, 1], [], []>} : vector<80x16xf32>, vector<16x8xf32>, vector<80x8xf32> -> vector<80x8xf32>
    %12 = arith.addf %6, %11 : vector<80x8xf32>
    %c0_12 = arith.constant 0 : index
    %c2 = arith.constant 2 : index
    %c0_13 = arith.constant 0 : index
    %13 = vector.load %arg1[%c0_12, %c2, %c0_13] : memref<1x110x16xf32, #tpu.memory_space<vmem>>, vector<1x80x16xf32>
    %14 = vector.shape_cast %13 : vector<1x80x16xf32> to vector<80x16xf32>
    %c2_14 = arith.constant 2 : index
    %c0_15 = arith.constant 0 : index
    %c0_16 = arith.constant 0 : index
    %15 = vector.load %arg2[%c2_14, %c0_15, %c0_16] : memref<9x16x8xf32, #tpu.memory_space<vmem>>, vector<1x16x8xf32>
    %16 = vector.shape_cast %15 : vector<1x16x8xf32> to vector<16x8xf32>
    %cst_17 = arith.constant dense<0.000000e+00> : vector<80x8xf32>
    %17 = tpu.matmul %14, %16, %cst_17 {dimension_numbers = #tpu.dot_dimension_numbers<[1], [0], [0], [1], [0, 0, 1, 1], [], []>} : vector<80x16xf32>, vector<16x8xf32>, vector<80x8xf32> -> vector<80x8xf32>
    %18 = arith.addf %12, %17 : vector<80x8xf32>
    %c0_18 = arith.constant 0 : index
    %c10 = arith.constant 10 : index
    %c0_19 = arith.constant 0 : index
    %19 = vector.load %arg1[%c0_18, %c10, %c0_19] : memref<1x110x16xf32, #tpu.memory_space<vmem>>, vector<1x80x16xf32>
    %20 = vector.shape_cast %19 : vector<1x80x16xf32> to vector<80x16xf32>
    %c3 = arith.constant 3 : index
    %c0_20 = arith.constant 0 : index
    %c0_21 = arith.constant 0 : index
    %21 = vector.load %arg2[%c3, %c0_20, %c0_21] : memref<9x16x8xf32, #tpu.memory_space<vmem>>, vector<1x16x8xf32>
    %22 = vector.shape_cast %21 : vector<1x16x8xf32> to vector<16x8xf32>
    %cst_22 = arith.constant dense<0.000000e+00> : vector<80x8xf32>
    %23 = tpu.matmul %20, %22, %cst_22 {dimension_numbers = #tpu.dot_dimension_numbers<[1], [0], [0], [1], [0, 0, 1, 1], [], []>} : vector<80x16xf32>, vector<16x8xf32>, vector<80x8xf32> -> vector<80x8xf32>
    %24 = arith.addf %18, %23 : vector<80x8xf32>
    %c0_23 = arith.constant 0 : index
    %c11 = arith.constant 11 : index
    %c0_24 = arith.constant 0 : index
    %25 = vector.load %arg1[%c0_23, %c11, %c0_24] : memref<1x110x16xf32, #tpu.memory_space<vmem>>, vector<1x80x16xf32>
    %26 = vector.shape_cast %25 : vector<1x80x16xf32> to vector<80x16xf32>
    %c4 = arith.constant 4 : index
    %c0_25 = arith.constant 0 : index
    %c0_26 = arith.constant 0 : index
    %27 = vector.load %arg2[%c4, %c0_25, %c0_26] : memref<9x16x8xf32, #tpu.memory_space<vmem>>, vector<1x16x8xf32>
    %28 = vector.shape_cast %27 : vector<1x16x8xf32> to vector<16x8xf32>
    %cst_27 = arith.constant dense<0.000000e+00> : vector<80x8xf32>
    %29 = tpu.matmul %26, %28, %cst_27 {dimension_numbers = #tpu.dot_dimension_numbers<[1], [0], [0], [1], [0, 0, 1, 1], [], []>} : vector<80x16xf32>, vector<16x8xf32>, vector<80x8xf32> -> vector<80x8xf32>
    %30 = arith.addf %24, %29 : vector<80x8xf32>
    %c0_28 = arith.constant 0 : index
    %c12 = arith.constant 12 : index
    %c0_29 = arith.constant 0 : index
    %31 = vector.load %arg1[%c0_28, %c12, %c0_29] : memref<1x110x16xf32, #tpu.memory_space<vmem>>, vector<1x80x16xf32>
    %32 = vector.shape_cast %31 : vector<1x80x16xf32> to vector<80x16xf32>
    %c5 = arith.constant 5 : index
    %c0_30 = arith.constant 0 : index
    %c0_31 = arith.constant 0 : index
    %33 = vector.load %arg2[%c5, %c0_30, %c0_31] : memref<9x16x8xf32, #tpu.memory_space<vmem>>, vector<1x16x8xf32>
    %34 = vector.shape_cast %33 : vector<1x16x8xf32> to vector<16x8xf32>
    %cst_32 = arith.constant dense<0.000000e+00> : vector<80x8xf32>
    %35 = tpu.matmul %32, %34, %cst_32 {dimension_numbers = #tpu.dot_dimension_numbers<[1], [0], [0], [1], [0, 0, 1, 1], [], []>} : vector<80x16xf32>, vector<16x8xf32>, vector<80x8xf32> -> vector<80x8xf32>
    %36 = arith.addf %30, %35 : vector<80x8xf32>
    %c0_33 = arith.constant 0 : index
    %c20 = arith.constant 20 : index
    %c0_34 = arith.constant 0 : index
    %37 = vector.load %arg1[%c0_33, %c20, %c0_34] : memref<1x110x16xf32, #tpu.memory_space<vmem>>, vector<1x80x16xf32>
    %38 = vector.shape_cast %37 : vector<1x80x16xf32> to vector<80x16xf32>
    %c6 = arith.constant 6 : index
    %c0_35 = arith.constant 0 : index
    %c0_36 = arith.constant 0 : index
    %39 = vector.load %arg2[%c6, %c0_35, %c0_36] : memref<9x16x8xf32, #tpu.memory_space<vmem>>, vector<1x16x8xf32>
    %40 = vector.shape_cast %39 : vector<1x16x8xf32> to vector<16x8xf32>
    %cst_37 = arith.constant dense<0.000000e+00> : vector<80x8xf32>
    %41 = tpu.matmul %38, %40, %cst_37 {dimension_numbers = #tpu.dot_dimension_numbers<[1], [0], [0], [1], [0, 0, 1, 1], [], []>} : vector<80x16xf32>, vector<16x8xf32>, vector<80x8xf32> -> vector<80x8xf32>
    %42 = arith.addf %36, %41 : vector<80x8xf32>
    %c0_38 = arith.constant 0 : index
    %c21 = arith.constant 21 : index
    %c0_39 = arith.constant 0 : index
    %43 = vector.load %arg1[%c0_38, %c21, %c0_39] : memref<1x110x16xf32, #tpu.memory_space<vmem>>, vector<1x80x16xf32>
    %44 = vector.shape_cast %43 : vector<1x80x16xf32> to vector<80x16xf32>
    %c7 = arith.constant 7 : index
    %c0_40 = arith.constant 0 : index
    %c0_41 = arith.constant 0 : index
    %45 = vector.load %arg2[%c7, %c0_40, %c0_41] : memref<9x16x8xf32, #tpu.memory_space<vmem>>, vector<1x16x8xf32>
    %46 = vector.shape_cast %45 : vector<1x16x8xf32> to vector<16x8xf32>
    %cst_42 = arith.constant dense<0.000000e+00> : vector<80x8xf32>
    %47 = tpu.matmul %44, %46, %cst_42 {dimension_numbers = #tpu.dot_dimension_numbers<[1], [0], [0], [1], [0, 0, 1, 1], [], []>} : vector<80x16xf32>, vector<16x8xf32>, vector<80x8xf32> -> vector<80x8xf32>
    %48 = arith.addf %42, %47 : vector<80x8xf32>
    %c0_43 = arith.constant 0 : index
    %c22 = arith.constant 22 : index
    %c0_44 = arith.constant 0 : index
    %49 = vector.load %arg1[%c0_43, %c22, %c0_44] : memref<1x110x16xf32, #tpu.memory_space<vmem>>, vector<1x80x16xf32>
    %50 = vector.shape_cast %49 : vector<1x80x16xf32> to vector<80x16xf32>
    %c8 = arith.constant 8 : index
    %c0_45 = arith.constant 0 : index
    %c0_46 = arith.constant 0 : index
    %51 = vector.load %arg2[%c8, %c0_45, %c0_46] : memref<9x16x8xf32, #tpu.memory_space<vmem>>, vector<1x16x8xf32>
    %52 = vector.shape_cast %51 : vector<1x16x8xf32> to vector<16x8xf32>
    %cst_47 = arith.constant dense<0.000000e+00> : vector<80x8xf32>
    %53 = tpu.matmul %50, %52, %cst_47 {dimension_numbers = #tpu.dot_dimension_numbers<[1], [0], [0], [1], [0, 0, 1, 1], [], []>} : vector<80x16xf32>, vector<16x8xf32>, vector<80x8xf32> -> vector<80x8xf32>
    %54 = arith.addf %48, %53 : vector<80x8xf32>
    %c0_48 = arith.constant 0 : index
    %c0_49 = arith.constant 0 : index
    %c0_50 = arith.constant 0 : index
    %55 = vector.load %arg3[%c0_48, %c0_49, %c0_50] : memref<1x80x8xf32, #tpu.memory_space<vmem>>, vector<1x80x8xf32>
    %56 = vector.shape_cast %55 : vector<1x80x8xf32> to vector<80x8xf32>
    %57 = vector.shape_cast %54 : vector<80x8xf32> to vector<1x80x8xf32>
    tpu.vector_store %arg3[%c0_48, %c0_49, %c0_50], %57 {strides = array<i32>} : memref<1x80x8xf32, #tpu.memory_space<vmem>>, vector<1x80x8xf32>,
    return
  }
  func.func @transform_0(%arg0: i32) -> (i32, i32, i32) {
    %c0_i32 = arith.constant 0 : i32
    %c0_i32_0 = arith.constant 0 : i32
    %c0_i32_1 = arith.constant 0 : i32
    return %arg0, %c0_i32, %c0_i32_0 : i32, i32, i32
  }
  func.func @transform_1(%arg0: i32) -> (i32, i32, i32) {
    %c0_i32 = arith.constant 0 : i32
    %c0_i32_0 = arith.constant 0 : i32
    %c0_i32_1 = arith.constant 0 : i32
    %c0_i32_2 = arith.constant 0 : i32
    return %c0_i32, %c0_i32_0, %c0_i32_1 : i32, i32, i32
  }
  func.func @transform_2(%arg0: i32) -> (i32, i32, i32) {
    %c0_i32 = arith.constant 0 : i32
    %c0_i32_0 = arith.constant 0 : i32
    %c0_i32_1 = arith.constant 0 : i32
    return %arg0, %c0_i32, %c0_i32_0 : i32, i32, i32
  }
}

module attributes {stable_mosaic.version = 11 : i64} {
  func.func @_fused_linear_kernel(%arg0: i32, %arg1: memref<128x24xf32, #tpu.memory_space<vmem>>, %arg2: memref<1x24xf32, #tpu.memory_space<vmem>>, %arg3: memref<1x24xf32, #tpu.memory_space<vmem>>, %arg4: memref<24x16xf32, #tpu.memory_space<vmem>>, %arg5: memref<1x16xf32, #tpu.memory_space<vmem>>, %arg6: memref<128x16xf32, #tpu.memory_space<vmem>>) attributes {dimension_semantics = [#tpu.dimension_semantics<parallel>], iteration_bounds = array<i64: 1>, scalar_prefetch = 0 : i64, scratch_operands = 0 : i64, tpu.core_type = #tpu.core_type<tc>, window_params = [{transform_indices = @transform_0, window_bounds = array<i64: 128, 24>}, {pipeline_mode = #tpu.pipeline_mode<synchronous>, transform_indices = @transform_1, window_bounds = array<i64: 1, 24>}, {pipeline_mode = #tpu.pipeline_mode<synchronous>, transform_indices = @transform_2, window_bounds = array<i64: 1, 24>}, {pipeline_mode = #tpu.pipeline_mode<synchronous>, transform_indices = @transform_3, window_bounds = array<i64: 24, 16>}, {pipeline_mode = #tpu.pipeline_mode<synchronous>, transform_indices = @transform_4, window_bounds = array<i64: 1, 16>}, {transform_indices = @transform_5, window_bounds = array<i64: 128, 16>}]} {
    %c0 = arith.constant 0 : index
    %c0_0 = arith.constant 0 : index
    %0 = vector.load %arg1[%c0, %c0_0] : memref<128x24xf32, #tpu.memory_space<vmem>>, vector<128x24xf32>
    %c0_1 = arith.constant 0 : index
    %c0_2 = arith.constant 0 : index
    %1 = vector.load %arg2[%c0_1, %c0_2] : memref<1x24xf32, #tpu.memory_space<vmem>>, vector<1x24xf32>
    %2 = vector.broadcast %1 : vector<1x24xf32> to vector<128x24xf32>
    %3 = arith.mulf %0, %2 : vector<128x24xf32>
    %c0_3 = arith.constant 0 : index
    %c0_4 = arith.constant 0 : index
    %4 = vector.load %arg3[%c0_3, %c0_4] : memref<1x24xf32, #tpu.memory_space<vmem>>, vector<1x24xf32>
    %5 = vector.broadcast %4 : vector<1x24xf32> to vector<128x24xf32>
    %6 = arith.addf %3, %5 : vector<128x24xf32>
    %cst = arith.constant 0.000000e+00 : f32
    %7 = vector.broadcast %cst : f32 to vector<128x24xf32>
    %8 = arith.maximumf %6, %7 : vector<128x24xf32>
    %c0_5 = arith.constant 0 : index
    %c0_6 = arith.constant 0 : index
    %9 = vector.load %arg4[%c0_5, %c0_6] : memref<24x16xf32, #tpu.memory_space<vmem>>, vector<24x16xf32>
    %cst_7 = arith.constant dense<0.000000e+00> : vector<128x16xf32>
    %10 = tpu.matmul %8, %9, %cst_7 {dimension_numbers = #tpu.dot_dimension_numbers<[1], [0], [0], [1], [0, 0, 1, 1], [], []>} : vector<128x24xf32>, vector<24x16xf32>, vector<128x16xf32> -> vector<128x16xf32>
    %c0_8 = arith.constant 0 : index
    %c0_9 = arith.constant 0 : index
    %11 = vector.load %arg5[%c0_8, %c0_9] : memref<1x16xf32, #tpu.memory_space<vmem>>, vector<1x16xf32>
    %12 = vector.broadcast %11 : vector<1x16xf32> to vector<128x16xf32>
    %13 = arith.addf %10, %12 : vector<128x16xf32>
    %cst_10 = arith.constant 0.000000e+00 : f32
    %14 = vector.broadcast %cst_10 : f32 to vector<128x16xf32>
    %15 = arith.maximumf %13, %14 : vector<128x16xf32>
    %c0_11 = arith.constant 0 : index
    %c0_12 = arith.constant 0 : index
    %16 = vector.load %arg6[%c0_11, %c0_12] : memref<128x16xf32, #tpu.memory_space<vmem>>, vector<128x16xf32>
    tpu.vector_store %arg6[%c0_11, %c0_12], %15 {strides = array<i32>} : memref<128x16xf32, #tpu.memory_space<vmem>>, vector<128x16xf32>,
    return
  }
  func.func @transform_0(%arg0: i32) -> (i32, i32) {
    %c0_i32 = arith.constant 0 : i32
    %c0_i32_0 = arith.constant 0 : i32
    return %arg0, %c0_i32 : i32, i32
  }
  func.func @transform_1(%arg0: i32) -> (i32, i32) {
    %c0_i32 = arith.constant 0 : i32
    %c0_i32_0 = arith.constant 0 : i32
    %c0_i32_1 = arith.constant 0 : i32
    return %c0_i32, %c0_i32_0 : i32, i32
  }
  func.func @transform_2(%arg0: i32) -> (i32, i32) {
    %c0_i32 = arith.constant 0 : i32
    %c0_i32_0 = arith.constant 0 : i32
    %c0_i32_1 = arith.constant 0 : i32
    return %c0_i32, %c0_i32_0 : i32, i32
  }
  func.func @transform_3(%arg0: i32) -> (i32, i32) {
    %c0_i32 = arith.constant 0 : i32
    %c0_i32_0 = arith.constant 0 : i32
    %c0_i32_1 = arith.constant 0 : i32
    return %c0_i32, %c0_i32_0 : i32, i32
  }
  func.func @transform_4(%arg0: i32) -> (i32, i32) {
    %c0_i32 = arith.constant 0 : i32
    %c0_i32_0 = arith.constant 0 : i32
    %c0_i32_1 = arith.constant 0 : i32
    return %c0_i32, %c0_i32_0 : i32, i32
  }
  func.func @transform_5(%arg0: i32) -> (i32, i32) {
    %c0_i32 = arith.constant 0 : i32
    %c0_i32_0 = arith.constant 0 : i32
    return %arg0, %c0_i32 : i32, i32
  }
}

module attributes {stable_mosaic.version = 11 : i64} {
  func.func @_fused_linear_kernel(%arg0: i32, %arg1: memref<128x32xf32, #tpu.memory_space<vmem>>, %arg2: memref<1x32xf32, #tpu.memory_space<vmem>>, %arg3: memref<1x32xf32, #tpu.memory_space<vmem>>, %arg4: memref<32x16xf32, #tpu.memory_space<vmem>>, %arg5: memref<128x16xf32, #tpu.memory_space<vmem>>) attributes {dimension_semantics = [#tpu.dimension_semantics<parallel>], iteration_bounds = array<i64: 1>, scalar_prefetch = 0 : i64, scratch_operands = 0 : i64, tpu.core_type = #tpu.core_type<tc>, window_params = [{transform_indices = @transform_0, window_bounds = array<i64: 128, 32>}, {pipeline_mode = #tpu.pipeline_mode<synchronous>, transform_indices = @transform_1, window_bounds = array<i64: 1, 32>}, {pipeline_mode = #tpu.pipeline_mode<synchronous>, transform_indices = @transform_2, window_bounds = array<i64: 1, 32>}, {pipeline_mode = #tpu.pipeline_mode<synchronous>, transform_indices = @transform_3, window_bounds = array<i64: 32, 16>}, {transform_indices = @transform_4, window_bounds = array<i64: 128, 16>}]} {
    %c0 = arith.constant 0 : index
    %c0_0 = arith.constant 0 : index
    %0 = vector.load %arg1[%c0, %c0_0] : memref<128x32xf32, #tpu.memory_space<vmem>>, vector<128x32xf32>
    %c0_1 = arith.constant 0 : index
    %c0_2 = arith.constant 0 : index
    %1 = vector.load %arg2[%c0_1, %c0_2] : memref<1x32xf32, #tpu.memory_space<vmem>>, vector<1x32xf32>
    %2 = vector.broadcast %1 : vector<1x32xf32> to vector<128x32xf32>
    %3 = arith.mulf %0, %2 : vector<128x32xf32>
    %c0_3 = arith.constant 0 : index
    %c0_4 = arith.constant 0 : index
    %4 = vector.load %arg3[%c0_3, %c0_4] : memref<1x32xf32, #tpu.memory_space<vmem>>, vector<1x32xf32>
    %5 = vector.broadcast %4 : vector<1x32xf32> to vector<128x32xf32>
    %6 = arith.addf %3, %5 : vector<128x32xf32>
    %cst = arith.constant 0.000000e+00 : f32
    %7 = vector.broadcast %cst : f32 to vector<128x32xf32>
    %8 = arith.maximumf %6, %7 : vector<128x32xf32>
    %c0_5 = arith.constant 0 : index
    %c0_6 = arith.constant 0 : index
    %9 = vector.load %arg4[%c0_5, %c0_6] : memref<32x16xf32, #tpu.memory_space<vmem>>, vector<32x16xf32>
    %cst_7 = arith.constant dense<0.000000e+00> : vector<128x16xf32>
    %10 = tpu.matmul %8, %9, %cst_7 {dimension_numbers = #tpu.dot_dimension_numbers<[1], [0], [0], [1], [0, 0, 1, 1], [], []>} : vector<128x32xf32>, vector<32x16xf32>, vector<128x16xf32> -> vector<128x16xf32>
    %c0_8 = arith.constant 0 : index
    %c0_9 = arith.constant 0 : index
    %11 = vector.load %arg5[%c0_8, %c0_9] : memref<128x16xf32, #tpu.memory_space<vmem>>, vector<128x16xf32>
    tpu.vector_store %arg5[%c0_8, %c0_9], %10 {strides = array<i32>} : memref<128x16xf32, #tpu.memory_space<vmem>>, vector<128x16xf32>,
    return
  }
  func.func @transform_0(%arg0: i32) -> (i32, i32) {
    %c0_i32 = arith.constant 0 : i32
    %c0_i32_0 = arith.constant 0 : i32
    return %arg0, %c0_i32 : i32, i32
  }
  func.func @transform_1(%arg0: i32) -> (i32, i32) {
    %c0_i32 = arith.constant 0 : i32
    %c0_i32_0 = arith.constant 0 : i32
    %c0_i32_1 = arith.constant 0 : i32
    return %c0_i32, %c0_i32_0 : i32, i32
  }
  func.func @transform_2(%arg0: i32) -> (i32, i32) {
    %c0_i32 = arith.constant 0 : i32
    %c0_i32_0 = arith.constant 0 : i32
    %c0_i32_1 = arith.constant 0 : i32
    return %c0_i32, %c0_i32_0 : i32, i32
  }
  func.func @transform_3(%arg0: i32) -> (i32, i32) {
    %c0_i32 = arith.constant 0 : i32
    %c0_i32_0 = arith.constant 0 : i32
    %c0_i32_1 = arith.constant 0 : i32
    return %c0_i32, %c0_i32_0 : i32, i32
  }
  func.func @transform_4(%arg0: i32) -> (i32, i32) {
    %c0_i32 = arith.constant 0 : i32
    %c0_i32_0 = arith.constant 0 : i32
    return %arg0, %c0_i32 : i32, i32
  }
}

module attributes {stable_mosaic.version = 11 : i64} {
  func.func @_fused_linear_kernel(%arg0: i32, %arg1: memref<32x16xf32, #tpu.memory_space<vmem>>, %arg2: memref<1x16xf32, #tpu.memory_space<vmem>>, %arg3: memref<1x16xf32, #tpu.memory_space<vmem>>, %arg4: memref<16x16xf32, #tpu.memory_space<vmem>>, %arg5: memref<1x16xf32, #tpu.memory_space<vmem>>, %arg6: memref<32x16xf32, #tpu.memory_space<vmem>>) attributes {dimension_semantics = [#tpu.dimension_semantics<parallel>], iteration_bounds = array<i64: 1>, scalar_prefetch = 0 : i64, scratch_operands = 0 : i64, tpu.core_type = #tpu.core_type<tc>, window_params = [{transform_indices = @transform_0, window_bounds = array<i64: 32, 16>}, {pipeline_mode = #tpu.pipeline_mode<synchronous>, transform_indices = @transform_1, window_bounds = array<i64: 1, 16>}, {pipeline_mode = #tpu.pipeline_mode<synchronous>, transform_indices = @transform_2, window_bounds = array<i64: 1, 16>}, {pipeline_mode = #tpu.pipeline_mode<synchronous>, transform_indices = @transform_3, window_bounds = array<i64: 16, 16>}, {pipeline_mode = #tpu.pipeline_mode<synchronous>, transform_indices = @transform_4, window_bounds = array<i64: 1, 16>}, {transform_indices = @transform_5, window_bounds = array<i64: 32, 16>}]} {
    %c0 = arith.constant 0 : index
    %c0_0 = arith.constant 0 : index
    %0 = vector.load %arg1[%c0, %c0_0] : memref<32x16xf32, #tpu.memory_space<vmem>>, vector<32x16xf32>
    %c0_1 = arith.constant 0 : index
    %c0_2 = arith.constant 0 : index
    %1 = vector.load %arg2[%c0_1, %c0_2] : memref<1x16xf32, #tpu.memory_space<vmem>>, vector<1x16xf32>
    %2 = vector.broadcast %1 : vector<1x16xf32> to vector<32x16xf32>
    %3 = arith.mulf %0, %2 : vector<32x16xf32>
    %c0_3 = arith.constant 0 : index
    %c0_4 = arith.constant 0 : index
    %4 = vector.load %arg3[%c0_3, %c0_4] : memref<1x16xf32, #tpu.memory_space<vmem>>, vector<1x16xf32>
    %5 = vector.broadcast %4 : vector<1x16xf32> to vector<32x16xf32>
    %6 = arith.addf %3, %5 : vector<32x16xf32>
    %cst = arith.constant 0.000000e+00 : f32
    %7 = vector.broadcast %cst : f32 to vector<32x16xf32>
    %8 = arith.maximumf %6, %7 : vector<32x16xf32>
    %c0_5 = arith.constant 0 : index
    %c0_6 = arith.constant 0 : index
    %9 = vector.load %arg4[%c0_5, %c0_6] : memref<16x16xf32, #tpu.memory_space<vmem>>, vector<16x16xf32>
    %cst_7 = arith.constant dense<0.000000e+00> : vector<32x16xf32>
    %10 = tpu.matmul %8, %9, %cst_7 {dimension_numbers = #tpu.dot_dimension_numbers<[1], [0], [0], [1], [0, 0, 1, 1], [], []>} : vector<32x16xf32>, vector<16x16xf32>, vector<32x16xf32> -> vector<32x16xf32>
    %c0_8 = arith.constant 0 : index
    %c0_9 = arith.constant 0 : index
    %11 = vector.load %arg5[%c0_8, %c0_9] : memref<1x16xf32, #tpu.memory_space<vmem>>, vector<1x16xf32>
    %12 = vector.broadcast %11 : vector<1x16xf32> to vector<32x16xf32>
    %13 = arith.addf %10, %12 : vector<32x16xf32>
    %cst_10 = arith.constant 0.000000e+00 : f32
    %14 = vector.broadcast %cst_10 : f32 to vector<32x16xf32>
    %15 = arith.maximumf %13, %14 : vector<32x16xf32>
    %c0_11 = arith.constant 0 : index
    %c0_12 = arith.constant 0 : index
    %16 = vector.load %arg6[%c0_11, %c0_12] : memref<32x16xf32, #tpu.memory_space<vmem>>, vector<32x16xf32>
    tpu.vector_store %arg6[%c0_11, %c0_12], %15 {strides = array<i32>} : memref<32x16xf32, #tpu.memory_space<vmem>>, vector<32x16xf32>,
    return
  }
  func.func @transform_0(%arg0: i32) -> (i32, i32) {
    %c0_i32 = arith.constant 0 : i32
    %c0_i32_0 = arith.constant 0 : i32
    return %arg0, %c0_i32 : i32, i32
  }
  func.func @transform_1(%arg0: i32) -> (i32, i32) {
    %c0_i32 = arith.constant 0 : i32
    %c0_i32_0 = arith.constant 0 : i32
    %c0_i32_1 = arith.constant 0 : i32
    return %c0_i32, %c0_i32_0 : i32, i32
  }
  func.func @transform_2(%arg0: i32) -> (i32, i32) {
    %c0_i32 = arith.constant 0 : i32
    %c0_i32_0 = arith.constant 0 : i32
    %c0_i32_1 = arith.constant 0 : i32
    return %c0_i32, %c0_i32_0 : i32, i32
  }
  func.func @transform_3(%arg0: i32) -> (i32, i32) {
    %c0_i32 = arith.constant 0 : i32
    %c0_i32_0 = arith.constant 0 : i32
    %c0_i32_1 = arith.constant 0 : i32
    return %c0_i32, %c0_i32_0 : i32, i32
  }
  func.func @transform_4(%arg0: i32) -> (i32, i32) {
    %c0_i32 = arith.constant 0 : i32
    %c0_i32_0 = arith.constant 0 : i32
    %c0_i32_1 = arith.constant 0 : i32
    return %c0_i32, %c0_i32_0 : i32, i32
  }
  func.func @transform_5(%arg0: i32) -> (i32, i32) {
    %c0_i32 = arith.constant 0 : i32
    %c0_i32_0 = arith.constant 0 : i32
    return %arg0, %c0_i32 : i32, i32
  }
}

module attributes {stable_mosaic.version = 11 : i64} {
  func.func @_conv3x3_kernel(%arg0: i32, %arg1: memref<1x42x16xf32, #tpu.memory_space<vmem>>, %arg2: memref<9x16x8xf32, #tpu.memory_space<vmem>>, %arg3: memref<1x24x8xf32, #tpu.memory_space<vmem>>) attributes {dimension_semantics = [#tpu.dimension_semantics<parallel>], iteration_bounds = array<i64: 2>, scalar_prefetch = 0 : i64, scratch_operands = 0 : i64, tpu.core_type = #tpu.core_type<tc>, window_params = [{transform_indices = @transform_0, window_bounds = array<i64: 1, 42, 16>}, {pipeline_mode = #tpu.pipeline_mode<synchronous>, transform_indices = @transform_1, window_bounds = array<i64: 9, 16, 8>}, {transform_indices = @transform_2, window_bounds = array<i64: 1, 24, 8>}]} {
    %cst = arith.constant 0.000000e+00 : f32
    %0 = vector.broadcast %cst : f32 to vector<24x8xf32>
    %c0 = arith.constant 0 : index
    %c0_0 = arith.constant 0 : index
    %c0_1 = arith.constant 0 : index
    %1 = vector.load %arg1[%c0, %c0_0, %c0_1] : memref<1x42x16xf32, #tpu.memory_space<vmem>>, vector<1x24x16xf32>
    %2 = vector.shape_cast %1 : vector<1x24x16xf32> to vector<24x16xf32>
    %c0_2 = arith.constant 0 : index
    %c0_3 = arith.constant 0 : index
    %c0_4 = arith.constant 0 : index
    %3 = vector.load %arg2[%c0_2, %c0_3, %c0_4] : memref<9x16x8xf32, #tpu.memory_space<vmem>>, vector<1x16x8xf32>
    %4 = vector.shape_cast %3 : vector<1x16x8xf32> to vector<16x8xf32>
    %cst_5 = arith.constant dense<0.000000e+00> : vector<24x8xf32>
    %5 = tpu.matmul %2, %4, %cst_5 {dimension_numbers = #tpu.dot_dimension_numbers<[1], [0], [0], [1], [0, 0, 1, 1], [], []>} : vector<24x16xf32>, vector<16x8xf32>, vector<24x8xf32> -> vector<24x8xf32>
    %6 = arith.addf %0, %5 : vector<24x8xf32>
    %c0_6 = arith.constant 0 : index
    %c1 = arith.constant 1 : index
    %c0_7 = arith.constant 0 : index
    %7 = vector.load %arg1[%c0_6, %c1, %c0_7] : memref<1x42x16xf32, #tpu.memory_space<vmem>>, vector<1x24x16xf32>
    %8 = vector.shape_cast %7 : vector<1x24x16xf32> to vector<24x16xf32>
    %c1_8 = arith.constant 1 : index
    %c0_9 = arith.constant 0 : index
    %c0_10 = arith.constant 0 : index
    %9 = vector.load %arg2[%c1_8, %c0_9, %c0_10] : memref<9x16x8xf32, #tpu.memory_space<vmem>>, vector<1x16x8xf32>
    %10 = vector.shape_cast %9 : vector<1x16x8xf32> to vector<16x8xf32>
    %cst_11 = arith.constant dense<0.000000e+00> : vector<24x8xf32>
    %11 = tpu.matmul %8, %10, %cst_11 {dimension_numbers = #tpu.dot_dimension_numbers<[1], [0], [0], [1], [0, 0, 1, 1], [], []>} : vector<24x16xf32>, vector<16x8xf32>, vector<24x8xf32> -> vector<24x8xf32>
    %12 = arith.addf %6, %11 : vector<24x8xf32>
    %c0_12 = arith.constant 0 : index
    %c2 = arith.constant 2 : index
    %c0_13 = arith.constant 0 : index
    %13 = vector.load %arg1[%c0_12, %c2, %c0_13] : memref<1x42x16xf32, #tpu.memory_space<vmem>>, vector<1x24x16xf32>
    %14 = vector.shape_cast %13 : vector<1x24x16xf32> to vector<24x16xf32>
    %c2_14 = arith.constant 2 : index
    %c0_15 = arith.constant 0 : index
    %c0_16 = arith.constant 0 : index
    %15 = vector.load %arg2[%c2_14, %c0_15, %c0_16] : memref<9x16x8xf32, #tpu.memory_space<vmem>>, vector<1x16x8xf32>
    %16 = vector.shape_cast %15 : vector<1x16x8xf32> to vector<16x8xf32>
    %cst_17 = arith.constant dense<0.000000e+00> : vector<24x8xf32>
    %17 = tpu.matmul %14, %16, %cst_17 {dimension_numbers = #tpu.dot_dimension_numbers<[1], [0], [0], [1], [0, 0, 1, 1], [], []>} : vector<24x16xf32>, vector<16x8xf32>, vector<24x8xf32> -> vector<24x8xf32>
    %18 = arith.addf %12, %17 : vector<24x8xf32>
    %c0_18 = arith.constant 0 : index
    %c6 = arith.constant 6 : index
    %c0_19 = arith.constant 0 : index
    %19 = vector.load %arg1[%c0_18, %c6, %c0_19] : memref<1x42x16xf32, #tpu.memory_space<vmem>>, vector<1x24x16xf32>
    %20 = vector.shape_cast %19 : vector<1x24x16xf32> to vector<24x16xf32>
    %c3 = arith.constant 3 : index
    %c0_20 = arith.constant 0 : index
    %c0_21 = arith.constant 0 : index
    %21 = vector.load %arg2[%c3, %c0_20, %c0_21] : memref<9x16x8xf32, #tpu.memory_space<vmem>>, vector<1x16x8xf32>
    %22 = vector.shape_cast %21 : vector<1x16x8xf32> to vector<16x8xf32>
    %cst_22 = arith.constant dense<0.000000e+00> : vector<24x8xf32>
    %23 = tpu.matmul %20, %22, %cst_22 {dimension_numbers = #tpu.dot_dimension_numbers<[1], [0], [0], [1], [0, 0, 1, 1], [], []>} : vector<24x16xf32>, vector<16x8xf32>, vector<24x8xf32> -> vector<24x8xf32>
    %24 = arith.addf %18, %23 : vector<24x8xf32>
    %c0_23 = arith.constant 0 : index
    %c7 = arith.constant 7 : index
    %c0_24 = arith.constant 0 : index
    %25 = vector.load %arg1[%c0_23, %c7, %c0_24] : memref<1x42x16xf32, #tpu.memory_space<vmem>>, vector<1x24x16xf32>
    %26 = vector.shape_cast %25 : vector<1x24x16xf32> to vector<24x16xf32>
    %c4 = arith.constant 4 : index
    %c0_25 = arith.constant 0 : index
    %c0_26 = arith.constant 0 : index
    %27 = vector.load %arg2[%c4, %c0_25, %c0_26] : memref<9x16x8xf32, #tpu.memory_space<vmem>>, vector<1x16x8xf32>
    %28 = vector.shape_cast %27 : vector<1x16x8xf32> to vector<16x8xf32>
    %cst_27 = arith.constant dense<0.000000e+00> : vector<24x8xf32>
    %29 = tpu.matmul %26, %28, %cst_27 {dimension_numbers = #tpu.dot_dimension_numbers<[1], [0], [0], [1], [0, 0, 1, 1], [], []>} : vector<24x16xf32>, vector<16x8xf32>, vector<24x8xf32> -> vector<24x8xf32>
    %30 = arith.addf %24, %29 : vector<24x8xf32>
    %c0_28 = arith.constant 0 : index
    %c8 = arith.constant 8 : index
    %c0_29 = arith.constant 0 : index
    %31 = vector.load %arg1[%c0_28, %c8, %c0_29] : memref<1x42x16xf32, #tpu.memory_space<vmem>>, vector<1x24x16xf32>
    %32 = vector.shape_cast %31 : vector<1x24x16xf32> to vector<24x16xf32>
    %c5 = arith.constant 5 : index
    %c0_30 = arith.constant 0 : index
    %c0_31 = arith.constant 0 : index
    %33 = vector.load %arg2[%c5, %c0_30, %c0_31] : memref<9x16x8xf32, #tpu.memory_space<vmem>>, vector<1x16x8xf32>
    %34 = vector.shape_cast %33 : vector<1x16x8xf32> to vector<16x8xf32>
    %cst_32 = arith.constant dense<0.000000e+00> : vector<24x8xf32>
    %35 = tpu.matmul %32, %34, %cst_32 {dimension_numbers = #tpu.dot_dimension_numbers<[1], [0], [0], [1], [0, 0, 1, 1], [], []>} : vector<24x16xf32>, vector<16x8xf32>, vector<24x8xf32> -> vector<24x8xf32>
    %36 = arith.addf %30, %35 : vector<24x8xf32>
    %c0_33 = arith.constant 0 : index
    %c12 = arith.constant 12 : index
    %c0_34 = arith.constant 0 : index
    %37 = vector.load %arg1[%c0_33, %c12, %c0_34] : memref<1x42x16xf32, #tpu.memory_space<vmem>>, vector<1x24x16xf32>
    %38 = vector.shape_cast %37 : vector<1x24x16xf32> to vector<24x16xf32>
    %c6_35 = arith.constant 6 : index
    %c0_36 = arith.constant 0 : index
    %c0_37 = arith.constant 0 : index
    %39 = vector.load %arg2[%c6_35, %c0_36, %c0_37] : memref<9x16x8xf32, #tpu.memory_space<vmem>>, vector<1x16x8xf32>
    %40 = vector.shape_cast %39 : vector<1x16x8xf32> to vector<16x8xf32>
    %cst_38 = arith.constant dense<0.000000e+00> : vector<24x8xf32>
    %41 = tpu.matmul %38, %40, %cst_38 {dimension_numbers = #tpu.dot_dimension_numbers<[1], [0], [0], [1], [0, 0, 1, 1], [], []>} : vector<24x16xf32>, vector<16x8xf32>, vector<24x8xf32> -> vector<24x8xf32>
    %42 = arith.addf %36, %41 : vector<24x8xf32>
    %c0_39 = arith.constant 0 : index
    %c13 = arith.constant 13 : index
    %c0_40 = arith.constant 0 : index
    %43 = vector.load %arg1[%c0_39, %c13, %c0_40] : memref<1x42x16xf32, #tpu.memory_space<vmem>>, vector<1x24x16xf32>
    %44 = vector.shape_cast %43 : vector<1x24x16xf32> to vector<24x16xf32>
    %c7_41 = arith.constant 7 : index
    %c0_42 = arith.constant 0 : index
    %c0_43 = arith.constant 0 : index
    %45 = vector.load %arg2[%c7_41, %c0_42, %c0_43] : memref<9x16x8xf32, #tpu.memory_space<vmem>>, vector<1x16x8xf32>
    %46 = vector.shape_cast %45 : vector<1x16x8xf32> to vector<16x8xf32>
    %cst_44 = arith.constant dense<0.000000e+00> : vector<24x8xf32>
    %47 = tpu.matmul %44, %46, %cst_44 {dimension_numbers = #tpu.dot_dimension_numbers<[1], [0], [0], [1], [0, 0, 1, 1], [], []>} : vector<24x16xf32>, vector<16x8xf32>, vector<24x8xf32> -> vector<24x8xf32>
    %48 = arith.addf %42, %47 : vector<24x8xf32>
    %c0_45 = arith.constant 0 : index
    %c14 = arith.constant 14 : index
    %c0_46 = arith.constant 0 : index
    %49 = vector.load %arg1[%c0_45, %c14, %c0_46] : memref<1x42x16xf32, #tpu.memory_space<vmem>>, vector<1x24x16xf32>
    %50 = vector.shape_cast %49 : vector<1x24x16xf32> to vector<24x16xf32>
    %c8_47 = arith.constant 8 : index
    %c0_48 = arith.constant 0 : index
    %c0_49 = arith.constant 0 : index
    %51 = vector.load %arg2[%c8_47, %c0_48, %c0_49] : memref<9x16x8xf32, #tpu.memory_space<vmem>>, vector<1x16x8xf32>
    %52 = vector.shape_cast %51 : vector<1x16x8xf32> to vector<16x8xf32>
    %cst_50 = arith.constant dense<0.000000e+00> : vector<24x8xf32>
    %53 = tpu.matmul %50, %52, %cst_50 {dimension_numbers = #tpu.dot_dimension_numbers<[1], [0], [0], [1], [0, 0, 1, 1], [], []>} : vector<24x16xf32>, vector<16x8xf32>, vector<24x8xf32> -> vector<24x8xf32>
    %54 = arith.addf %48, %53 : vector<24x8xf32>
    %c0_51 = arith.constant 0 : index
    %c0_52 = arith.constant 0 : index
    %c0_53 = arith.constant 0 : index
    %55 = vector.load %arg3[%c0_51, %c0_52, %c0_53] : memref<1x24x8xf32, #tpu.memory_space<vmem>>, vector<1x24x8xf32>
    %56 = vector.shape_cast %55 : vector<1x24x8xf32> to vector<24x8xf32>
    %57 = vector.shape_cast %54 : vector<24x8xf32> to vector<1x24x8xf32>
    tpu.vector_store %arg3[%c0_51, %c0_52, %c0_53], %57 {strides = array<i32>} : memref<1x24x8xf32, #tpu.memory_space<vmem>>, vector<1x24x8xf32>,
    return
  }
  func.func @transform_0(%arg0: i32) -> (i32, i32, i32) {
    %c0_i32 = arith.constant 0 : i32
    %c0_i32_0 = arith.constant 0 : i32
    %c0_i32_1 = arith.constant 0 : i32
    return %arg0, %c0_i32, %c0_i32_0 : i32, i32, i32
  }
  func.func @transform_1(%arg0: i32) -> (i32, i32, i32) {
    %c0_i32 = arith.constant 0 : i32
    %c0_i32_0 = arith.constant 0 : i32
    %c0_i32_1 = arith.constant 0 : i32
    %c0_i32_2 = arith.constant 0 : i32
    return %c0_i32, %c0_i32_0, %c0_i32_1 : i32, i32, i32
  }
  func.func @transform_2(%arg0: i32) -> (i32, i32, i32) {
    %c0_i32 = arith.constant 0 : i32
    %c0_i32_0 = arith.constant 0 : i32
    %c0_i32_1 = arith.constant 0 : i32
    return %arg0, %c0_i32, %c0_i32_0 : i32, i32, i32
  }
}

module attributes {stable_mosaic.version = 11 : i64} {
  func.func @_fused_linear_kernel(%arg0: i32, %arg1: memref<32x24xf32, #tpu.memory_space<vmem>>, %arg2: memref<1x24xf32, #tpu.memory_space<vmem>>, %arg3: memref<1x24xf32, #tpu.memory_space<vmem>>, %arg4: memref<24x16xf32, #tpu.memory_space<vmem>>, %arg5: memref<1x16xf32, #tpu.memory_space<vmem>>, %arg6: memref<32x16xf32, #tpu.memory_space<vmem>>) attributes {dimension_semantics = [#tpu.dimension_semantics<parallel>], iteration_bounds = array<i64: 1>, scalar_prefetch = 0 : i64, scratch_operands = 0 : i64, tpu.core_type = #tpu.core_type<tc>, window_params = [{transform_indices = @transform_0, window_bounds = array<i64: 32, 24>}, {pipeline_mode = #tpu.pipeline_mode<synchronous>, transform_indices = @transform_1, window_bounds = array<i64: 1, 24>}, {pipeline_mode = #tpu.pipeline_mode<synchronous>, transform_indices = @transform_2, window_bounds = array<i64: 1, 24>}, {pipeline_mode = #tpu.pipeline_mode<synchronous>, transform_indices = @transform_3, window_bounds = array<i64: 24, 16>}, {pipeline_mode = #tpu.pipeline_mode<synchronous>, transform_indices = @transform_4, window_bounds = array<i64: 1, 16>}, {transform_indices = @transform_5, window_bounds = array<i64: 32, 16>}]} {
    %c0 = arith.constant 0 : index
    %c0_0 = arith.constant 0 : index
    %0 = vector.load %arg1[%c0, %c0_0] : memref<32x24xf32, #tpu.memory_space<vmem>>, vector<32x24xf32>
    %c0_1 = arith.constant 0 : index
    %c0_2 = arith.constant 0 : index
    %1 = vector.load %arg2[%c0_1, %c0_2] : memref<1x24xf32, #tpu.memory_space<vmem>>, vector<1x24xf32>
    %2 = vector.broadcast %1 : vector<1x24xf32> to vector<32x24xf32>
    %3 = arith.mulf %0, %2 : vector<32x24xf32>
    %c0_3 = arith.constant 0 : index
    %c0_4 = arith.constant 0 : index
    %4 = vector.load %arg3[%c0_3, %c0_4] : memref<1x24xf32, #tpu.memory_space<vmem>>, vector<1x24xf32>
    %5 = vector.broadcast %4 : vector<1x24xf32> to vector<32x24xf32>
    %6 = arith.addf %3, %5 : vector<32x24xf32>
    %cst = arith.constant 0.000000e+00 : f32
    %7 = vector.broadcast %cst : f32 to vector<32x24xf32>
    %8 = arith.maximumf %6, %7 : vector<32x24xf32>
    %c0_5 = arith.constant 0 : index
    %c0_6 = arith.constant 0 : index
    %9 = vector.load %arg4[%c0_5, %c0_6] : memref<24x16xf32, #tpu.memory_space<vmem>>, vector<24x16xf32>
    %cst_7 = arith.constant dense<0.000000e+00> : vector<32x16xf32>
    %10 = tpu.matmul %8, %9, %cst_7 {dimension_numbers = #tpu.dot_dimension_numbers<[1], [0], [0], [1], [0, 0, 1, 1], [], []>} : vector<32x24xf32>, vector<24x16xf32>, vector<32x16xf32> -> vector<32x16xf32>
    %c0_8 = arith.constant 0 : index
    %c0_9 = arith.constant 0 : index
    %11 = vector.load %arg5[%c0_8, %c0_9] : memref<1x16xf32, #tpu.memory_space<vmem>>, vector<1x16xf32>
    %12 = vector.broadcast %11 : vector<1x16xf32> to vector<32x16xf32>
    %13 = arith.addf %10, %12 : vector<32x16xf32>
    %cst_10 = arith.constant 0.000000e+00 : f32
    %14 = vector.broadcast %cst_10 : f32 to vector<32x16xf32>
    %15 = arith.maximumf %13, %14 : vector<32x16xf32>
    %c0_11 = arith.constant 0 : index
    %c0_12 = arith.constant 0 : index
    %16 = vector.load %arg6[%c0_11, %c0_12] : memref<32x16xf32, #tpu.memory_space<vmem>>, vector<32x16xf32>
    tpu.vector_store %arg6[%c0_11, %c0_12], %15 {strides = array<i32>} : memref<32x16xf32, #tpu.memory_space<vmem>>, vector<32x16xf32>,
    return
  }
  func.func @transform_0(%arg0: i32) -> (i32, i32) {
    %c0_i32 = arith.constant 0 : i32
    %c0_i32_0 = arith.constant 0 : i32
    return %arg0, %c0_i32 : i32, i32
  }
  func.func @transform_1(%arg0: i32) -> (i32, i32) {
    %c0_i32 = arith.constant 0 : i32
    %c0_i32_0 = arith.constant 0 : i32
    %c0_i32_1 = arith.constant 0 : i32
    return %c0_i32, %c0_i32_0 : i32, i32
  }
  func.func @transform_2(%arg0: i32) -> (i32, i32) {
    %c0_i32 = arith.constant 0 : i32
    %c0_i32_0 = arith.constant 0 : i32
    %c0_i32_1 = arith.constant 0 : i32
    return %c0_i32, %c0_i32_0 : i32, i32
  }
  func.func @transform_3(%arg0: i32) -> (i32, i32) {
    %c0_i32 = arith.constant 0 : i32
    %c0_i32_0 = arith.constant 0 : i32
    %c0_i32_1 = arith.constant 0 : i32
    return %c0_i32, %c0_i32_0 : i32, i32
  }
  func.func @transform_4(%arg0: i32) -> (i32, i32) {
    %c0_i32 = arith.constant 0 : i32
    %c0_i32_0 = arith.constant 0 : i32
    %c0_i32_1 = arith.constant 0 : i32
    return %c0_i32, %c0_i32_0 : i32, i32
  }
  func.func @transform_5(%arg0: i32) -> (i32, i32) {
    %c0_i32 = arith.constant 0 : i32
    %c0_i32_0 = arith.constant 0 : i32
    return %arg0, %c0_i32 : i32, i32
  }
}

module attributes {stable_mosaic.version = 11 : i64} {
  func.func @_head_kernel(%arg0: i32, %arg1: memref<2x16x32xf32, #tpu.memory_space<vmem>>, %arg2: memref<1x32xf32, #tpu.memory_space<vmem>>, %arg3: memref<1x32xf32, #tpu.memory_space<vmem>>, %arg4: memref<32x10xf32, #tpu.memory_space<vmem>>, %arg5: memref<1x10xf32, #tpu.memory_space<vmem>>, %arg6: memref<2x32xf32, #tpu.memory_space<vmem>>, %arg7: memref<2x10xf32, #tpu.memory_space<vmem>>) attributes {dimension_semantics = [#tpu.dimension_semantics<arbitrary>], iteration_bounds = array<i64: 1>, scalar_prefetch = 0 : i64, scratch_operands = 0 : i64, tpu.core_type = #tpu.core_type<tc>, window_params = [{pipeline_mode = #tpu.pipeline_mode<synchronous>, transform_indices = @transform_0, window_bounds = array<i64: 2, 16, 32>}, {pipeline_mode = #tpu.pipeline_mode<synchronous>, transform_indices = @transform_1, window_bounds = array<i64: 1, 32>}, {pipeline_mode = #tpu.pipeline_mode<synchronous>, transform_indices = @transform_2, window_bounds = array<i64: 1, 32>}, {pipeline_mode = #tpu.pipeline_mode<synchronous>, transform_indices = @transform_3, window_bounds = array<i64: 32, 10>}, {pipeline_mode = #tpu.pipeline_mode<synchronous>, transform_indices = @transform_4, window_bounds = array<i64: 1, 10>}, {pipeline_mode = #tpu.pipeline_mode<synchronous>, transform_indices = @transform_5, window_bounds = array<i64: 2, 32>}, {pipeline_mode = #tpu.pipeline_mode<synchronous>, transform_indices = @transform_6, window_bounds = array<i64: 2, 10>}]} {
    %c0 = arith.constant 0 : index
    %c0_0 = arith.constant 0 : index
    %c0_1 = arith.constant 0 : index
    %0 = vector.load %arg1[%c0, %c0_0, %c0_1] : memref<2x16x32xf32, #tpu.memory_space<vmem>>, vector<2x16x32xf32>
    %c0_2 = arith.constant 0 : index
    %c0_3 = arith.constant 0 : index
    %1 = vector.load %arg2[%c0_2, %c0_3] : memref<1x32xf32, #tpu.memory_space<vmem>>, vector<1x32xf32>
    %2 = vector.shape_cast %1 : vector<1x32xf32> to vector<1x1x32xf32>
    %3 = vector.broadcast %2 : vector<1x1x32xf32> to vector<2x16x32xf32>
    %4 = arith.mulf %0, %3 : vector<2x16x32xf32>
    %c0_4 = arith.constant 0 : index
    %c0_5 = arith.constant 0 : index
    %5 = vector.load %arg3[%c0_4, %c0_5] : memref<1x32xf32, #tpu.memory_space<vmem>>, vector<1x32xf32>
    %6 = vector.shape_cast %5 : vector<1x32xf32> to vector<1x1x32xf32>
    %7 = vector.broadcast %6 : vector<1x1x32xf32> to vector<2x16x32xf32>
    %8 = arith.addf %4, %7 : vector<2x16x32xf32>
    %cst = arith.constant 0.000000e+00 : f32
    %9 = vector.broadcast %cst : f32 to vector<2x16x32xf32>
    %10 = arith.maximumf %8, %9 : vector<2x16x32xf32>
    %cst_6 = arith.constant dense<0.000000e+00> : vector<2x32xf32>
    %11 = vector.multi_reduction <add>, %10, %cst_6 [1] : vector<2x16x32xf32> to vector<2x32xf32>
    %cst_7 = arith.constant 1.600000e+01 : f32
    %12 = vector.broadcast %cst_7 : f32 to vector<2x32xf32>
    %13 = arith.divf %11, %12 : vector<2x32xf32>
    %c0_8 = arith.constant 0 : index
    %c0_9 = arith.constant 0 : index
    %14 = vector.load %arg6[%c0_8, %c0_9] : memref<2x32xf32, #tpu.memory_space<vmem>>, vector<2x32xf32>
    tpu.vector_store %arg6[%c0_8, %c0_9], %13 {strides = array<i32>} : memref<2x32xf32, #tpu.memory_space<vmem>>, vector<2x32xf32>,
    %c0_10 = arith.constant 0 : index
    %c0_11 = arith.constant 0 : index
    %15 = vector.load %arg4[%c0_10, %c0_11] : memref<32x10xf32, #tpu.memory_space<vmem>>, vector<32x10xf32>
    %cst_12 = arith.constant dense<0.000000e+00> : vector<2x10xf32>
    %16 = tpu.matmul %13, %15, %cst_12 {dimension_numbers = #tpu.dot_dimension_numbers<[1], [0], [0], [1], [0, 0, 1, 1], [], []>} : vector<2x32xf32>, vector<32x10xf32>, vector<2x10xf32> -> vector<2x10xf32>
    %c0_13 = arith.constant 0 : index
    %c0_14 = arith.constant 0 : index
    %17 = vector.load %arg5[%c0_13, %c0_14] : memref<1x10xf32, #tpu.memory_space<vmem>>, vector<1x10xf32>
    %18 = vector.broadcast %17 : vector<1x10xf32> to vector<2x10xf32>
    %19 = arith.addf %16, %18 : vector<2x10xf32>
    %c0_15 = arith.constant 0 : index
    %c0_16 = arith.constant 0 : index
    %20 = vector.load %arg7[%c0_15, %c0_16] : memref<2x10xf32, #tpu.memory_space<vmem>>, vector<2x10xf32>
    tpu.vector_store %arg7[%c0_15, %c0_16], %19 {strides = array<i32>} : memref<2x10xf32, #tpu.memory_space<vmem>>, vector<2x10xf32>,
    return
  }
  func.func @transform_0(%arg0: i32) -> (i32, i32, i32) {
    %c0_i32 = arith.constant 0 : i32
    %c0_i32_0 = arith.constant 0 : i32
    %c0_i32_1 = arith.constant 0 : i32
    %c0_i32_2 = arith.constant 0 : i32
    return %c0_i32, %c0_i32_0, %c0_i32_1 : i32, i32, i32
  }
  func.func @transform_1(%arg0: i32) -> (i32, i32) {
    %c0_i32 = arith.constant 0 : i32
    %c0_i32_0 = arith.constant 0 : i32
    %c0_i32_1 = arith.constant 0 : i32
    return %c0_i32, %c0_i32_0 : i32, i32
  }
  func.func @transform_2(%arg0: i32) -> (i32, i32) {
    %c0_i32 = arith.constant 0 : i32
    %c0_i32_0 = arith.constant 0 : i32
    %c0_i32_1 = arith.constant 0 : i32
    return %c0_i32, %c0_i32_0 : i32, i32
  }
  func.func @transform_3(%arg0: i32) -> (i32, i32) {
    %c0_i32 = arith.constant 0 : i32
    %c0_i32_0 = arith.constant 0 : i32
    %c0_i32_1 = arith.constant 0 : i32
    return %c0_i32, %c0_i32_0 : i32, i32
  }
  func.func @transform_4(%arg0: i32) -> (i32, i32) {
    %c0_i32 = arith.constant 0 : i32
    %c0_i32_0 = arith.constant 0 : i32
    %c0_i32_1 = arith.constant 0 : i32
    return %c0_i32, %c0_i32_0 : i32, i32
  }
  func.func @transform_5(%arg0: i32) -> (i32, i32) {
    %c0_i32 = arith.constant 0 : i32
    %c0_i32_0 = arith.constant 0 : i32
    %c0_i32_1 = arith.constant 0 : i32
    return %c0_i32, %c0_i32_0 : i32, i32
  }
  func.func @transform_6(%arg0: i32) -> (i32, i32) {
    %c0_i32 = arith.constant 0 : i32
    %c0_i32_0 = arith.constant 0 : i32
    %c0_i32_1 = arith.constant 0 : i32
    return %c0_i32, %c0_i32_0 : i32, i32
  }
}

</mosaic_0001>

<llo_original>
// kernel: densenet_forward.11
$region0: #{densenet_forward.11}
  #allocation0 [shape = 'u32[]', space=smem, size = 0x4, offset = 0x4, fixed_abs, tag = 'smem constant byte address 0x4 - core index']
  #allocation1 [shape = 'u32[144,128]{1,0:T(1,128)}', space=vmem, size = 0x12000, scoped, tag = 'internal scratch']
  %s0 = inlined_call_operand.vmem [shape: f32[512,147], index: 0, kind: input, shape index: {}]
  %s1 = inlined_call_operand.vmem [shape: f32[147,16], index: 1, kind: input, shape index: {}]
  %s2 = inlined_call_operand.vmem [shape: f32[1,16], index: 2, kind: input, shape index: {}]
  %s3 = inlined_call_operand.vmem [shape: f32[512,16], index: 3, kind: output, shape index: {}]
  %s4 = sld [smem:[#allocation0]]
  $region22: #{densenet_forward.11} parent=0
    _
  %s6 = ssub.s32 1, %s4
  %s7 = scalar_select 0, %s6, %s4
  // Predicated region
  $region2: #{densenet_forward.11} parent=0 // pred_check
    _
  $region3: #{densenet_forward.11} parent=0 // pred_check_branch
    %9 = sbr.rel (0) target = $region5
  $region4: #{densenet_forward.11} parent=0 // pred_region
    _
  $region5: #{densenet_forward.11} parent=0 // pred_fallthru
    _
  // Predicated region
  $region6: #{densenet_forward.11} parent=0 // pred_check
    _
  $region7: #{densenet_forward.11} parent=0 // pred_check_branch
    %11 = sbr.rel (0) target = $region9
  $region8: #{densenet_forward.11} parent=0 // pred_region
    _
  $region9: #{densenet_forward.11} parent=0 // pred_fallthru
    _
  // Predicated region
  $region10: #{densenet_forward.11} parent=0 // pred_check
    _
  $region11: #{densenet_forward.11} parent=0 // pred_check_branch
    %13 = sbr.rel (0) target = $region13
  $region12: #{densenet_forward.11} parent=0 // pred_region
    _
  $region13: #{densenet_forward.11} parent=0 // pred_fallthru
    _
  %v14 = vld [vmem:[%s0] sm:$0xff]
  %v15 = vld [vmem:[%s0 + $0x8] sm:$0xff]
  %v16 = vld [vmem:[%s0 + $0x10] sm:$0xff]
  %v17 = vld [vmem:[%s0 + $0x18] sm:$0xff]
  %v18 = vld [vmem:[%s0 + $0x20] sm:$0xff]
  %v19 = vld [vmem:[%s0 + $0x28] sm:$0xff]
  %v20 = vld [vmem:[%s0 + $0x30] sm:$0xff]
  %v21 = vld [vmem:[%s0 + $0x38] sm:$0xff]
  %v22 = vld [vmem:[%s0 + $0x40] sm:$0xff]
  %v23 = vld [vmem:[%s0 + $0x48] sm:$0xff]
  %v24 = vld [vmem:[%s0 + $0x50] sm:$0xff]
  %v25 = vld [vmem:[%s0 + $0x58] sm:$0xff]
  %v26 = vld [vmem:[%s0 + $0x60] sm:$0xff]
  %v27 = vld [vmem:[%s0 + $0x68] sm:$0xff]
  %v28 = vld [vmem:[%s0 + $0x70] sm:$0xff]
  %v29 = vld [vmem:[%s0 + $0x78] sm:$0xff]
  %v30 = vld [vmem:[%s0 + $0x80] sm:$0xff]
  %v31 = vld [vmem:[%s0 + $0x88] sm:$0xff]
  %v32 = vld [vmem:[%s0 + $0x90] sm:$0xff]
  %v33 = vld [vmem:[%s0 + $0x98] sm:$0xff]
  %v34 = vld [vmem:[%s0 + $0xa0] sm:$0xff]
  %v35 = vld [vmem:[%s0 + $0xa8] sm:$0xff]
  %v36 = vld [vmem:[%s0 + $0xb0] sm:$0xff]
  %v37 = vld [vmem:[%s0 + $0xb8] sm:$0xff]
  %v38 = vld [vmem:[%s0 + $0xc0] sm:$0xff]
  %v39 = vld [vmem:[%s0 + $0xc8] sm:$0xff]
  %v40 = vld [vmem:[%s0 + $0xd0] sm:$0xff]
  %v41 = vld [vmem:[%s0 + $0xd8] sm:$0xff]
  %v42 = vld [vmem:[%s0 + $0xe0] sm:$0xff]
  %v43 = vld [vmem:[%s0 + $0xe8] sm:$0xff]
  %v44 = vld [vmem:[%s0 + $0xf0] sm:$0xff]
  %v45 = vld [vmem:[%s0 + $0xf8] sm:$0xff]
  %v46 = vld [vmem:[%s0 + $0x100] sm:$0xff]
  %v47 = vld [vmem:[%s0 + $0x108] sm:$0xff]
  %v48 = vld [vmem:[%s0 + $0x110] sm:$0xff]
  %v49 = vld [vmem:[%s0 + $0x118] sm:$0xff]
  %v50 = vld [vmem:[%s0 + $0x120] sm:$0xff]
  %v51 = vld [vmem:[%s0 + $0x128] sm:$0xff]
  %v52 = vld [vmem:[%s0 + $0x130] sm:$0xff]
  %v53 = vld [vmem:[%s0 + $0x138] sm:$0xff]
  %v54 = vld [vmem:[%s0 + $0x140] sm:$0xff]
  %v55 = vld [vmem:[%s0 + $0x148] sm:$0xff]
  %v56 = vld [vmem:[%s0 + $0x150] sm:$0xff]
  %v57 = vld [vmem:[%s0 + $0x158] sm:$0xff]
  %v58 = vld [vmem:[%s0 + $0x160] sm:$0xff]
  %v59 = vld [vmem:[%s0 + $0x168] sm:$0xff]
  %v60 = vld [vmem:[%s0 + $0x170] sm:$0xff]
  %v61 = vld [vmem:[%s0 + $0x178] sm:$0xff]
  %v62 = vld [vmem:[%s0 + $0x180] sm:$0xff]
  %v63 = vld [vmem:[%s0 + $0x188] sm:$0xff]
  %v64 = vld [vmem:[%s0 + $0x190] sm:$0xff]
  %v65 = vld [vmem:[%s0 + $0x198] sm:$0xff]
  %v66 = vld [vmem:[%s0 + $0x1a0] sm:$0xff]
  %v67 = vld [vmem:[%s0 + $0x1a8] sm:$0xff]
  %v68 = vld [vmem:[%s0 + $0x1b0] sm:$0xff]
  %v69 = vld [vmem:[%s0 + $0x1b8] sm:$0xff]
  %v70 = vld [vmem:[%s0 + $0x1c0] sm:$0xff]
  %v71 = vld [vmem:[%s0 + $0x1c8] sm:$0xff]
  %v72 = vld [vmem:[%s0 + $0x1d0] sm:$0xff]
  %v73 = vld [vmem:[%s0 + $0x1d8] sm:$0xff]
  %v74 = vld [vmem:[%s0 + $0x1e0] sm:$0xff]
  %v75 = vld [vmem:[%s0 + $0x1e8] sm:$0xff]
  %v76 = vld [vmem:[%s0 + $0x1f0] sm:$0xff]
  %v77 = vld [vmem:[%s0 + $0x1f8] sm:$0xff]
  %v78 = vld [vmem:[%s0 + $0x200] sm:$0xff]
  %v79 = vld [vmem:[%s0 + $0x208] sm:$0xff]
  %v80 = vld [vmem:[%s0 + $0x210] sm:$0xff]
  %v81 = vld [vmem:[%s0 + $0x218] sm:$0xff]
  %v82 = vld [vmem:[%s0 + $0x220] sm:$0xff]
  %v83 = vld [vmem:[%s0 + $0x228] sm:$0xff]
  %v84 = vld [vmem:[%s0 + $0x230] sm:$0xff]
  %v85 = vld [vmem:[%s0 + $0x238] sm:$0xff]
  %v86 = vld [vmem:[%s0 + $0x240] sm:$0xff]
  %v87 = vld [vmem:[%s0 + $0x248] sm:$0xff]
  %v88 = vld [vmem:[%s0 + $0x250] sm:$0xff]
  %v89 = vld [vmem:[%s0 + $0x258] sm:$0xff]
  %v90 = vld [vmem:[%s0 + $0x260] sm:$0xff]
  %v91 = vld [vmem:[%s0 + $0x268] sm:$0xff]
  %v92 = vld [vmem:[%s0 + $0x270] sm:$0xff]
  %v93 = vld [vmem:[%s0 + $0x278] sm:$0xff]
  %v94 = vld [vmem:[%s0 + $0x280] sm:$0xff]
  %v95 = vld [vmem:[%s0 + $0x288] sm:$0xff]
  %v96 = vld [vmem:[%s0 + $0x290] sm:$0xff]
  %v97 = vld [vmem:[%s0 + $0x298] sm:$0xff]
  %v98 = vld [vmem:[%s0 + $0x2a0] sm:$0xff]
  %v99 = vld [vmem:[%s0 + $0x2a8] sm:$0xff]
  %v100 = vld [vmem:[%s0 + $0x2b0] sm:$0xff]
  %v101 = vld [vmem:[%s0 + $0x2b8] sm:$0xff]
  %v102 = vld [vmem:[%s0 + $0x2c0] sm:$0xff]
  %v103 = vld [vmem:[%s0 + $0x2c8] sm:$0xff]
  %v104 = vld [vmem:[%s0 + $0x2d0] sm:$0xff]
  %v105 = vld [vmem:[%s0 + $0x2d8] sm:$0xff]
  %v106 = vld [vmem:[%s0 + $0x2e0] sm:$0xff]
  %v107 = vld [vmem:[%s0 + $0x2e8] sm:$0xff]
  %v108 = vld [vmem:[%s0 + $0x2f0] sm:$0xff]
  %v109 = vld [vmem:[%s0 + $0x2f8] sm:$0xff]
  %v110 = vld [vmem:[%s0 + $0x300] sm:$0xff]
  %v111 = vld [vmem:[%s0 + $0x308] sm:$0xff]
  %v112 = vld [vmem:[%s0 + $0x310] sm:$0xff]
  %v113 = vld [vmem:[%s0 + $0x318] sm:$0xff]
  %v114 = vld [vmem:[%s0 + $0x320] sm:$0xff]
  %v115 = vld [vmem:[%s0 + $0x328] sm:$0xff]
  %v116 = vld [vmem:[%s0 + $0x330] sm:$0xff]
  %v117 = vld [vmem:[%s0 + $0x338] sm:$0xff]
  %v118 = vld [vmem:[%s0 + $0x340] sm:$0xff]
  %v119 = vld [vmem:[%s0 + $0x348] sm:$0xff]
  %v120 = vld [vmem:[%s0 + $0x350] sm:$0xff]
  %v121 = vld [vmem:[%s0 + $0x358] sm:$0xff]
  %v122 = vld [vmem:[%s0 + $0x360] sm:$0xff]
  %v123 = vld [vmem:[%s0 + $0x368] sm:$0xff]
  %v124 = vld [vmem:[%s0 + $0x370] sm:$0xff]
  %v125 = vld [vmem:[%s0 + $0x378] sm:$0xff]
  %v126 = vld [vmem:[%s0 + $0x380] sm:$0xff]
  %v127 = vld [vmem:[%s0 + $0x388] sm:$0xff]
  %v128 = vld [vmem:[%s0 + $0x390] sm:$0xff]
  %v129 = vld [vmem:[%s0 + $0x398] sm:$0xff]
  %v130 = vld [vmem:[%s0 + $0x3a0] sm:$0xff]
  %v131 = vld [vmem:[%s0 + $0x3a8] sm:$0xff]
  %v132 = vld [vmem:[%s0 + $0x3b0] sm:$0xff]
  %v133 = vld [vmem:[%s0 + $0x3b8] sm:$0xff]
  %v134 = vld [vmem:[%s0 + $0x3c0] sm:$0xff]
  %v135 = vld [vmem:[%s0 + $0x3c8] sm:$0xff]
  %v136 = vld [vmem:[%s0 + $0x3d0] sm:$0xff]
  %v137 = vld [vmem:[%s0 + $0x3d8] sm:$0xff]
  %v138 = vld [vmem:[%s0 + $0x3e0] sm:$0xff]
  %v139 = vld [vmem:[%s0 + $0x3e8] sm:$0xff]
  %v140 = vld [vmem:[%s0 + $0x3f0] sm:$0xff]
  %v141 = vld [vmem:[%s0 + $0x3f8] sm:$0xff]
  %v142 = vld [vmem:[%s1] sm:$0xff]
  %v143 = vld [vmem:[%s1 + $0x8] sm:$0xff]
  %v144 = vld [vmem:[%s1 + $0x10] sm:$0xff]
  %v145 = vld [vmem:[%s1 + $0x18] sm:$0xff]
  %v146 = vld [vmem:[%s1 + $0x20] sm:$0xff]
  %v147 = vld [vmem:[%s1 + $0x28] sm:$0xff]
  %v148 = vld [vmem:[%s1 + $0x30] sm:$0xff]
  %v149 = vld [vmem:[%s1 + $0x38] sm:$0xff]
  %v150 = vld [vmem:[%s1 + $0x40] sm:$0xff]
  %v151 = vld [vmem:[%s1 + $0x48] sm:$0xff]
  %v152 = vld [vmem:[%s1 + $0x50] sm:$0xff]
  %v153 = vld [vmem:[%s1 + $0x58] sm:$0xff]
  %v154 = vld [vmem:[%s1 + $0x60] sm:$0xff]
  %v155 = vld [vmem:[%s1 + $0x68] sm:$0xff]
  %v156 = vld [vmem:[%s1 + $0x70] sm:$0xff]
  %v157 = vld [vmem:[%s1 + $0x78] sm:$0xff]
  %v158 = vld [vmem:[%s1 + $0x80] sm:$0xff]
  %v159 = vld [vmem:[%s1 + $0x88] sm:$0xff]
  %v160 = vld [vmem:[%s1 + $0x90] sm:$0x7]
  %v161 = vld [vmem:[%s2] sm:$0x1]
  %v163 = vlaneseq
  %v164 = vshrl.u32 %v163, 7
  %v165 = vsub.s32 0, %v164
  %v166 = vrot.slane %v161, %v165
  %vm168 = vcmask 154624
  %v170 = vsel %vm168, %v15, 0
  %v173 = vsel %vm168, %v17, 0
  %v176 = vsel %vm168, %v19, 0
  %v179 = vsel %vm168, %v21, 0
  %v182 = vsel %vm168, %v23, 0
  %v185 = vsel %vm168, %v25, 0
  %v188 = vsel %vm168, %v27, 0
  %v191 = vsel %vm168, %v29, 0
  %v194 = vsel %vm168, %v31, 0
  %v197 = vsel %vm168, %v33, 0
  %v200 = vsel %vm168, %v35, 0
  %v203 = vsel %vm168, %v37, 0
  %v206 = vsel %vm168, %v39, 0
  %v209 = vsel %vm168, %v41, 0
  %v212 = vsel %vm168, %v43, 0
  %v215 = vsel %vm168, %v45, 0
  %v218 = vsel %vm168, %v47, 0
  %v221 = vsel %vm168, %v49, 0
  %v224 = vsel %vm168, %v51, 0
  %v227 = vsel %vm168, %v53, 0
  %v230 = vsel %vm168, %v55, 0
  %v233 = vsel %vm168, %v57, 0
  %v236 = vsel %vm168, %v59, 0
  %v239 = vsel %vm168, %v61, 0
  %v242 = vsel %vm168, %v63, 0
  %v245 = vsel %vm168, %v65, 0
  %v248 = vsel %vm168, %v67, 0
  %v251 = vsel %vm168, %v69, 0
  %v254 = vsel %vm168, %v71, 0
  %v257 = vsel %vm168, %v73, 0
  %v260 = vsel %vm168, %v75, 0
  %v263 = vsel %vm168, %v77, 0
  %v266 = vsel %vm168, %v79, 0
  %v269 = vsel %vm168, %v81, 0
  %v272 = vsel %vm168, %v83, 0
  %v275 = vsel %vm168, %v85, 0
  %v278 = vsel %vm168, %v87, 0
  %v281 = vsel %vm168, %v89, 0
  %v284 = vsel %vm168, %v91, 0
  %v287 = vsel %vm168, %v93, 0
  %v290 = vsel %vm168, %v95, 0
  %v293 = vsel %vm168, %v97, 0
  %v296 = vsel %vm168, %v99, 0
  %v299 = vsel %vm168, %v101, 0
  %v302 = vsel %vm168, %v103, 0
  %v305 = vsel %vm168, %v105, 0
  %v308 = vsel %vm168, %v107, 0
  %v311 = vsel %vm168, %v109, 0
  %v314 = vsel %vm168, %v111, 0
  %v317 = vsel %vm168, %v113, 0
  %v320 = vsel %vm168, %v115, 0
  %v323 = vsel %vm168, %v117, 0
  %v326 = vsel %vm168, %v119, 0
  %v329 = vsel %vm168, %v121, 0
  %v332 = vsel %vm168, %v123, 0
  %v335 = vsel %vm168, %v125, 0
  %v338 = vsel %vm168, %v127, 0
  %v341 = vsel %vm168, %v129, 0
  %v344 = vsel %vm168, %v131, 0
  %v347 = vsel %vm168, %v133, 0
  %v350 = vsel %vm168, %v135, 0
  %v353 = vsel %vm168, %v137, 0
  %v356 = vsel %vm168, %v139, 0
  %v359 = vsel %vm168, %v141, 0
  %vm361 = vcmask 1042432
  %v363 = vsel %vm361, %v160, 0
  %365 = vmatprep.subr.mxu0 0.0
  %366 = vmatpush1.msra.mxu0 %v142
  %367 = vmatprep.subr.mxu0 0.0
  %368 = vmatpush1.msra.mxu0 %v143
  %369 = vmatprep.subr.mxu0 0.0
  %370 = vmatpush1.msra.mxu0 %v144
  %371 = vmatprep.subr.mxu0 0.0
  %372 = vmatpush1.msra.mxu0 %v145
  %373 = vmatprep.subr.mxu0 0.0
  %374 = vmatpush1.msra.mxu0 %v146
  %375 = vmatprep.subr.mxu0 0.0
  %376 = vmatpush1.msra.mxu0 %v147
  %377 = vmatprep.subr.mxu0 0.0
  %378 = vmatpush1.msra.mxu0 %v148
  %379 = vmatprep.subr.mxu0 0.0
  %380 = vmatpush1.msra.mxu0 %v149
  %381 = vmatprep.subr.mxu0 0.0
  %382 = vmatpush1.msra.mxu0 %v150
  %383 = vmatprep.subr.mxu0 0.0
  %384 = vmatpush1.msra.mxu0 %v151
  %385 = vmatprep.subr.mxu0 0.0
  %386 = vmatpush1.msra.mxu0 %v152
  %387 = vmatprep.subr.mxu0 0.0
  %388 = vmatpush1.msra.mxu0 %v153
  %389 = vmatprep.subr.mxu0 0.0
  %390 = vmatpush1.msra.mxu0 %v154
  %391 = vmatprep.subr.mxu0 0.0
  %392 = vmatpush1.msra.mxu0 %v155
  %393 = vmatprep.subr.mxu0 0.0
  %394 = vmatpush1.msra.mxu0 %v156
  %395 = vmatprep.subr.mxu0 0.0
  %396 = vmatpush1.msra.mxu0 %v157
  %397 = vmatprep.subr.mxu0 0.0
  %398 = vmatpush1.msra.mxu0 %v158
  %399 = vmatprep.subr.mxu0 0.0
  %400 = vmatpush1.msra.mxu0 %v159
  %401 = vmatprep.subr.mxu0 0.0
  %402 = vmatpush1.msra.mxu0 %v363
  %403 = vmatprep.subr.mxu0 0.0
  %404 = vmatpush1.msra.mxu0 0.0
  %405 = vmatprep.subr.mxu0 0.0
  %406 = vmatpush1.msra.mxu0 0.0
  %407 = vmatprep.subr.mxu0 0.0
  %408 = vmatpush1.msra.mxu0 0.0
  %409 = vmatprep.subr.mxu0 0.0
  %410 = vmatpush1.msra.mxu0 0.0
  %411 = vmatprep.subr.mxu0 0.0
  %412 = vmatpush1.msra.mxu0 0.0
  %413 = vmatprep.subr.mxu0 0.0
  %414 = vmatpush1.msra.mxu0 0.0
  %415 = vmatprep.subr.mxu0 0.0
  %416 = vmatpush1.msra.mxu0 0.0
  %417 = vmatprep.subr.mxu0 0.0
  %418 = vmatpush1.msra.mxu0 0.0
  %419 = vmatprep.subr.mxu0 0.0
  %420 = vmatpush1.msra.mxu0 0.0
  %421 = vmatprep.subr.mxu0 0.0
  %422 = vmatpush1.msra.mxu0 0.0
  %423 = vmatprep.subr.mxu0 0.0
  %424 = vmatpush1.msra.mxu0 0.0
  %425 = vmatprep.subr.mxu0 0.0
  %426 = vmatpush1.msra.mxu0 0.0
  %427 = vmatprep.subr.mxu0 0.0
  %428 = vmatpush1.msra.mxu0 0.0
  %429 = vmatprep.mubr.f32.mxu0 %v170
  %430 = vmatmul.mubr.f32.gmra.mrb[0].mxu0 %v14
  %v431 = vpop.f32.mrb[0].mxu0
  %v432 = vadd.f32 %v166, %v431
  %v433 = vpop.f32.mrb[0].mxu0
  %434 = vmatprep.mubr.f32.mxu0 %v173
  %435 = vmatmul.mubr.f32.gmra.mrb[0].mxu0 %v16
  %v436 = vpop.f32.mrb[0].mxu0
  %v437 = vadd.f32 %v166, %v436
  %v438 = vpop.f32.mrb[0].mxu0
  %439 = vmatprep.mubr.f32.mxu0 %v176
  %440 = vmatmul.mubr.f32.gmra.mrb[0].mxu0 %v18
  %v441 = vpop.f32.mrb[0].mxu0
  %v442 = vadd.f32 %v166, %v441
  %v443 = vpop.f32.mrb[0].mxu0
  %444 = vmatprep.mubr.f32.mxu0 %v179
  %445 = vmatmul.mubr.f32.gmra.mrb[0].mxu0 %v20
  %v446 = vpop.f32.mrb[0].mxu0
  %v447 = vadd.f32 %v166, %v446
  %v448 = vpop.f32.mrb[0].mxu0
  %449 = vmatprep.mubr.f32.mxu0 %v182
  %450 = vmatmul.mubr.f32.gmra.mrb[0].mxu0 %v22
  %v451 = vpop.f32.mrb[0].mxu0
  %v452 = vadd.f32 %v166, %v451
  %v453 = vpop.f32.mrb[0].mxu0
  %454 = vmatprep.mubr.f32.mxu0 %v185
  %455 = vmatmul.mubr.f32.gmra.mrb[0].mxu0 %v24
  %v456 = vpop.f32.mrb[0].mxu0
  %v457 = vadd.f32 %v166, %v456
  %v458 = vpop.f32.mrb[0].mxu0
  %459 = vmatprep.mubr.f32.mxu0 %v188
  %460 = vmatmul.mubr.f32.gmra.mrb[0].mxu0 %v26
  %v461 = vpop.f32.mrb[0].mxu0
  %v462 = vadd.f32 %v166, %v461
  %v463 = vpop.f32.mrb[0].mxu0
  %464 = vmatprep.mubr.f32.mxu0 %v191
  %465 = vmatmul.mubr.f32.gmra.mrb[0].mxu0 %v28
  %v466 = vpop.f32.mrb[0].mxu0
  %v467 = vadd.f32 %v166, %v466
  %v468 = vpop.f32.mrb[0].mxu0
  %469 = vmatprep.mubr.f32.mxu0 %v194
  %470 = vmatmul.mubr.f32.gmra.mrb[0].mxu0 %v30
  %v471 = vpop.f32.mrb[0].mxu0
  %v472 = vadd.f32 %v166, %v471
  %v473 = vpop.f32.mrb[0].mxu0
  %474 = vmatprep.mubr.f32.mxu0 %v197
  %475 = vmatmul.mubr.f32.gmra.mrb[0].mxu0 %v32
  %v476 = vpop.f32.mrb[0].mxu0
  %v477 = vadd.f32 %v166, %v476
  %v478 = vpop.f32.mrb[0].mxu0
  %479 = vmatprep.mubr.f32.mxu0 %v200
  %480 = vmatmul.mubr.f32.gmra.mrb[0].mxu0 %v34
  %v481 = vpop.f32.mrb[0].mxu0
  %v482 = vadd.f32 %v166, %v481
  %v483 = vpop.f32.mrb[0].mxu0
  %484 = vmatprep.mubr.f32.mxu0 %v203
  %485 = vmatmul.mubr.f32.gmra.mrb[0].mxu0 %v36
  %v486 = vpop.f32.mrb[0].mxu0
  %v487 = vadd.f32 %v166, %v486
  %v488 = vpop.f32.mrb[0].mxu0
  %489 = vmatprep.mubr.f32.mxu0 %v206
  %490 = vmatmul.mubr.f32.gmra.mrb[0].mxu0 %v38
  %v491 = vpop.f32.mrb[0].mxu0
  %v492 = vadd.f32 %v166, %v491
  %v493 = vpop.f32.mrb[0].mxu0
  %494 = vmatprep.mubr.f32.mxu0 %v209
  %495 = vmatmul.mubr.f32.gmra.mrb[0].mxu0 %v40
  %v496 = vpop.f32.mrb[0].mxu0
  %v497 = vadd.f32 %v166, %v496
  %v498 = vpop.f32.mrb[0].mxu0
  %499 = vmatprep.mubr.f32.mxu0 %v212
  %500 = vmatmul.mubr.f32.gmra.mrb[0].mxu0 %v42
  %v501 = vpop.f32.mrb[0].mxu0
  %v502 = vadd.f32 %v166, %v501
  %v503 = vpop.f32.mrb[0].mxu0
  %504 = vmatprep.mubr.f32.mxu0 %v215
  %505 = vmatmul.mubr.f32.gmra.mrb[0].mxu0 %v44
  %v506 = vpop.f32.mrb[0].mxu0
  %v507 = vadd.f32 %v166, %v506
  %v508 = vpop.f32.mrb[0].mxu0
  %509 = vmatprep.mubr.f32.mxu0 %v218
  %510 = vmatmul.mubr.f32.gmra.mrb[0].mxu0 %v46
  %v511 = vpop.f32.mrb[0].mxu0
  %v512 = vadd.f32 %v166, %v511
  %v513 = vpop.f32.mrb[0].mxu0
  %514 = vmatprep.mubr.f32.mxu0 %v221
  %515 = vmatmul.mubr.f32.gmra.mrb[0].mxu0 %v48
  %v516 = vpop.f32.mrb[0].mxu0
  %v517 = vadd.f32 %v166, %v516
  %v518 = vpop.f32.mrb[0].mxu0
  %519 = vmatprep.mubr.f32.mxu0 %v224
  %520 = vmatmul.mubr.f32.gmra.mrb[0].mxu0 %v50
  %v521 = vpop.f32.mrb[0].mxu0
  %v522 = vadd.f32 %v166, %v521
  %v523 = vpop.f32.mrb[0].mxu0
  %524 = vmatprep.mubr.f32.mxu0 %v227
  %525 = vmatmul.mubr.f32.gmra.mrb[0].mxu0 %v52
  %v526 = vpop.f32.mrb[0].mxu0
  %v527 = vadd.f32 %v166, %v526
  %v528 = vpop.f32.mrb[0].mxu0
  %529 = vmatprep.mubr.f32.mxu0 %v230
  %530 = vmatmul.mubr.f32.gmra.mrb[0].mxu0 %v54
  %v531 = vpop.f32.mrb[0].mxu0
  %v532 = vadd.f32 %v166, %v531
  %v533 = vpop.f32.mrb[0].mxu0
  %534 = vmatprep.mubr.f32.mxu0 %v233
  %535 = vmatmul.mubr.f32.gmra.mrb[0].mxu0 %v56
  %v536 = vpop.f32.mrb[0].mxu0
  %v537 = vadd.f32 %v166, %v536
  %v538 = vpop.f32.mrb[0].mxu0
  %539 = vmatprep.mubr.f32.mxu0 %v236
  %540 = vmatmul.mubr.f32.gmra.mrb[0].mxu0 %v58
  %v541 = vpop.f32.mrb[0].mxu0
  %v542 = vadd.f32 %v166, %v541
  %v543 = vpop.f32.mrb[0].mxu0
  %544 = vmatprep.mubr.f32.mxu0 %v239
  %545 = vmatmul.mubr.f32.gmra.mrb[0].mxu0 %v60
  %v546 = vpop.f32.mrb[0].mxu0
  %v547 = vadd.f32 %v166, %v546
  %v548 = vpop.f32.mrb[0].mxu0
  %549 = vmatprep.mubr.f32.mxu0 %v242
  %550 = vmatmul.mubr.f32.gmra.mrb[0].mxu0 %v62
  %v551 = vpop.f32.mrb[0].mxu0
  %v552 = vadd.f32 %v166, %v551
  %v553 = vpop.f32.mrb[0].mxu0
  %554 = vmatprep.mubr.f32.mxu0 %v245
  %555 = vmatmul.mubr.f32.gmra.mrb[0].mxu0 %v64
  %v556 = vpop.f32.mrb[0].mxu0
  %v557 = vadd.f32 %v166, %v556
  %v558 = vpop.f32.mrb[0].mxu0
  %559 = vmatprep.mubr.f32.mxu0 %v248
  %560 = vmatmul.mubr.f32.gmra.mrb[0].mxu0 %v66
  %v561 = vpop.f32.mrb[0].mxu0
  %v562 = vadd.f32 %v166, %v561
  %v563 = vpop.f32.mrb[0].mxu0
  %564 = vmatprep.mubr.f32.mxu0 %v251
  %565 = vmatmul.mubr.f32.gmra.mrb[0].mxu0 %v68
  %v566 = vpop.f32.mrb[0].mxu0
  %v567 = vadd.f32 %v166, %v566
  %v568 = vpop.f32.mrb[0].mxu0
  %569 = vmatprep.mubr.f32.mxu0 %v254
  %570 = vmatmul.mubr.f32.gmra.mrb[0].mxu0 %v70
  %v571 = vpop.f32.mrb[0].mxu0
  %v572 = vadd.f32 %v166, %v571
  %v573 = vpop.f32.mrb[0].mxu0
  %574 = vmatprep.mubr.f32.mxu0 %v257
  %575 = vmatmul.mubr.f32.gmra.mrb[0].mxu0 %v72
  %v576 = vpop.f32.mrb[0].mxu0
  %v577 = vadd.f32 %v166, %v576
  %v578 = vpop.f32.mrb[0].mxu0
  %579 = vmatprep.mubr.f32.mxu0 %v260
  %580 = vmatmul.mubr.f32.gmra.mrb[0].mxu0 %v74
  %v581 = vpop.f32.mrb[0].mxu0
  %v582 = vadd.f32 %v166, %v581
  %v583 = vpop.f32.mrb[0].mxu0
  %584 = vmatprep.mubr.f32.mxu0 %v263
  %585 = vmatmul.mubr.f32.gmra.mrb[0].mxu0 %v76
  %v586 = vpop.f32.mrb[0].mxu0
  %v587 = vadd.f32 %v166, %v586
  %v588 = vpop.f32.mrb[0].mxu0
  %589 = vmatprep.mubr.f32.mxu0 %v266
  %590 = vmatmul.mubr.f32.gmra.mrb[0].mxu0 %v78
  %v591 = vpop.f32.mrb[0].mxu0
  %v592 = vadd.f32 %v166, %v591
  %v593 = vpop.f32.mrb[0].mxu0
  %594 = vmatprep.mubr.f32.mxu0 %v269
  %595 = vmatmul.mubr.f32.gmra.mrb[0].mxu0 %v80
  %v596 = vpop.f32.mrb[0].mxu0
  %v597 = vadd.f32 %v166, %v596
  %v598 = vpop.f32.mrb[0].mxu0
  %599 = vmatprep.mubr.f32.mxu0 %v272
  %600 = vmatmul.mubr.f32.gmra.mrb[0].mxu0 %v82
  %v601 = vpop.f32.mrb[0].mxu0
  %v602 = vadd.f32 %v166, %v601
  %v603 = vpop.f32.mrb[0].mxu0
  %604 = vmatprep.mubr.f32.mxu0 %v275
  %605 = vmatmul.mubr.f32.gmra.mrb[0].mxu0 %v84
  %v606 = vpop.f32.mrb[0].mxu0
  %v607 = vadd.f32 %v166, %v606
  %v608 = vpop.f32.mrb[0].mxu0
  %609 = vmatprep.mubr.f32.mxu0 %v278
  %610 = vmatmul.mubr.f32.gmra.mrb[0].mxu0 %v86
  %v611 = vpop.f32.mrb[0].mxu0
  %v612 = vadd.f32 %v166, %v611
  %v613 = vpop.f32.mrb[0].mxu0
  %614 = vmatprep.mubr.f32.mxu0 %v281
  %615 = vmatmul.mubr.f32.gmra.mrb[0].mxu0 %v88
  %v616 = vpop.f32.mrb[0].mxu0
  %v617 = vadd.f32 %v166, %v616
  %v618 = vpop.f32.mrb[0].mxu0
  %619 = vmatprep.mubr.f32.mxu0 %v284
  %620 = vmatmul.mubr.f32.gmra.mrb[0].mxu0 %v90
  %v621 = vpop.f32.mrb[0].mxu0
  %v622 = vadd.f32 %v166, %v621
  %v623 = vpop.f32.mrb[0].mxu0
  %624 = vmatprep.mubr.f32.mxu0 %v287
  %625 = vmatmul.mubr.f32.gmra.mrb[0].mxu0 %v92
  %v626 = vpop.f32.mrb[0].mxu0
  %v627 = vadd.f32 %v166, %v626
  %v628 = vpop.f32.mrb[0].mxu0
  %629 = vmatprep.mubr.f32.mxu0 %v290
  %630 = vmatmul.mubr.f32.gmra.mrb[0].mxu0 %v94
  %v631 = vpop.f32.mrb[0].mxu0
  %v632 = vadd.f32 %v166, %v631
  %v633 = vpop.f32.mrb[0].mxu0
  %634 = vmatprep.mubr.f32.mxu0 %v293
  %635 = vmatmul.mubr.f32.gmra.mrb[0].mxu0 %v96
  %v636 = vpop.f32.mrb[0].mxu0
  %v637 = vadd.f32 %v166, %v636
  %v638 = vpop.f32.mrb[0].mxu0
  %639 = vmatprep.mubr.f32.mxu0 %v296
  %640 = vmatmul.mubr.f32.gmra.mrb[0].mxu0 %v98
  %v641 = vpop.f32.mrb[0].mxu0
  %v642 = vadd.f32 %v166, %v641
  %v643 = vpop.f32.mrb[0].mxu0
  %644 = vmatprep.mubr.f32.mxu0 %v299
  %645 = vmatmul.mubr.f32.gmra.mrb[0].mxu0 %v100
  %v646 = vpop.f32.mrb[0].mxu0
  %v647 = vadd.f32 %v166, %v646
  %v648 = vpop.f32.mrb[0].mxu0
  %649 = vmatprep.mubr.f32.mxu0 %v302
  %650 = vmatmul.mubr.f32.gmra.mrb[0].mxu0 %v102
  %v651 = vpop.f32.mrb[0].mxu0
  %v652 = vadd.f32 %v166, %v651
  %v653 = vpop.f32.mrb[0].mxu0
  %654 = vmatprep.mubr.f32.mxu0 %v305
  %655 = vmatmul.mubr.f32.gmra.mrb[0].mxu0 %v104
  %v656 = vpop.f32.mrb[0].mxu0
  %v657 = vadd.f32 %v166, %v656
  %v658 = vpop.f32.mrb[0].mxu0
  %659 = vmatprep.mubr.f32.mxu0 %v308
  %660 = vmatmul.mubr.f32.gmra.mrb[0].mxu0 %v106
  %v661 = vpop.f32.mrb[0].mxu0
  %v662 = vadd.f32 %v166, %v661
  %v663 = vpop.f32.mrb[0].mxu0
  %664 = vmatprep.mubr.f32.mxu0 %v311
  %665 = vmatmul.mubr.f32.gmra.mrb[0].mxu0 %v108
  %v666 = vpop.f32.mrb[0].mxu0
  %v667 = vadd.f32 %v166, %v666
  %v668 = vpop.f32.mrb[0].mxu0
  %669 = vmatprep.mubr.f32.mxu0 %v314
  %670 = vmatmul.mubr.f32.gmra.mrb[0].mxu0 %v110
  %v671 = vpop.f32.mrb[0].mxu0
  %v672 = vadd.f32 %v166, %v671
  %v673 = vpop.f32.mrb[0].mxu0
  %674 = vmatprep.mubr.f32.mxu0 %v317
  %675 = vmatmul.mubr.f32.gmra.mrb[0].mxu0 %v112
  %v676 = vpop.f32.mrb[0].mxu0
  %v677 = vadd.f32 %v166, %v676
  %v678 = vpop.f32.mrb[0].mxu0
  %679 = vmatprep.mubr.f32.mxu0 %v320
  %680 = vmatmul.mubr.f32.gmra.mrb[0].mxu0 %v114
  %v681 = vpop.f32.mrb[0].mxu0
  %v682 = vadd.f32 %v166, %v681
  %v683 = vpop.f32.mrb[0].mxu0
  %684 = vmatprep.mubr.f32.mxu0 %v323
  %685 = vmatmul.mubr.f32.gmra.mrb[0].mxu0 %v116
  %v686 = vpop.f32.mrb[0].mxu0
  %v687 = vadd.f32 %v166, %v686
  %v688 = vpop.f32.mrb[0].mxu0
  %689 = vmatprep.mubr.f32.mxu0 %v326
  %690 = vmatmul.mubr.f32.gmra.mrb[0].mxu0 %v118
  %v691 = vpop.f32.mrb[0].mxu0
  %v692 = vadd.f32 %v166, %v691
  %v693 = vpop.f32.mrb[0].mxu0
  %694 = vmatprep.mubr.f32.mxu0 %v329
  %695 = vmatmul.mubr.f32.gmra.mrb[0].mxu0 %v120
  %v696 = vpop.f32.mrb[0].mxu0
  %v697 = vadd.f32 %v166, %v696
  %v698 = vpop.f32.mrb[0].mxu0
  %699 = vmatprep.mubr.f32.mxu0 %v332
  %700 = vmatmul.mubr.f32.gmra.mrb[0].mxu0 %v122
  %v701 = vpop.f32.mrb[0].mxu0
  %v702 = vadd.f32 %v166, %v701
  %v703 = vpop.f32.mrb[0].mxu0
  %704 = vmatprep.mubr.f32.mxu0 %v335
  %705 = vmatmul.mubr.f32.gmra.mrb[0].mxu0 %v124
  %v706 = vpop.f32.mrb[0].mxu0
  %v707 = vadd.f32 %v166, %v706
  %v708 = vpop.f32.mrb[0].mxu0
  %709 = vmatprep.mubr.f32.mxu0 %v338
  %710 = vmatmul.mubr.f32.gmra.mrb[0].mxu0 %v126
  %v711 = vpop.f32.mrb[0].mxu0
  %v712 = vadd.f32 %v166, %v711
  %v713 = vpop.f32.mrb[0].mxu0
  %714 = vmatprep.mubr.f32.mxu0 %v341
  %715 = vmatmul.mubr.f32.gmra.mrb[0].mxu0 %v128
  %v716 = vpop.f32.mrb[0].mxu0
  %v717 = vadd.f32 %v166, %v716
  %v718 = vpop.f32.mrb[0].mxu0
  %719 = vmatprep.mubr.f32.mxu0 %v344
  %720 = vmatmul.mubr.f32.gmra.mrb[0].mxu0 %v130
  %v721 = vpop.f32.mrb[0].mxu0
  %v722 = vadd.f32 %v166, %v721
  %v723 = vpop.f32.mrb[0].mxu0
  %724 = vmatprep.mubr.f32.mxu0 %v347
  %725 = vmatmul.mubr.f32.gmra.mrb[0].mxu0 %v132
  %v726 = vpop.f32.mrb[0].mxu0
  %v727 = vadd.f32 %v166, %v726
  %v728 = vpop.f32.mrb[0].mxu0
  %729 = vmatprep.mubr.f32.mxu0 %v350
  %730 = vmatmul.mubr.f32.gmra.mrb[0].mxu0 %v134
  %v731 = vpop.f32.mrb[0].mxu0
  %v732 = vadd.f32 %v166, %v731
  %v733 = vpop.f32.mrb[0].mxu0
  %734 = vmatprep.mubr.f32.mxu0 %v353
  %735 = vmatmul.mubr.f32.gmra.mrb[0].mxu0 %v136
  %v736 = vpop.f32.mrb[0].mxu0
  %v737 = vadd.f32 %v166, %v736
  %v738 = vpop.f32.mrb[0].mxu0
  %739 = vmatprep.mubr.f32.mxu0 %v356
  %740 = vmatmul.mubr.f32.gmra.mrb[0].mxu0 %v138
  %v741 = vpop.f32.mrb[0].mxu0
  %v742 = vadd.f32 %v166, %v741
  %v743 = vpop.f32.mrb[0].mxu0
  %744 = vmatprep.mubr.f32.mxu0 %v359
  %745 = vmatmul.mubr.f32.gmra.mrb[0].mxu0 %v140
  %v746 = vpop.f32.mrb[0].mxu0
  %v747 = vadd.f32 %v166, %v746
  %v748 = vpop.f32.mrb[0].mxu0
  %749 = vdwg.mxu0
  %v750 = vmax.f32 %v432, 0.0
  %v751 = vmax.f32 %v437, 0.0
  %v752 = vmax.f32 %v442, 0.0
  %v753 = vmax.f32 %v447, 0.0
  %v754 = vmax.f32 %v452, 0.0
  %v755 = vmax.f32 %v457, 0.0
  %v756 = vmax.f32 %v462, 0.0
  %v757 = vmax.f32 %v467, 0.0
  %v758 = vmax.f32 %v472, 0.0
  %v759 = vmax.f32 %v477, 0.0
  %v760 = vmax.f32 %v482, 0.0
  %v761 = vmax.f32 %v487, 0.0
  %v762 = vmax.f32 %v492, 0.0
  %v763 = vmax.f32 %v497, 0.0
  %v764 = vmax.f32 %v502, 0.0
  %v765 = vmax.f32 %v507, 0.0
  %v766 = vmax.f32 %v512, 0.0
  %v767 = vmax.f32 %v517, 0.0
  %v768 = vmax.f32 %v522, 0.0
  %v769 = vmax.f32 %v527, 0.0
  %v770 = vmax.f32 %v532, 0.0
  %v771 = vmax.f32 %v537, 0.0
  %v772 = vmax.f32 %v542, 0.0
  %v773 = vmax.f32 %v547, 0.0
  %v774 = vmax.f32 %v552, 0.0
  %v775 = vmax.f32 %v557, 0.0
  %v776 = vmax.f32 %v562, 0.0
  %v777 = vmax.f32 %v567, 0.0
  %v778 = vmax.f32 %v572, 0.0
  %v779 = vmax.f32 %v577, 0.0
  %v780 = vmax.f32 %v582, 0.0
  %v781 = vmax.f32 %v587, 0.0
  %v782 = vmax.f32 %v592, 0.0
  %v783 = vmax.f32 %v597, 0.0
  %v784 = vmax.f32 %v602, 0.0
  %v785 = vmax.f32 %v607, 0.0
  %v786 = vmax.f32 %v612, 0.0
  %v787 = vmax.f32 %v617, 0.0
  %v788 = vmax.f32 %v622, 0.0
  %v789 = vmax.f32 %v627, 0.0
  %v790 = vmax.f32 %v632, 0.0
  %v791 = vmax.f32 %v637, 0.0
  %v792 = vmax.f32 %v642, 0.0
  %v793 = vmax.f32 %v647, 0.0
  %v794 = vmax.f32 %v652, 0.0
  %v795 = vmax.f32 %v657, 0.0
  %v796 = vmax.f32 %v662, 0.0
  %v797 = vmax.f32 %v667, 0.0
  %v798 = vmax.f32 %v672, 0.0
  %v799 = vmax.f32 %v677, 0.0
  %v800 = vmax.f32 %v682, 0.0
  %v801 = vmax.f32 %v687, 0.0
  %v802 = vmax.f32 %v692, 0.0
  %v803 = vmax.f32 %v697, 0.0
  %v804 = vmax.f32 %v702, 0.0
  %v805 = vmax.f32 %v707, 0.0
  %v806 = vmax.f32 %v712, 0.0
  %v807 = vmax.f32 %v717, 0.0
  %v808 = vmax.f32 %v722, 0.0
  %v809 = vmax.f32 %v727, 0.0
  %v810 = vmax.f32 %v732, 0.0
  %v811 = vmax.f32 %v737, 0.0
  %v812 = vmax.f32 %v742, 0.0
  %v813 = vmax.f32 %v747, 0.0
  %vm814 = vcmask 130048
  %815 = vst.msk [vmem:[%s3] sm:$0xff] %vm814, %v750
  %816 = vst.msk [vmem:[%s3 + $0x8] sm:$0xff] %vm814, %v751
  %817 = vst.msk [vmem:[%s3 + $0x10] sm:$0xff] %vm814, %v752
  %818 = vst.msk [vmem:[%s3 + $0x18] sm:$0xff] %vm814, %v753
  %819 = vst.msk [vmem:[%s3 + $0x20] sm:$0xff] %vm814, %v754
  %820 = vst.msk [vmem:[%s3 + $0x28] sm:$0xff] %vm814, %v755
  %821 = vst.msk [vmem:[%s3 + $0x30] sm:$0xff] %vm814, %v756
  %822 = vst.msk [vmem:[%s3 + $0x38] sm:$0xff] %vm814, %v757
  %823 = vst.msk [vmem:[%s3 + $0x40] sm:$0xff] %vm814, %v758
  %824 = vst.msk [vmem:[%s3 + $0x48] sm:$0xff] %vm814, %v759
  %825 = vst.msk [vmem:[%s3 + $0x50] sm:$0xff] %vm814, %v760
  %826 = vst.msk [vmem:[%s3 + $0x58] sm:$0xff] %vm814, %v761
  %827 = vst.msk [vmem:[%s3 + $0x60] sm:$0xff] %vm814, %v762
  %828 = vst.msk [vmem:[%s3 + $0x68] sm:$0xff] %vm814, %v763
  %829 = vst.msk [vmem:[%s3 + $0x70] sm:$0xff] %vm814, %v764
  %830 = vst.msk [vmem:[%s3 + $0x78] sm:$0xff] %vm814, %v765
  %831 = vst.msk [vmem:[%s3 + $0x80] sm:$0xff] %vm814, %v766
  %832 = vst.msk [vmem:[%s3 + $0x88] sm:$0xff] %vm814, %v767
  %833 = vst.msk [vmem:[%s3 + $0x90] sm:$0xff] %vm814, %v768
  %834 = vst.msk [vmem:[%s3 + $0x98] sm:$0xff] %vm814, %v769
  %835 = vst.msk [vmem:[%s3 + $0xa0] sm:$0xff] %vm814, %v770
  %836 = vst.msk [vmem:[%s3 + $0xa8] sm:$0xff] %vm814, %v771
  %837 = vst.msk [vmem:[%s3 + $0xb0] sm:$0xff] %vm814, %v772
  %838 = vst.msk [vmem:[%s3 + $0xb8] sm:$0xff] %vm814, %v773
  %839 = vst.msk [vmem:[%s3 + $0xc0] sm:$0xff] %vm814, %v774
  %840 = vst.msk [vmem:[%s3 + $0xc8] sm:$0xff] %vm814, %v775
  %841 = vst.msk [vmem:[%s3 + $0xd0] sm:$0xff] %vm814, %v776
  %842 = vst.msk [vmem:[%s3 + $0xd8] sm:$0xff] %vm814, %v777
  %843 = vst.msk [vmem:[%s3 + $0xe0] sm:$0xff] %vm814, %v778
  %844 = vst.msk [vmem:[%s3 + $0xe8] sm:$0xff] %vm814, %v779
  %845 = vst.msk [vmem:[%s3 + $0xf0] sm:$0xff] %vm814, %v780
  %846 = vst.msk [vmem:[%s3 + $0xf8] sm:$0xff] %vm814, %v781
  %847 = vst.msk [vmem:[%s3 + $0x100] sm:$0xff] %vm814, %v782
  %848 = vst.msk [vmem:[%s3 + $0x108] sm:$0xff] %vm814, %v783
  %849 = vst.msk [vmem:[%s3 + $0x110] sm:$0xff] %vm814, %v784
  %850 = vst.msk [vmem:[%s3 + $0x118] sm:$0xff] %vm814, %v785
  %851 = vst.msk [vmem:[%s3 + $0x120] sm:$0xff] %vm814, %v786
  %852 = vst.msk [vmem:[%s3 + $0x128] sm:$0xff] %vm814, %v787
  %853 = vst.msk [vmem:[%s3 + $0x130] sm:$0xff] %vm814, %v788
  %854 = vst.msk [vmem:[%s3 + $0x138] sm:$0xff] %vm814, %v789
  %855 = vst.msk [vmem:[%s3 + $0x140] sm:$0xff] %vm814, %v790
  %856 = vst.msk [vmem:[%s3 + $0x148] sm:$0xff] %vm814, %v791
  %857 = vst.msk [vmem:[%s3 + $0x150] sm:$0xff] %vm814, %v792
  %858 = vst.msk [vmem:[%s3 + $0x158] sm:$0xff] %vm814, %v793
  %859 = vst.msk [vmem:[%s3 + $0x160] sm:$0xff] %vm814, %v794
  %860 = vst.msk [vmem:[%s3 + $0x168] sm:$0xff] %vm814, %v795
  %861 = vst.msk [vmem:[%s3 + $0x170] sm:$0xff] %vm814, %v796
  %862 = vst.msk [vmem:[%s3 + $0x178] sm:$0xff] %vm814, %v797
  %863 = vst.msk [vmem:[%s3 + $0x180] sm:$0xff] %vm814, %v798
  %864 = vst.msk [vmem:[%s3 + $0x188] sm:$0xff] %vm814, %v799
  %865 = vst.msk [vmem:[%s3 + $0x190] sm:$0xff] %vm814, %v800
  %866 = vst.msk [vmem:[%s3 + $0x198] sm:$0xff] %vm814, %v801
  %867 = vst.msk [vmem:[%s3 + $0x1a0] sm:$0xff] %vm814, %v802
  %868 = vst.msk [vmem:[%s3 + $0x1a8] sm:$0xff] %vm814, %v803
  %869 = vst.msk [vmem:[%s3 + $0x1b0] sm:$0xff] %vm814, %v804
  %870 = vst.msk [vmem:[%s3 + $0x1b8] sm:$0xff] %vm814, %v805
  %871 = vst.msk [vmem:[%s3 + $0x1c0] sm:$0xff] %vm814, %v806
  %872 = vst.msk [vmem:[%s3 + $0x1c8] sm:$0xff] %vm814, %v807
  %873 = vst.msk [vmem:[%s3 + $0x1d0] sm:$0xff] %vm814, %v808
  %874 = vst.msk [vmem:[%s3 + $0x1d8] sm:$0xff] %vm814, %v809
  %875 = vst.msk [vmem:[%s3 + $0x1e0] sm:$0xff] %vm814, %v810
  %876 = vst.msk [vmem:[%s3 + $0x1e8] sm:$0xff] %vm814, %v811
  %877 = vst.msk [vmem:[%s3 + $0x1f0] sm:$0xff] %vm814, %v812
  %878 = vst.msk [vmem:[%s3 + $0x1f8] sm:$0xff] %vm814, %v813
  // Predicated region
  $region14: #{densenet_forward.11} parent=0 // pred_check
    _
  $region15: #{densenet_forward.11} parent=0 // pred_check_branch
    %880 = sbr.rel (0) target = $region17
  $region16: #{densenet_forward.11} parent=0 // pred_region
    _
  $region17: #{densenet_forward.11} parent=0 // pred_fallthru
    _
  // Predicated region
  $region18: #{densenet_forward.11} parent=0 // pred_check
    _
  $region19: #{densenet_forward.11} parent=0 // pred_check_branch
    %882 = sbr.rel (0) target = $region21
  $region20: #{densenet_forward.11} parent=0 // pred_region
    _
  $region21: #{densenet_forward.11} parent=0 // pred_fallthru
    _

// kernel: densenet_forward.12
$region0: #{densenet_forward.12}
  #allocation0 [shape = 'u32[]', space=smem, size = 0x4, offset = 0x4, fixed_abs, tag = 'smem constant byte address 0x4 - core index']
  #allocation1 [shape = 'u32[144,128]{1,0:T(1,128)}', space=vmem, size = 0x12000, scoped, tag = 'internal scratch']
  %s0 = inlined_call_operand.vmem [shape: f32[128,16], index: 0, kind: input, shape index: {}]
  %s1 = inlined_call_operand.vmem [shape: f32[1,16], index: 1, kind: input, shape index: {}]
  %s2 = inlined_call_operand.vmem [shape: f32[1,16], index: 2, kind: input, shape index: {}, may-alias: {2,4}]
  %s3 = inlined_call_operand.vmem [shape: f32[16,16], index: 3, kind: input, shape index: {}]
  %s4 = inlined_call_operand.vmem [shape: f32[1,16], index: 4, kind: input, shape index: {}, may-alias: {2,4}]
  %s5 = inlined_call_operand.vmem [shape: f32[128,16], index: 5, kind: output, shape index: {}]
  %s6 = sld [smem:[#allocation0]]
  $region30: #{densenet_forward.12} parent=0
    _
  %s8 = ssub.s32 1, %s6
  %s9 = scalar_select 0, %s8, %s6
  // Predicated region
  $region2: #{densenet_forward.12} parent=0 // pred_check
    _
  $region3: #{densenet_forward.12} parent=0 // pred_check_branch
    %11 = sbr.rel (0) target = $region5
  $region4: #{densenet_forward.12} parent=0 // pred_region
    _
  $region5: #{densenet_forward.12} parent=0 // pred_fallthru
    _
  // Predicated region
  $region6: #{densenet_forward.12} parent=0 // pred_check
    _
  $region7: #{densenet_forward.12} parent=0 // pred_check_branch
    %13 = sbr.rel (0) target = $region9
  $region8: #{densenet_forward.12} parent=0 // pred_region
    _
  $region9: #{densenet_forward.12} parent=0 // pred_fallthru
    _
  // Predicated region
  $region10: #{densenet_forward.12} parent=0 // pred_check
    _
  $region11: #{densenet_forward.12} parent=0 // pred_check_branch
    %15 = sbr.rel (0) target = $region13
  $region12: #{densenet_forward.12} parent=0 // pred_region
    _
  $region13: #{densenet_forward.12} parent=0 // pred_fallthru
    _
  // Predicated region
  $region14: #{densenet_forward.12} parent=0 // pred_check
    _
  $region15: #{densenet_forward.12} parent=0 // pred_check_branch
    %17 = sbr.rel (0) target = $region17
  $region16: #{densenet_forward.12} parent=0 // pred_region
    _
  $region17: #{densenet_forward.12} parent=0 // pred_fallthru
    _
  // Predicated region
  $region18: #{densenet_forward.12} parent=0 // pred_check
    _
  $region19: #{densenet_forward.12} parent=0 // pred_check_branch
    %19 = sbr.rel (0) target = $region21
  $region20: #{densenet_forward.12} parent=0 // pred_region
    _
  $region21: #{densenet_forward.12} parent=0 // pred_fallthru
    _
  %v20 = vld [vmem:[%s0] sm:$0xff]
  %v21 = vld [vmem:[%s0 + $0x8] sm:$0xff]
  %v22 = vld [vmem:[%s0 + $0x10] sm:$0xff]
  %v23 = vld [vmem:[%s0 + $0x18] sm:$0xff]
  %v24 = vld [vmem:[%s0 + $0x20] sm:$0xff]
  %v25 = vld [vmem:[%s0 + $0x28] sm:$0xff]
  %v26 = vld [vmem:[%s0 + $0x30] sm:$0xff]
  %v27 = vld [vmem:[%s0 + $0x38] sm:$0xff]
  %v28 = vld [vmem:[%s0 + $0x40] sm:$0xff]
  %v29 = vld [vmem:[%s0 + $0x48] sm:$0xff]
  %v30 = vld [vmem:[%s0 + $0x50] sm:$0xff]
  %v31 = vld [vmem:[%s0 + $0x58] sm:$0xff]
  %v32 = vld [vmem:[%s0 + $0x60] sm:$0xff]
  %v33 = vld [vmem:[%s0 + $0x68] sm:$0xff]
  %v34 = vld [vmem:[%s0 + $0x70] sm:$0xff]
  %v35 = vld [vmem:[%s0 + $0x78] sm:$0xff]
  %v36 = vld [vmem:[%s1] sm:$0x1]
  %v38 = vlaneseq
  %v39 = vshrl.u32 %v38, 7
  %v40 = vsub.s32 0, %v39
  %v41 = vrot.slane %v36, %v40
  %v43 = vmul.f32 %v20, %v41
  %v44 = vmul.f32 %v21, %v41
  %v45 = vmul.f32 %v22, %v41
  %v46 = vmul.f32 %v23, %v41
  %v47 = vmul.f32 %v24, %v41
  %v48 = vmul.f32 %v25, %v41
  %v49 = vmul.f32 %v26, %v41
  %v50 = vmul.f32 %v27, %v41
  %v51 = vmul.f32 %v28, %v41
  %v52 = vmul.f32 %v29, %v41
  %v53 = vmul.f32 %v30, %v41
  %v54 = vmul.f32 %v31, %v41
  %v55 = vmul.f32 %v32, %v41
  %v56 = vmul.f32 %v33, %v41
  %v57 = vmul.f32 %v34, %v41
  %v58 = vmul.f32 %v35, %v41
  %v59 = vld [vmem:[%s2] sm:$0x1]
  %v61 = vlaneseq
  %v62 = vshrl.u32 %v61, 7
  %v63 = vsub.s32 0, %v62
  %v64 = vrot.slane %v59, %v63
  %v66 = vadd.f32 %v43, %v64
  %v67 = vadd.f32 %v44, %v64
  %v68 = vadd.f32 %v45, %v64
  %v69 = vadd.f32 %v46, %v64
  %v70 = vadd.f32 %v47, %v64
  %v71 = vadd.f32 %v48, %v64
  %v72 = vadd.f32 %v49, %v64
  %v73 = vadd.f32 %v50, %v64
  %v74 = vadd.f32 %v51, %v64
  %v75 = vadd.f32 %v52, %v64
  %v76 = vadd.f32 %v53, %v64
  %v77 = vadd.f32 %v54, %v64
  %v78 = vadd.f32 %v55, %v64
  %v79 = vadd.f32 %v56, %v64
  %v80 = vadd.f32 %v57, %v64
  %v81 = vadd.f32 %v58, %v64
  %v82 = vmax.f32 %v66, 0.0
  %v83 = vmax.f32 %v67, 0.0
  %v84 = vmax.f32 %v68, 0.0
  %v85 = vmax.f32 %v69, 0.0
  %v86 = vmax.f32 %v70, 0.0
  %v87 = vmax.f32 %v71, 0.0
  %v88 = vmax.f32 %v72, 0.0
  %v89 = vmax.f32 %v73, 0.0
  %v90 = vmax.f32 %v74, 0.0
  %v91 = vmax.f32 %v75, 0.0
  %v92 = vmax.f32 %v76, 0.0
  %v93 = vmax.f32 %v77, 0.0
  %v94 = vmax.f32 %v78, 0.0
  %v95 = vmax.f32 %v79, 0.0
  %v96 = vmax.f32 %v80, 0.0
  %v97 = vmax.f32 %v81, 0.0
  %v98 = vld [vmem:[%s3] sm:$0xff]
  %v99 = vld [vmem:[%s3 + $0x8] sm:$0xff]
  %v100 = vld [vmem:[%s4] sm:$0x1]
  %v102 = vlaneseq
  %v103 = vshrl.u32 %v102, 7
  %v104 = vsub.s32 0, %v103
  %v105 = vrot.slane %v100, %v104
  %vm107 = vcmask 130048
  %v109 = vsel %vm107, %v82, 0
  %v112 = vsel %vm107, %v83, 0
  %v115 = vsel %vm107, %v84, 0
  %v118 = vsel %vm107, %v85, 0
  %v121 = vsel %vm107, %v86, 0
  %v124 = vsel %vm107, %v87, 0
  %v127 = vsel %vm107, %v88, 0
  %v130 = vsel %vm107, %v89, 0
  %v133 = vsel %vm107, %v90, 0
  %v136 = vsel %vm107, %v91, 0
  %v139 = vsel %vm107, %v92, 0
  %v142 = vsel %vm107, %v93, 0
  %v145 = vsel %vm107, %v94, 0
  %v148 = vsel %vm107, %v95, 0
  %v151 = vsel %vm107, %v96, 0
  %v154 = vsel %vm107, %v97, 0
  %156 = vmatprep.subr.mxu0 0.0
  %157 = vmatpush1.msra.mxu0 %v98
  %158 = vmatprep.subr.mxu0 0.0
  %159 = vmatpush1.msra.mxu0 %v99
  %160 = vmatprep.subr.mxu0 0.0
  %161 = vmatpush1.msra.mxu0 0.0
  %162 = vmatprep.subr.mxu0 0.0
  %163 = vmatpush1.msra.mxu0 0.0
  %164 = vmatprep.subr.mxu0 0.0
  %165 = vmatpush1.msra.mxu0 0.0
  %166 = vmatprep.subr.mxu0 0.0
  %167 = vmatpush1.msra.mxu0 0.0
  %168 = vmatprep.subr.mxu0 0.0
  %169 = vmatpush1.msra.mxu0 0.0
  %170 = vmatprep.subr.mxu0 0.0
  %171 = vmatpush1.msra.mxu0 0.0
  %172 = vmatprep.subr.mxu0 0.0
  %173 = vmatpush1.msra.mxu0 0.0
  %174 = vmatprep.subr.mxu0 0.0
  %175 = vmatpush1.msra.mxu0 0.0
  %176 = vmatprep.subr.mxu0 0.0
  %177 = vmatpush1.msra.mxu0 0.0
  %178 = vmatprep.subr.mxu0 0.0
  %179 = vmatpush1.msra.mxu0 0.0
  %180 = vmatprep.subr.mxu0 0.0
  %181 = vmatpush1.msra.mxu0 0.0
  %182 = vmatprep.subr.mxu0 0.0
  %183 = vmatpush1.msra.mxu0 0.0
  %184 = vmatprep.subr.mxu0 0.0
  %185 = vmatpush1.msra.mxu0 0.0
  %186 = vmatprep.subr.mxu0 0.0
  %187 = vmatpush1.msra.mxu0 0.0
  %188 = vmatprep.subr.mxu0 0.0
  %189 = vmatpush1.msra.mxu0 0.0
  %190 = vmatprep.subr.mxu0 0.0
  %191 = vmatpush1.msra.mxu0 0.0
  %192 = vmatprep.subr.mxu0 0.0
  %193 = vmatpush1.msra.mxu0 0.0
  %194 = vmatprep.subr.mxu0 0.0
  %195 = vmatpush1.msra.mxu0 0.0
  %196 = vmatprep.subr.mxu0 0.0
  %197 = vmatpush1.msra.mxu0 0.0
  %198 = vmatprep.subr.mxu0 0.0
  %199 = vmatpush1.msra.mxu0 0.0
  %200 = vmatprep.subr.mxu0 0.0
  %201 = vmatpush1.msra.mxu0 0.0
  %202 = vmatprep.subr.mxu0 0.0
  %203 = vmatpush1.msra.mxu0 0.0
  %204 = vmatprep.subr.mxu0 0.0
  %205 = vmatpush1.msra.mxu0 0.0
  %206 = vmatprep.subr.mxu0 0.0
  %207 = vmatpush1.msra.mxu0 0.0
  %208 = vmatprep.subr.mxu0 0.0
  %209 = vmatpush1.msra.mxu0 0.0
  %210 = vmatprep.subr.mxu0 0.0
  %211 = vmatpush1.msra.mxu0 0.0
  %212 = vmatprep.subr.mxu0 0.0
  %213 = vmatpush1.msra.mxu0 0.0
  %214 = vmatprep.subr.mxu0 0.0
  %215 = vmatpush1.msra.mxu0 0.0
  %216 = vmatprep.subr.mxu0 0.0
  %217 = vmatpush1.msra.mxu0 0.0
  %218 = vmatprep.subr.mxu0 0.0
  %219 = vmatpush1.msra.mxu0 0.0
  %220 = vmatprep.mubr.f32.mxu0 0.0
  %221 = vmatmul.mubr.f32.gmra.mrb[0].mxu0 %v109
  %v222 = vpop.f32.mrb[0].mxu0
  %v223 = vadd.f32 %v105, %v222
  %v224 = vpop.f32.mrb[0].mxu0
  %225 = vmatprep.mubr.f32.mxu0 0.0
  %226 = vmatmul.mubr.f32.gmra.mrb[0].mxu0 %v112
  %v227 = vpop.f32.mrb[0].mxu0
  %v228 = vadd.f32 %v105, %v227
  %v229 = vpop.f32.mrb[0].mxu0
  %230 = vmatprep.mubr.f32.mxu0 0.0
  %231 = vmatmul.mubr.f32.gmra.mrb[0].mxu0 %v115
  %v232 = vpop.f32.mrb[0].mxu0
  %v233 = vadd.f32 %v105, %v232
  %v234 = vpop.f32.mrb[0].mxu0
  %235 = vmatprep.mubr.f32.mxu0 0.0
  %236 = vmatmul.mubr.f32.gmra.mrb[0].mxu0 %v118
  %v237 = vpop.f32.mrb[0].mxu0
  %v238 = vadd.f32 %v105, %v237
  %v239 = vpop.f32.mrb[0].mxu0
  %240 = vmatprep.mubr.f32.mxu0 0.0
  %241 = vmatmul.mubr.f32.gmra.mrb[0].mxu0 %v121
  %v242 = vpop.f32.mrb[0].mxu0
  %v243 = vadd.f32 %v105, %v242
  %v244 = vpop.f32.mrb[0].mxu0
  %245 = vmatprep.mubr.f32.mxu0 0.0
  %246 = vmatmul.mubr.f32.gmra.mrb[0].mxu0 %v124
  %v247 = vpop.f32.mrb[0].mxu0
  %v248 = vadd.f32 %v105, %v247
  %v249 = vpop.f32.mrb[0].mxu0
  %250 = vmatprep.mubr.f32.mxu0 0.0
  %251 = vmatmul.mubr.f32.gmra.mrb[0].mxu0 %v127
  %v252 = vpop.f32.mrb[0].mxu0
  %v253 = vadd.f32 %v105, %v252
  %v254 = vpop.f32.mrb[0].mxu0
  %255 = vmatprep.mubr.f32.mxu0 0.0
  %256 = vmatmul.mubr.f32.gmra.mrb[0].mxu0 %v130
  %v257 = vpop.f32.mrb[0].mxu0
  %v258 = vadd.f32 %v105, %v257
  %v259 = vpop.f32.mrb[0].mxu0
  %260 = vmatprep.mubr.f32.mxu0 0.0
  %261 = vmatmul.mubr.f32.gmra.mrb[0].mxu0 %v133
  %v262 = vpop.f32.mrb[0].mxu0
  %v263 = vadd.f32 %v105, %v262
  %v264 = vpop.f32.mrb[0].mxu0
  %265 = vmatprep.mubr.f32.mxu0 0.0
  %266 = vmatmul.mubr.f32.gmra.mrb[0].mxu0 %v136
  %v267 = vpop.f32.mrb[0].mxu0
  %v268 = vadd.f32 %v105, %v267
  %v269 = vpop.f32.mrb[0].mxu0
  %270 = vmatprep.mubr.f32.mxu0 0.0
  %271 = vmatmul.mubr.f32.gmra.mrb[0].mxu0 %v139
  %v272 = vpop.f32.mrb[0].mxu0
  %v273 = vadd.f32 %v105, %v272
  %v274 = vpop.f32.mrb[0].mxu0
  %275 = vmatprep.mubr.f32.mxu0 0.0
  %276 = vmatmul.mubr.f32.gmra.mrb[0].mxu0 %v142
  %v277 = vpop.f32.mrb[0].mxu0
  %v278 = vadd.f32 %v105, %v277
  %v279 = vpop.f32.mrb[0].mxu0
  %280 = vmatprep.mubr.f32.mxu0 0.0
  %281 = vmatmul.mubr.f32.gmra.mrb[0].mxu0 %v145
  %v282 = vpop.f32.mrb[0].mxu0
  %v283 = vadd.f32 %v105, %v282
  %v284 = vpop.f32.mrb[0].mxu0
  %285 = vmatprep.mubr.f32.mxu0 0.0
  %286 = vmatmul.mubr.f32.gmra.mrb[0].mxu0 %v148
  %v287 = vpop.f32.mrb[0].mxu0
  %v288 = vadd.f32 %v105, %v287
  %v289 = vpop.f32.mrb[0].mxu0
  %290 = vmatprep.mubr.f32.mxu0 0.0
  %291 = vmatmul.mubr.f32.gmra.mrb[0].mxu0 %v151
  %v292 = vpop.f32.mrb[0].mxu0
  %v293 = vadd.f32 %v105, %v292
  %v294 = vpop.f32.mrb[0].mxu0
  %295 = vmatprep.mubr.f32.mxu0 0.0
  %296 = vmatmul.mubr.f32.gmra.mrb[0].mxu0 %v154
  %v297 = vpop.f32.mrb[0].mxu0
  %v298 = vadd.f32 %v105, %v297
  %v299 = vpop.f32.mrb[0].mxu0
  %300 = vdwg.mxu0
  %v301 = vmax.f32 %v223, 0.0
  %v302 = vmax.f32 %v228, 0.0
  %v303 = vmax.f32 %v233, 0.0
  %v304 = vmax.f32 %v238, 0.0
  %v305 = vmax.f32 %v243, 0.0
  %v306 = vmax.f32 %v248, 0.0
  %v307 = vmax.f32 %v253, 0.0
  %v308 = vmax.f32 %v258, 0.0
  %v309 = vmax.f32 %v263, 0.0
  %v310 = vmax.f32 %v268, 0.0
  %v311 = vmax.f32 %v273, 0.0
  %v312 = vmax.f32 %v278, 0.0
  %v313 = vmax.f32 %v283, 0.0
  %v314 = vmax.f32 %v288, 0.0
  %v315 = vmax.f32 %v293, 0.0
  %v316 = vmax.f32 %v298, 0.0
  %317 = vst.msk [vmem:[%s5] sm:$0xff] %vm107, %v301
  %318 = vst.msk [vmem:[%s5 + $0x8] sm:$0xff] %vm107, %v302
  %319 = vst.msk [vmem:[%s5 + $0x10] sm:$0xff] %vm107, %v303
  %320 = vst.msk [vmem:[%s5 + $0x18] sm:$0xff] %vm107, %v304
  %321 = vst.msk [vmem:[%s5 + $0x20] sm:$0xff] %vm107, %v305
  %322 = vst.msk [vmem:[%s5 + $0x28] sm:$0xff] %vm107, %v306
  %323 = vst.msk [vmem:[%s5 + $0x30] sm:$0xff] %vm107, %v307
  %324 = vst.msk [vmem:[%s5 + $0x38] sm:$0xff] %vm107, %v308
  %325 = vst.msk [vmem:[%s5 + $0x40] sm:$0xff] %vm107, %v309
  %326 = vst.msk [vmem:[%s5 + $0x48] sm:$0xff] %vm107, %v310
  %327 = vst.msk [vmem:[%s5 + $0x50] sm:$0xff] %vm107, %v311
  %328 = vst.msk [vmem:[%s5 + $0x58] sm:$0xff] %vm107, %v312
  %329 = vst.msk [vmem:[%s5 + $0x60] sm:$0xff] %vm107, %v313
  %330 = vst.msk [vmem:[%s5 + $0x68] sm:$0xff] %vm107, %v314
  %331 = vst.msk [vmem:[%s5 + $0x70] sm:$0xff] %vm107, %v315
  %332 = vst.msk [vmem:[%s5 + $0x78] sm:$0xff] %vm107, %v316
  // Predicated region
  $region22: #{densenet_forward.12} parent=0 // pred_check
    _
  $region23: #{densenet_forward.12} parent=0 // pred_check_branch
    %334 = sbr.rel (0) target = $region25
  $region24: #{densenet_forward.12} parent=0 // pred_region
    _
  $region25: #{densenet_forward.12} parent=0 // pred_fallthru
    _
  // Predicated region
  $region26: #{densenet_forward.12} parent=0 // pred_check
    _
  $region27: #{densenet_forward.12} parent=0 // pred_check_branch
    %336 = sbr.rel (0) target = $region29
  $region28: #{densenet_forward.12} parent=0 // pred_region
    _
  $region29: #{densenet_forward.12} parent=0 // pred_fallthru
    _

// kernel: densenet_forward.13
$region0: #{densenet_forward.13}
  #allocation0 [shape = 'u32[]', space=smem, size = 0x4, offset = 0x4, fixed_abs, tag = 'smem constant byte address 0x4 - core index']
  #allocation1 [shape = 'u32[144,128]{1,0:T(1,128)}', space=vmem, size = 0x12000, scoped, tag = 'internal scratch']
  %s0 = inlined_call_operand.vmem [shape: f32[2,110,16], index: 0, kind: input, shape index: {}]
  %s1 = inlined_call_operand.vmem [shape: f32[9,16,8], index: 1, kind: input, shape index: {}]
  %s2 = inlined_call_operand.vmem [shape: f32[2,80,8], index: 2, kind: output, shape index: {}]
  %s3 = sld [smem:[#allocation0]]
  $region41: #{densenet_forward.13} parent=0
    _
  %s5 = ssub.s32 1, %s3
  %s6 = scalar_select 0, %s5, %s3
  loop: start=0, step=1, limit=4
  $region2: #{densenet_forward.13} parent=0 // loop_pre_header
    _
  $region3: #{densenet_forward.13} parent=0 // loop_header
    %s8 = sphi 0, %s12
    %p9 = scmp.ge.s32.totalorder %s8, 4
    %s18 = sphi 0, %s20
    %s21 = sphi 0, %s18
    %s22 = sphi 0, %s21
    %s38 = sphi 0, %s22
    %s42 = sphi 0, %s42
    %s44 = sphi 0, %s42
    %s45 = sphi 0, %s44
    %s59 = sphi 0, %s45
    %s65 = sphi 0, %s67
    %s68 = sphi 0, %s65
    %s69 = sphi 0, %s68
    %s85 = sphi 0, %s69
  $region4: #{densenet_forward.13} parent=0 // loop_header_branch
    %11 = sbr.rel (%p9) target = $region8
  $region5: #{densenet_forward.13} parent=0 // loop_body
    %s13 = ssub.s32 %s8, 1
    %s14 = ssub.s32 %s8, 2
    %s15 = sadd.s32 %s8, 1
    %s16 = ssub.s32 %s8, %s15
    %p17 = scmp.eq.s32.totalorder %s16, 0
    %s19 = sadd.s32 %s18, 1
    %s20 = scalar_select %p17, %s18, %s19
    %p23 = pneg %p17
    %p24 = scmp.eq.s32.totalorder %s8, 1
    %p25 = por %p23, %p24
    %p26 = scmp.ne.s32.totalorder %s18, %s21
    %p27 = scmp.eq.s32.totalorder %s8, 0
    %p28 = por %p26, %p27
    %p29 = scmp.ne.s32.totalorder %s18, %s21
    %p30 = scmp.eq.s32.totalorder %s13, 1
    %p31 = por %p29, %p30
    %p32 = scmp.ne.s32.totalorder %s21, %s22
    %p33 = scmp.eq.s32.totalorder %s13, 0
    %p34 = por %p32, %p33
    %p35 = scmp.ne.s32.totalorder %s21, %s22
    %p36 = scmp.eq.s32.totalorder %s14, 1
    %p37 = por %p35, %p36
    %p39 = scmp.ne.s32.totalorder %s22, %s38
    %p40 = scmp.eq.s32.totalorder %s14, 0
    %p41 = por %p39, %p40
    %s43 = sadd.s32 %s42, 1
    %p46 = scmp.eq.s32.totalorder %s8, 1
    %p47 = scmp.ne.s32.totalorder %s42, %s44
    %p48 = scmp.eq.s32.totalorder %s8, 0
    %p49 = por %p47, %p48
    %p50 = scmp.ne.s32.totalorder %s42, %s44
    %p51 = scmp.eq.s32.totalorder %s13, 1
    %p52 = por %p50, %p51
    %p53 = scmp.ne.s32.totalorder %s44, %s45
    %p54 = scmp.eq.s32.totalorder %s13, 0
    %p55 = por %p53, %p54
    %p56 = scmp.ne.s32.totalorder %s44, %s45
    %p57 = scmp.eq.s32.totalorder %s14, 1
    %p58 = por %p56, %p57
    %p60 = scmp.ne.s32.totalorder %s45, %s59
    %p61 = scmp.eq.s32.totalorder %s14, 0
    %p62 = por %p60, %p61
    %s63 = ssub.s32 %s8, %s15
    %p64 = scmp.eq.s32.totalorder %s63, 0
    %s66 = sadd.s32 %s65, 1
    %s67 = scalar_select %p64, %s65, %s66
    %p70 = pneg %p64
    %p71 = scmp.eq.s32.totalorder %s8, 1
    %p72 = por %p70, %p71
    %p73 = scmp.ne.s32.totalorder %s65, %s68
    %p74 = scmp.eq.s32.totalorder %s8, 0
    %p75 = por %p73, %p74
    %p76 = scmp.ne.s32.totalorder %s65, %s68
    %p77 = scmp.eq.s32.totalorder %s13, 1
    %p78 = por %p76, %p77
    %p79 = scmp.ne.s32.totalorder %s68, %s69
    %p80 = scmp.eq.s32.totalorder %s13, 0
    %p81 = por %p79, %p80
    %p82 = scmp.ne.s32.totalorder %s68, %s69
    %p83 = scmp.eq.s32.totalorder %s14, 1
    %p84 = por %p82, %p83
    %p86 = scmp.ne.s32.totalorder %s69, %s85
    %p87 = scmp.eq.s32.totalorder %s14, 0
    %p88 = por %p86, %p87
    %p89 = scmp.le.s32.totalorder 1, %s8
    %p90 = scmp.lt.s32.totalorder %s8, 3
    %p91 = pnand %p89, %p90
    %p92 = pneg %p91
    // Predicated region
    $region9: #{densenet_forward.13} parent=5 // pred_check
      _
    $region10: #{densenet_forward.13} parent=5 // pred_check_branch
      %94 = sbr.rel (%p91) target = $region12
    $region11: #{densenet_forward.13} parent=5 // pred_region
      %s95 = ssub.s32 %s8, 1
      // Predicated region
      $region13: #{densenet_forward.13} parent=11 // pred_check
        %p96 = pneg %p55
      $region14: #{densenet_forward.13} parent=11 // pred_check_branch
        %98 = sbr.rel (%p96) target = $region16
      $region15: #{densenet_forward.13} parent=11 // pred_region
        _
      $region16: #{densenet_forward.13} parent=11 // pred_fallthru
        _
    $region12: #{densenet_forward.13} parent=5 // pred_fallthru
      _
    %p99 = scmp.lt.s32.totalorder %s8, 2
    // Predicated region
    $region17: #{densenet_forward.13} parent=5 // pred_check
      %p100 = pneg %p99
    $region18: #{densenet_forward.13} parent=5 // pred_check_branch
      %102 = sbr.rel (%p100) target = $region20
    $region19: #{densenet_forward.13} parent=5 // pred_region
      // Predicated region
      $region21: #{densenet_forward.13} parent=19 // pred_check
        %p103 = pneg %p28
      $region22: #{densenet_forward.13} parent=19 // pred_check_branch
        %105 = sbr.rel (%p103) target = $region24
      $region23: #{densenet_forward.13} parent=19 // pred_region
        %p106 = scmp.lt.s32.totalorder %s8, 1
        %s107 = scalar_select %p106, %s8, 1
        %s108 = smul.addr %s107, 14
        %s109 = smul.addr %s108, 8
        %s110 = scalar_lea.vmem %s0, %s109
      $region24: #{densenet_forward.13} parent=19 // pred_fallthru
        _
    $region20: #{densenet_forward.13} parent=5 // pred_fallthru
      _
    %p111 = scmp.le.s32.totalorder 1, %s8
    %p112 = scmp.lt.s32.totalorder %s8, 3
    %p113 = pnand %p111, %p112
    %p114 = pneg %p113
    // Predicated region
    $region25: #{densenet_forward.13} parent=5 // pred_check
      _
    $region26: #{densenet_forward.13} parent=5 // pred_check_branch
      %116 = sbr.rel (%p113) target = $region28
    $region27: #{densenet_forward.13} parent=5 // pred_region
      %s117 = ssub.s32 %s8, 1
      %p118 = scmp.lt.s32.totalorder %s13, 1
      %s119 = scalar_select %p118, %s13, 1
      %s120 = smul.addr %s119, 14
      %s121 = smul.addr %s120, 8
      %s122 = scalar_lea.vmem %s0, %s121
      %p123 = pneg %p34
      %p124 = pneg %p31
      %p125 = pneg %p55
      %p126 = pneg %p52
      %p127 = pneg %p81
      %p128 = pneg %p78
      %p129 = scmp.lt.s32.totalorder %s13, 1
      %s130 = scalar_select %p129, %s13, 1
      %s131 = smul.addr %s130, 10
      %s132 = smul.addr %s131, 8
      %s133 = scalar_lea.vmem %s2, %s132
      %p134 = scmp.lt.s32.totalorder %s13, 1
      %s135 = scalar_select %p134, %s13, 1
      %s136 = smul.addr %s135, 14
      %s137 = smul.addr %s136, 8
      %s138 = scalar_lea.vmem %s0, %s137
      %p139 = scmp.lt.s32.totalorder %s13, 1
      %s140 = scalar_select %p139, %s13, 1
      %s141 = smul.addr %s140, 10
      %s142 = smul.addr %s141, 8
      %s143 = scalar_lea.vmem %s2, %s142
      %v144 = vld [vmem:[%s138] sm:$0xff]
      %v145 = vld [vmem:[%s138 + $0x8] sm:$0xff]
      %v146 = vld [vmem:[%s138 + $0x10] sm:$0xff]
      %v147 = vld [vmem:[%s138 + $0x18] sm:$0xff]
      %v148 = vld [vmem:[%s138 + $0x20] sm:$0xff]
      %v149 = vld [vmem:[%s138 + $0x28] sm:$0xff]
      %v150 = vld [vmem:[%s138 + $0x30] sm:$0xff]
      %v151 = vld [vmem:[%s138 + $0x38] sm:$0xff]
      %v152 = vld [vmem:[%s138 + $0x40] sm:$0xff]
      %v153 = vld [vmem:[%s138 + $0x48] sm:$0xff]
      %v154 = vld [vmem:[%s1] sm:$0xff]
      %v155 = vld [vmem:[%s1 + $0x8] sm:$0xff]
      %v156 = vld [vmem:[%s138 + $0x1] sm:$0xff]
      %v157 = vld [vmem:[%s138 + $0x9] sm:$0xff]
      %v158 = vld [vmem:[%s138 + $0x11] sm:$0xff]
      %v159 = vld [vmem:[%s138 + $0x19] sm:$0xff]
      %v160 = vld [vmem:[%s138 + $0x21] sm:$0xff]
      %v161 = vld [vmem:[%s138 + $0x29] sm:$0xff]
      %v162 = vld [vmem:[%s138 + $0x31] sm:$0xff]
      %v163 = vld [vmem:[%s138 + $0x39] sm:$0xff]
      %v164 = vld [vmem:[%s138 + $0x41] sm:$0xff]
      %v165 = vld [vmem:[%s138 + $0x49] sm:$0xff]
      %s166 = scalar_lea.vmem %s1, 16
      %v167 = vld [vmem:[%s166] sm:$0xff]
      %v168 = vld [vmem:[%s166 + $0x8] sm:$0xff]
      %vm169 = vcmask 130048
      %v171 = vsel %vm169, %v156, 0
      %v174 = vsel %vm169, %v157, 0
      %v177 = vsel %vm169, %v158, 0
      %v180 = vsel %vm169, %v159, 0
      %v183 = vsel %vm169, %v160, 0
      %v186 = vsel %vm169, %v161, 0
      %v189 = vsel %vm169, %v162, 0
      %v192 = vsel %vm169, %v163, 0
      %v195 = vsel %vm169, %v164, 0
      %v198 = vsel %vm169, %v165, 0
      %200 = vmatprep.subr.mxu0 0.0
      %201 = vmatpush1.msra.mxu0 %v167
      %202 = vmatprep.subr.mxu0 0.0
      %203 = vmatpush1.msra.mxu0 %v168
      %204 = vmatprep.subr.mxu0 0.0
      %205 = vmatpush1.msra.mxu0 0.0
      %206 = vmatprep.subr.mxu0 0.0
      %207 = vmatpush1.msra.mxu0 0.0
      %208 = vmatprep.subr.mxu0 0.0
      %209 = vmatpush1.msra.mxu0 0.0
      %210 = vmatprep.subr.mxu0 0.0
      %211 = vmatpush1.msra.mxu0 0.0
      %212 = vmatprep.subr.mxu0 0.0
      %213 = vmatpush1.msra.mxu0 0.0
      %214 = vmatprep.subr.mxu0 0.0
      %215 = vmatpush1.msra.mxu0 0.0
      %216 = vmatprep.subr.mxu0 0.0
      %217 = vmatpush1.msra.mxu0 0.0
      %218 = vmatprep.subr.mxu0 0.0
      %219 = vmatpush1.msra.mxu0 0.0
      %220 = vmatprep.subr.mxu0 0.0
      %221 = vmatpush1.msra.mxu0 0.0
      %222 = vmatprep.subr.mxu0 0.0
      %223 = vmatpush1.msra.mxu0 0.0
      %224 = vmatprep.subr.mxu0 0.0
      %225 = vmatpush1.msra.mxu0 0.0
      %226 = vmatprep.subr.mxu0 0.0
      %227 = vmatpush1.msra.mxu0 0.0
      %228 = vmatprep.subr.mxu0 0.0
      %229 = vmatpush1.msra.mxu0 0.0
      %230 = vmatprep.subr.mxu0 0.0
      %231 = vmatpush1.msra.mxu0 0.0
      %232 = vmatprep.subr.mxu0 0.0
      %233 = vmatpush1.msra.mxu0 0.0
      %234 = vmatprep.subr.mxu0 0.0
      %235 = vmatpush1.msra.mxu0 0.0
      %236 = vmatprep.subr.mxu0 0.0
      %237 = vmatpush1.msra.mxu0 0.0
      %238 = vmatprep.subr.mxu0 0.0
      %239 = vmatpush1.msra.mxu0 0.0
      %240 = vmatprep.subr.mxu0 0.0
      %241 = vmatpush1.msra.mxu0 0.0
      %242 = vmatprep.subr.mxu0 0.0
      %243 = vmatpush1.msra.mxu0 0.0
      %244 = vmatprep.subr.mxu0 0.0
      %245 = vmatpush1.msra.mxu0 0.0
      %246 = vmatprep.subr.mxu0 0.0
      %247 = vmatpush1.msra.mxu0 0.0
      %248 = vmatprep.subr.mxu0 0.0
      %249 = vmatpush1.msra.mxu0 0.0
      %250 = vmatprep.subr.mxu0 0.0
      %251 = vmatpush1.msra.mxu0 0.0
      %252 = vmatprep.subr.mxu0 0.0
      %253 = vmatpush1.msra.mxu0 0.0
      %254 = vmatprep.subr.mxu0 0.0
      %255 = vmatpush1.msra.mxu0 0.0
      %256 = vmatprep.subr.mxu0 0.0
      %257 = vmatpush1.msra.mxu0 0.0
      %258 = vmatprep.subr.mxu0 0.0
      %259 = vmatpush1.msra.mxu0 0.0
      %260 = vmatprep.subr.mxu0 0.0
      %261 = vmatpush1.msra.mxu0 0.0
      %262 = vmatprep.subr.mxu0 0.0
      %263 = vmatpush1.msra.mxu0 0.0
      %264 = vmatprep.mubr.f32.mxu0 0.0
      %265 = vmatmul.mubr.f32.gmra.mrb[0].mxu0 %v171
      %v266 = vpop.f32.mrb[0].mxu0
      %v267 = vadd.f32 0.0, %v266
      %v268 = vpop.f32.mrb[0].mxu0
      %269 = vmatprep.mubr.f32.mxu0 0.0
      %270 = vmatmul.mubr.f32.gmra.mrb[0].mxu0 %v174
      %v271 = vpop.f32.mrb[0].mxu0
      %v272 = vadd.f32 0.0, %v271
      %v273 = vpop.f32.mrb[0].mxu0
      %274 = vmatprep.mubr.f32.mxu0 0.0
      %275 = vmatmul.mubr.f32.gmra.mrb[0].mxu0 %v177
      %v276 = vpop.f32.mrb[0].mxu0
      %v277 = vadd.f32 0.0, %v276
      %v278 = vpop.f32.mrb[0].mxu0
      %279 = vmatprep.mubr.f32.mxu0 0.0
      %280 = vmatmul.mubr.f32.gmra.mrb[0].mxu0 %v180
      %v281 = vpop.f32.mrb[0].mxu0
      %v282 = vadd.f32 0.0, %v281
      %v283 = vpop.f32.mrb[0].mxu0
      %284 = vmatprep.mubr.f32.mxu0 0.0
      %285 = vmatmul.mubr.f32.gmra.mrb[0].mxu0 %v183
      %v286 = vpop.f32.mrb[0].mxu0
      %v287 = vadd.f32 0.0, %v286
      %v288 = vpop.f32.mrb[0].mxu0
      %289 = vmatprep.mubr.f32.mxu0 0.0
      %290 = vmatmul.mubr.f32.gmra.mrb[0].mxu0 %v186
      %v291 = vpop.f32.mrb[0].mxu0
      %v292 = vadd.f32 0.0, %v291
      %v293 = vpop.f32.mrb[0].mxu0
      %294 = vmatprep.mubr.f32.mxu0 0.0
      %295 = vmatmul.mubr.f32.gmra.mrb[0].mxu0 %v189
      %v296 = vpop.f32.mrb[0].mxu0
      %v297 = vadd.f32 0.0, %v296
      %v298 = vpop.f32.mrb[0].mxu0
      %299 = vmatprep.mubr.f32.mxu0 0.0
      %300 = vmatmul.mubr.f32.gmra.mrb[0].mxu0 %v192
      %v301 = vpop.f32.mrb[0].mxu0
      %v302 = vadd.f32 0.0, %v301
      %v303 = vpop.f32.mrb[0].mxu0
      %304 = vmatprep.mubr.f32.mxu0 0.0
      %305 = vmatmul.mubr.f32.gmra.mrb[0].mxu0 %v195
      %v306 = vpop.f32.mrb[0].mxu0
      %v307 = vadd.f32 0.0, %v306
      %v308 = vpop.f32.mrb[0].mxu0
      %309 = vmatprep.mubr.f32.mxu0 0.0
      %310 = vmatmul.mubr.f32.gmra.mrb[0].mxu0 %v198
      %v311 = vpop.f32.mrb[0].mxu0
      %v312 = vadd.f32 0.0, %v311
      %v313 = vpop.f32.mrb[0].mxu0
      %314 = vdwg.mxu0
      %v316 = vsel %vm169, %v144, 0
      %v319 = vsel %vm169, %v145, 0
      %v322 = vsel %vm169, %v146, 0
      %v325 = vsel %vm169, %v147, 0
      %v328 = vsel %vm169, %v148, 0
      %v331 = vsel %vm169, %v149, 0
      %v334 = vsel %vm169, %v150, 0
      %v337 = vsel %vm169, %v151, 0
      %v340 = vsel %vm169, %v152, 0
      %v343 = vsel %vm169, %v153, 0
      %345 = vmatprep.subr.mxu0 0.0
      %346 = vmatpush1.msra.mxu0 %v154
      %347 = vmatprep.subr.mxu0 0.0
      %348 = vmatpush1.msra.mxu0 %v155
      %349 = vmatprep.subr.mxu0 0.0
      %350 = vmatpush1.msra.mxu0 0.0
      %351 = vmatprep.subr.mxu0 0.0
      %352 = vmatpush1.msra.mxu0 0.0
      %353 = vmatprep.subr.mxu0 0.0
      %354 = vmatpush1.msra.mxu0 0.0
      %355 = vmatprep.subr.mxu0 0.0
      %356 = vmatpush1.msra.mxu0 0.0
      %357 = vmatprep.subr.mxu0 0.0
      %358 = vmatpush1.msra.mxu0 0.0
      %359 = vmatprep.subr.mxu0 0.0
      %360 = vmatpush1.msra.mxu0 0.0
      %361 = vmatprep.subr.mxu0 0.0
      %362 = vmatpush1.msra.mxu0 0.0
      %363 = vmatprep.subr.mxu0 0.0
      %364 = vmatpush1.msra.mxu0 0.0
      %365 = vmatprep.subr.mxu0 0.0
      %366 = vmatpush1.msra.mxu0 0.0
      %367 = vmatprep.subr.mxu0 0.0
      %368 = vmatpush1.msra.mxu0 0.0
      %369 = vmatprep.subr.mxu0 0.0
      %370 = vmatpush1.msra.mxu0 0.0
      %371 = vmatprep.subr.mxu0 0.0
      %372 = vmatpush1.msra.mxu0 0.0
      %373 = vmatprep.subr.mxu0 0.0
      %374 = vmatpush1.msra.mxu0 0.0
      %375 = vmatprep.subr.mxu0 0.0
      %376 = vmatpush1.msra.mxu0 0.0
      %377 = vmatprep.subr.mxu0 0.0
      %378 = vmatpush1.msra.mxu0 0.0
      %379 = vmatprep.subr.mxu0 0.0
      %380 = vmatpush1.msra.mxu0 0.0
      %381 = vmatprep.subr.mxu0 0.0
      %382 = vmatpush1.msra.mxu0 0.0
      %383 = vmatprep.subr.mxu0 0.0
      %384 = vmatpush1.msra.mxu0 0.0
      %385 = vmatprep.subr.mxu0 0.0
      %386 = vmatpush1.msra.mxu0 0.0
      %387 = vmatprep.subr.mxu0 0.0
      %388 = vmatpush1.msra.mxu0 0.0
      %389 = vmatprep.subr.mxu0 0.0
      %390 = vmatpush1.msra.mxu0 0.0
      %391 = vmatprep.subr.mxu0 0.0
      %392 = vmatpush1.msra.mxu0 0.0
      %393 = vmatprep.subr.mxu0 0.0
      %394 = vmatpush1.msra.mxu0 0.0
      %395 = vmatprep.subr.mxu0 0.0
      %396 = vmatpush1.msra.mxu0 0.0
      %397 = vmatprep.subr.mxu0 0.0
      %398 = vmatpush1.msra.mxu0 0.0
      %399 = vmatprep.subr.mxu0 0.0
      %400 = vmatpush1.msra.mxu0 0.0
      %401 = vmatprep.subr.mxu0 0.0
      %402 = vmatpush1.msra.mxu0 0.0
      %403 = vmatprep.subr.mxu0 0.0
      %404 = vmatpush1.msra.mxu0 0.0
      %405 = vmatprep.subr.mxu0 0.0
      %406 = vmatpush1.msra.mxu0 0.0
      %407 = vmatprep.subr.mxu0 0.0
      %408 = vmatpush1.msra.mxu0 0.0
      %409 = vmatprep.mubr.f32.mxu0 0.0
      %410 = vmatmul.mubr.f32.gmra.mrb[0].mxu0 %v316
      %v411 = vpop.f32.mrb[0].mxu0
      %v412 = vadd.f32 %v267, %v411
      %v413 = vpop.f32.mrb[0].mxu0
      %414 = vmatprep.mubr.f32.mxu0 0.0
      %415 = vmatmul.mubr.f32.gmra.mrb[0].mxu0 %v319
      %v416 = vpop.f32.mrb[0].mxu0
      %v417 = vadd.f32 %v272, %v416
      %v418 = vpop.f32.mrb[0].mxu0
      %419 = vmatprep.mubr.f32.mxu0 0.0
      %420 = vmatmul.mubr.f32.gmra.mrb[0].mxu0 %v322
      %v421 = vpop.f32.mrb[0].mxu0
      %v422 = vadd.f32 %v277, %v421
      %v423 = vpop.f32.mrb[0].mxu0
      %424 = vmatprep.mubr.f32.mxu0 0.0
      %425 = vmatmul.mubr.f32.gmra.mrb[0].mxu0 %v325
      %v426 = vpop.f32.mrb[0].mxu0
      %v427 = vadd.f32 %v282, %v426
      %v428 = vpop.f32.mrb[0].mxu0
      %429 = vmatprep.mubr.f32.mxu0 0.0
      %430 = vmatmul.mubr.f32.gmra.mrb[0].mxu0 %v328
      %v431 = vpop.f32.mrb[0].mxu0
      %v432 = vadd.f32 %v287, %v431
      %v433 = vpop.f32.mrb[0].mxu0
      %434 = vmatprep.mubr.f32.mxu0 0.0
      %435 = vmatmul.mubr.f32.gmra.mrb[0].mxu0 %v331
      %v436 = vpop.f32.mrb[0].mxu0
      %v437 = vadd.f32 %v292, %v436
      %v438 = vpop.f32.mrb[0].mxu0
      %439 = vmatprep.mubr.f32.mxu0 0.0
      %440 = vmatmul.mubr.f32.gmra.mrb[0].mxu0 %v334
      %v441 = vpop.f32.mrb[0].mxu0
      %v442 = vadd.f32 %v297, %v441
      %v443 = vpop.f32.mrb[0].mxu0
      %444 = vmatprep.mubr.f32.mxu0 0.0
      %445 = vmatmul.mubr.f32.gmra.mrb[0].mxu0 %v337
      %v446 = vpop.f32.mrb[0].mxu0
      %v447 = vadd.f32 %v302, %v446
      %v448 = vpop.f32.mrb[0].mxu0
      %449 = vmatprep.mubr.f32.mxu0 0.0
      %450 = vmatmul.mubr.f32.gmra.mrb[0].mxu0 %v340
      %v451 = vpop.f32.mrb[0].mxu0
      %v452 = vadd.f32 %v307, %v451
      %v453 = vpop.f32.mrb[0].mxu0
      %454 = vmatprep.mubr.f32.mxu0 0.0
      %455 = vmatmul.mubr.f32.gmra.mrb[0].mxu0 %v343
      %v456 = vpop.f32.mrb[0].mxu0
      %v457 = vadd.f32 %v312, %v456
      %v458 = vpop.f32.mrb[0].mxu0
      %459 = vdwg.mxu0
      %v460 = vld [vmem:[%s138 + $0x2] sm:$0xff]
      %v461 = vld [vmem:[%s138 + $0xa] sm:$0xff]
      %v462 = vld [vmem:[%s138 + $0x12] sm:$0xff]
      %v463 = vld [vmem:[%s138 + $0x1a] sm:$0xff]
      %v464 = vld [vmem:[%s138 + $0x22] sm:$0xff]
      %v465 = vld [vmem:[%s138 + $0x2a] sm:$0xff]
      %v466 = vld [vmem:[%s138 + $0x32] sm:$0xff]
      %v467 = vld [vmem:[%s138 + $0x3a] sm:$0xff]
      %v468 = vld [vmem:[%s138 + $0x42] sm:$0xff]
      %v469 = vld [vmem:[%s138 + $0x4a] sm:$0xff]
      %s470 = scalar_lea.vmem %s1, 32
      %v471 = vld [vmem:[%s470] sm:$0xff]
      %v472 = vld [vmem:[%s470 + $0x8] sm:$0xff]
      %v474 = vsel %vm169, %v460, 0
      %v477 = vsel %vm169, %v461, 0
      %v480 = vsel %vm169, %v462, 0
      %v483 = vsel %vm169, %v463, 0
      %v486 = vsel %vm169, %v464, 0
      %v489 = vsel %vm169, %v465, 0
      %v492 = vsel %vm169, %v466, 0
      %v495 = vsel %vm169, %v467, 0
      %v498 = vsel %vm169, %v468, 0
      %v501 = vsel %vm169, %v469, 0
      %503 = vmatprep.subr.mxu0 0.0
      %504 = vmatpush1.msra.mxu0 %v471
      %505 = vmatprep.subr.mxu0 0.0
      %506 = vmatpush1.msra.mxu0 %v472
      %507 = vmatprep.subr.mxu0 0.0
      %508 = vmatpush1.msra.mxu0 0.0
      %509 = vmatprep.subr.mxu0 0.0
      %510 = vmatpush1.msra.mxu0 0.0
      %511 = vmatprep.subr.mxu0 0.0
      %512 = vmatpush1.msra.mxu0 0.0
      %513 = vmatprep.subr.mxu0 0.0
      %514 = vmatpush1.msra.mxu0 0.0
      %515 = vmatprep.subr.mxu0 0.0
      %516 = vmatpush1.msra.mxu0 0.0
      %517 = vmatprep.subr.mxu0 0.0
      %518 = vmatpush1.msra.mxu0 0.0
      %519 = vmatprep.subr.mxu0 0.0
      %520 = vmatpush1.msra.mxu0 0.0
      %521 = vmatprep.subr.mxu0 0.0
      %522 = vmatpush1.msra.mxu0 0.0
      %523 = vmatprep.subr.mxu0 0.0
      %524 = vmatpush1.msra.mxu0 0.0
      %525 = vmatprep.subr.mxu0 0.0
      %526 = vmatpush1.msra.mxu0 0.0
      %527 = vmatprep.subr.mxu0 0.0
      %528 = vmatpush1.msra.mxu0 0.0
      %529 = vmatprep.subr.mxu0 0.0
      %530 = vmatpush1.msra.mxu0 0.0
      %531 = vmatprep.subr.mxu0 0.0
      %532 = vmatpush1.msra.mxu0 0.0
      %533 = vmatprep.subr.mxu0 0.0
      %534 = vmatpush1.msra.mxu0 0.0
      %535 = vmatprep.subr.mxu0 0.0
      %536 = vmatpush1.msra.mxu0 0.0
      %537 = vmatprep.subr.mxu0 0.0
      %538 = vmatpush1.msra.mxu0 0.0
      %539 = vmatprep.subr.mxu0 0.0
      %540 = vmatpush1.msra.mxu0 0.0
      %541 = vmatprep.subr.mxu0 0.0
      %542 = vmatpush1.msra.mxu0 0.0
      %543 = vmatprep.subr.mxu0 0.0
      %544 = vmatpush1.msra.mxu0 0.0
      %545 = vmatprep.subr.mxu0 0.0
      %546 = vmatpush1.msra.mxu0 0.0
      %547 = vmatprep.subr.mxu0 0.0
      %548 = vmatpush1.msra.mxu0 0.0
      %549 = vmatprep.subr.mxu0 0.0
      %550 = vmatpush1.msra.mxu0 0.0
      %551 = vmatprep.subr.mxu0 0.0
      %552 = vmatpush1.msra.mxu0 0.0
      %553 = vmatprep.subr.mxu0 0.0
      %554 = vmatpush1.msra.mxu0 0.0
      %555 = vmatprep.subr.mxu0 0.0
      %556 = vmatpush1.msra.mxu0 0.0
      %557 = vmatprep.subr.mxu0 0.0
      %558 = vmatpush1.msra.mxu0 0.0
      %559 = vmatprep.subr.mxu0 0.0
      %560 = vmatpush1.msra.mxu0 0.0
      %561 = vmatprep.subr.mxu0 0.0
      %562 = vmatpush1.msra.mxu0 0.0
      %563 = vmatprep.subr.mxu0 0.0
      %564 = vmatpush1.msra.mxu0 0.0
      %565 = vmatprep.subr.mxu0 0.0
      %566 = vmatpush1.msra.mxu0 0.0
      %567 = vmatprep.mubr.f32.mxu0 0.0
      %568 = vmatmul.mubr.f32.gmra.mrb[0].mxu0 %v474
      %v569 = vpop.f32.mrb[0].mxu0
      %v570 = vadd.f32 0.0, %v569
      %v571 = vpop.f32.mrb[0].mxu0
      %572 = vmatprep.mubr.f32.mxu0 0.0
      %573 = vmatmul.mubr.f32.gmra.mrb[0].mxu0 %v477
      %v574 = vpop.f32.mrb[0].mxu0
      %v575 = vadd.f32 0.0, %v574
      %v576 = vpop.f32.mrb[0].mxu0
      %577 = vmatprep.mubr.f32.mxu0 0.0
      %578 = vmatmul.mubr.f32.gmra.mrb[0].mxu0 %v480
      %v579 = vpop.f32.mrb[0].mxu0
      %v580 = vadd.f32 0.0, %v579
      %v581 = vpop.f32.mrb[0].mxu0
      %582 = vmatprep.mubr.f32.mxu0 0.0
      %583 = vmatmul.mubr.f32.gmra.mrb[0].mxu0 %v483
      %v584 = vpop.f32.mrb[0].mxu0
      %v585 = vadd.f32 0.0, %v584
      %v586 = vpop.f32.mrb[0].mxu0
      %587 = vmatprep.mubr.f32.mxu0 0.0
      %588 = vmatmul.mubr.f32.gmra.mrb[0].mxu0 %v486
      %v589 = vpop.f32.mrb[0].mxu0
      %v590 = vadd.f32 0.0, %v589
      %v591 = vpop.f32.mrb[0].mxu0
      %592 = vmatprep.mubr.f32.mxu0 0.0
      %593 = vmatmul.mubr.f32.gmra.mrb[0].mxu0 %v489
      %v594 = vpop.f32.mrb[0].mxu0
      %v595 = vadd.f32 0.0, %v594
      %v596 = vpop.f32.mrb[0].mxu0
      %597 = vmatprep.mubr.f32.mxu0 0.0
      %598 = vmatmul.mubr.f32.gmra.mrb[0].mxu0 %v492
      %v599 = vpop.f32.mrb[0].mxu0
      %v600 = vadd.f32 0.0, %v599
      %v601 = vpop.f32.mrb[0].mxu0
      %602 = vmatprep.mubr.f32.mxu0 0.0
      %603 = vmatmul.mubr.f32.gmra.mrb[0].mxu0 %v495
      %v604 = vpop.f32.mrb[0].mxu0
      %v605 = vadd.f32 0.0, %v604
      %v606 = vpop.f32.mrb[0].mxu0
      %607 = vmatprep.mubr.f32.mxu0 0.0
      %608 = vmatmul.mubr.f32.gmra.mrb[0].mxu0 %v498
      %v609 = vpop.f32.mrb[0].mxu0
      %v610 = vadd.f32 0.0, %v609
      %v611 = vpop.f32.mrb[0].mxu0
      %612 = vmatprep.mubr.f32.mxu0 0.0
      %613 = vmatmul.mubr.f32.gmra.mrb[0].mxu0 %v501
      %v614 = vpop.f32.mrb[0].mxu0
      %v615 = vadd.f32 0.0, %v614
      %v616 = vpop.f32.mrb[0].mxu0
      %617 = vdwg.mxu0
      %v618 = vadd.f32 %v412, %v570
      %v619 = vadd.f32 %v417, %v575
      %v620 = vadd.f32 %v422, %v580
      %v621 = vadd.f32 %v427, %v585
      %v622 = vadd.f32 %v432, %v590
      %v623 = vadd.f32 %v437, %v595
      %v624 = vadd.f32 %v442, %v600
      %v625 = vadd.f32 %v447, %v605
      %v626 = vadd.f32 %v452, %v610
      %v627 = vadd.f32 %v457, %v615
      %v628 = vld [vmem:[%s138 + $0xa] sm:$0xff]
      %v629 = vld [vmem:[%s138 + $0x12] sm:$0xff]
      %v630 = vld [vmem:[%s138 + $0x1a] sm:$0xff]
      %v631 = vld [vmem:[%s138 + $0x22] sm:$0xff]
      %v632 = vld [vmem:[%s138 + $0x2a] sm:$0xff]
      %v633 = vld [vmem:[%s138 + $0x32] sm:$0xff]
      %v634 = vld [vmem:[%s138 + $0x3a] sm:$0xff]
      %v635 = vld [vmem:[%s138 + $0x42] sm:$0xff]
      %v636 = vld [vmem:[%s138 + $0x4a] sm:$0xff]
      %v637 = vld [vmem:[%s138 + $0x52] sm:$0xff]
      %s638 = scalar_lea.vmem %s1, 48
      %v639 = vld [vmem:[%s638] sm:$0xff]
      %v640 = vld [vmem:[%s638 + $0x8] sm:$0xff]
      %v642 = vsel %vm169, %v628, 0
      %v645 = vsel %vm169, %v629, 0
      %v648 = vsel %vm169, %v630, 0
      %v651 = vsel %vm169, %v631, 0
      %v654 = vsel %vm169, %v632, 0
      %v657 = vsel %vm169, %v633, 0
      %v660 = vsel %vm169, %v634, 0
      %v663 = vsel %vm169, %v635, 0
      %v666 = vsel %vm169, %v636, 0
      %v669 = vsel %vm169, %v637, 0
      %671 = vmatprep.subr.mxu0 0.0
      %672 = vmatpush1.msra.mxu0 %v639
      %673 = vmatprep.subr.mxu0 0.0
      %674 = vmatpush1.msra.mxu0 %v640
      %675 = vmatprep.subr.mxu0 0.0
      %676 = vmatpush1.msra.mxu0 0.0
      %677 = vmatprep.subr.mxu0 0.0
      %678 = vmatpush1.msra.mxu0 0.0
      %679 = vmatprep.subr.mxu0 0.0
      %680 = vmatpush1.msra.mxu0 0.0
      %681 = vmatprep.subr.mxu0 0.0
      %682 = vmatpush1.msra.mxu0 0.0
      %683 = vmatprep.subr.mxu0 0.0
      %684 = vmatpush1.msra.mxu0 0.0
      %685 = vmatprep.subr.mxu0 0.0
      %686 = vmatpush1.msra.mxu0 0.0
      %687 = vmatprep.subr.mxu0 0.0
      %688 = vmatpush1.msra.mxu0 0.0
      %689 = vmatprep.subr.mxu0 0.0
      %690 = vmatpush1.msra.mxu0 0.0
      %691 = vmatprep.subr.mxu0 0.0
      %692 = vmatpush1.msra.mxu0 0.0
      %693 = vmatprep.subr.mxu0 0.0
      %694 = vmatpush1.msra.mxu0 0.0
      %695 = vmatprep.subr.mxu0 0.0
      %696 = vmatpush1.msra.mxu0 0.0
      %697 = vmatprep.subr.mxu0 0.0
      %698 = vmatpush1.msra.mxu0 0.0
      %699 = vmatprep.subr.mxu0 0.0
      %700 = vmatpush1.msra.mxu0 0.0
      %701 = vmatprep.subr.mxu0 0.0
      %702 = vmatpush1.msra.mxu0 0.0
      %703 = vmatprep.subr.mxu0 0.0
      %704 = vmatpush1.msra.mxu0 0.0
      %705 = vmatprep.subr.mxu0 0.0
      %706 = vmatpush1.msra.mxu0 0.0
      %707 = vmatprep.subr.mxu0 0.0
      %708 = vmatpush1.msra.mxu0 0.0
      %709 = vmatprep.subr.mxu0 0.0
      %710 = vmatpush1.msra.mxu0 0.0
      %711 = vmatprep.subr.mxu0 0.0
      %712 = vmatpush1.msra.mxu0 0.0
      %713 = vmatprep.subr.mxu0 0.0
      %714 = vmatpush1.msra.mxu0 0.0
      %715 = vmatprep.subr.mxu0 0.0
      %716 = vmatpush1.msra.mxu0 0.0
      %717 = vmatprep.subr.mxu0 0.0
      %718 = vmatpush1.msra.mxu0 0.0
      %719 = vmatprep.subr.mxu0 0.0
      %720 = vmatpush1.msra.mxu0 0.0
      %721 = vmatprep.subr.mxu0 0.0
      %722 = vmatpush1.msra.mxu0 0.0
      %723 = vmatprep.subr.mxu0 0.0
      %724 = vmatpush1.msra.mxu0 0.0
      %725 = vmatprep.subr.mxu0 0.0
      %726 = vmatpush1.msra.mxu0 0.0
      %727 = vmatprep.subr.mxu0 0.0
      %728 = vmatpush1.msra.mxu0 0.0
      %729 = vmatprep.subr.mxu0 0.0
      %730 = vmatpush1.msra.mxu0 0.0
      %731 = vmatprep.subr.mxu0 0.0
      %732 = vmatpush1.msra.mxu0 0.0
      %733 = vmatprep.subr.mxu0 0.0
      %734 = vmatpush1.msra.mxu0 0.0
      %735 = vmatprep.mubr.f32.mxu0 0.0
      %736 = vmatmul.mubr.f32.gmra.mrb[0].mxu0 %v642
      %v737 = vpop.f32.mrb[0].mxu0
      %v738 = vadd.f32 0.0, %v737
      %v739 = vpop.f32.mrb[0].mxu0
      %740 = vmatprep.mubr.f32.mxu0 0.0
      %741 = vmatmul.mubr.f32.gmra.mrb[0].mxu0 %v645
      %v742 = vpop.f32.mrb[0].mxu0
      %v743 = vadd.f32 0.0, %v742
      %v744 = vpop.f32.mrb[0].mxu0
      %745 = vmatprep.mubr.f32.mxu0 0.0
      %746 = vmatmul.mubr.f32.gmra.mrb[0].mxu0 %v648
      %v747 = vpop.f32.mrb[0].mxu0
      %v748 = vadd.f32 0.0, %v747
      %v749 = vpop.f32.mrb[0].mxu0
      %750 = vmatprep.mubr.f32.mxu0 0.0
      %751 = vmatmul.mubr.f32.gmra.mrb[0].mxu0 %v651
      %v752 = vpop.f32.mrb[0].mxu0
      %v753 = vadd.f32 0.0, %v752
      %v754 = vpop.f32.mrb[0].mxu0
      %755 = vmatprep.mubr.f32.mxu0 0.0
      %756 = vmatmul.mubr.f32.gmra.mrb[0].mxu0 %v654
      %v757 = vpop.f32.mrb[0].mxu0
      %v758 = vadd.f32 0.0, %v757
      %v759 = vpop.f32.mrb[0].mxu0
      %760 = vmatprep.mubr.f32.mxu0 0.0
      %761 = vmatmul.mubr.f32.gmra.mrb[0].mxu0 %v657
      %v762 = vpop.f32.mrb[0].mxu0
      %v763 = vadd.f32 0.0, %v762
      %v764 = vpop.f32.mrb[0].mxu0
      %765 = vmatprep.mubr.f32.mxu0 0.0
      %766 = vmatmul.mubr.f32.gmra.mrb[0].mxu0 %v660
      %v767 = vpop.f32.mrb[0].mxu0
      %v768 = vadd.f32 0.0, %v767
      %v769 = vpop.f32.mrb[0].mxu0
      %770 = vmatprep.mubr.f32.mxu0 0.0
      %771 = vmatmul.mubr.f32.gmra.mrb[0].mxu0 %v663
      %v772 = vpop.f32.mrb[0].mxu0
      %v773 = vadd.f32 0.0, %v772
      %v774 = vpop.f32.mrb[0].mxu0
      %775 = vmatprep.mubr.f32.mxu0 0.0
      %776 = vmatmul.mubr.f32.gmra.mrb[0].mxu0 %v666
      %v777 = vpop.f32.mrb[0].mxu0
      %v778 = vadd.f32 0.0, %v777
      %v779 = vpop.f32.mrb[0].mxu0
      %780 = vmatprep.mubr.f32.mxu0 0.0
      %781 = vmatmul.mubr.f32.gmra.mrb[0].mxu0 %v669
      %v782 = vpop.f32.mrb[0].mxu0
      %v783 = vadd.f32 0.0, %v782
      %v784 = vpop.f32.mrb[0].mxu0
      %785 = vdwg.mxu0
      %v786 = vadd.f32 %v618, %v738
      %v787 = vadd.f32 %v619, %v743
      %v788 = vadd.f32 %v620, %v748
      %v789 = vadd.f32 %v621, %v753
      %v790 = vadd.f32 %v622, %v758
      %v791 = vadd.f32 %v623, %v763
      %v792 = vadd.f32 %v624, %v768
      %v793 = vadd.f32 %v625, %v773
      %v794 = vadd.f32 %v626, %v778
      %v795 = vadd.f32 %v627, %v783
      %v796 = vld [vmem:[%s138 + $0xb] sm:$0xff]
      %v797 = vld [vmem:[%s138 + $0x13] sm:$0xff]
      %v798 = vld [vmem:[%s138 + $0x1b] sm:$0xff]
      %v799 = vld [vmem:[%s138 + $0x23] sm:$0xff]
      %v800 = vld [vmem:[%s138 + $0x2b] sm:$0xff]
      %v801 = vld [vmem:[%s138 + $0x33] sm:$0xff]
      %v802 = vld [vmem:[%s138 + $0x3b] sm:$0xff]
      %v803 = vld [vmem:[%s138 + $0x43] sm:$0xff]
      %v804 = vld [vmem:[%s138 + $0x4b] sm:$0xff]
      %v805 = vld [vmem:[%s138 + $0x53] sm:$0xff]
      %s806 = scalar_lea.vmem %s1, 64
      %v807 = vld [vmem:[%s806] sm:$0xff]
      %v808 = vld [vmem:[%s806 + $0x8] sm:$0xff]
      %v810 = vsel %vm169, %v796, 0
      %v813 = vsel %vm169, %v797, 0
      %v816 = vsel %vm169, %v798, 0
      %v819 = vsel %vm169, %v799, 0
      %v822 = vsel %vm169, %v800, 0
      %v825 = vsel %vm169, %v801, 0
      %v828 = vsel %vm169, %v802, 0
      %v831 = vsel %vm169, %v803, 0
      %v834 = vsel %vm169, %v804, 0
      %v837 = vsel %vm169, %v805, 0
      %839 = vmatprep.subr.mxu0 0.0
      %840 = vmatpush1.msra.mxu0 %v807
      %841 = vmatprep.subr.mxu0 0.0
      %842 = vmatpush1.msra.mxu0 %v808
      %843 = vmatprep.subr.mxu0 0.0
      %844 = vmatpush1.msra.mxu0 0.0
      %845 = vmatprep.subr.mxu0 0.0
      %846 = vmatpush1.msra.mxu0 0.0
      %847 = vmatprep.subr.mxu0 0.0
      %848 = vmatpush1.msra.mxu0 0.0
      %849 = vmatprep.subr.mxu0 0.0
      %850 = vmatpush1.msra.mxu0 0.0
      %851 = vmatprep.subr.mxu0 0.0
      %852 = vmatpush1.msra.mxu0 0.0
      %853 = vmatprep.subr.mxu0 0.0
      %854 = vmatpush1.msra.mxu0 0.0
      %855 = vmatprep.subr.mxu0 0.0
      %856 = vmatpush1.msra.mxu0 0.0
      %857 = vmatprep.subr.mxu0 0.0
      %858 = vmatpush1.msra.mxu0 0.0
      %859 = vmatprep.subr.mxu0 0.0
      %860 = vmatpush1.msra.mxu0 0.0
      %861 = vmatprep.subr.mxu0 0.0
      %862 = vmatpush1.msra.mxu0 0.0
      %863 = vmatprep.subr.mxu0 0.0
      %864 = vmatpush1.msra.mxu0 0.0
      %865 = vmatprep.subr.mxu0 0.0
      %866 = vmatpush1.msra.mxu0 0.0
      %867 = vmatprep.subr.mxu0 0.0
      %868 = vmatpush1.msra.mxu0 0.0
      %869 = vmatprep.subr.mxu0 0.0
      %870 = vmatpush1.msra.mxu0 0.0
      %871 = vmatprep.subr.mxu0 0.0
      %872 = vmatpush1.msra.mxu0 0.0
      %873 = vmatprep.subr.mxu0 0.0
      %874 = vmatpush1.msra.mxu0 0.0
      %875 = vmatprep.subr.mxu0 0.0
      %876 = vmatpush1.msra.mxu0 0.0
      %877 = vmatprep.subr.mxu0 0.0
      %878 = vmatpush1.msra.mxu0 0.0
      %879 = vmatprep.subr.mxu0 0.0
      %880 = vmatpush1.msra.mxu0 0.0
      %881 = vmatprep.subr.mxu0 0.0
      %882 = vmatpush1.msra.mxu0 0.0
      %883 = vmatprep.subr.mxu0 0.0
      %884 = vmatpush1.msra.mxu0 0.0
      %885 = vmatprep.subr.mxu0 0.0
      %886 = vmatpush1.msra.mxu0 0.0
      %887 = vmatprep.subr.mxu0 0.0
      %888 = vmatpush1.msra.mxu0 0.0
      %889 = vmatprep.subr.mxu0 0.0
      %890 = vmatpush1.msra.mxu0 0.0
      %891 = vmatprep.subr.mxu0 0.0
      %892 = vmatpush1.msra.mxu0 0.0
      %893 = vmatprep.subr.mxu0 0.0
      %894 = vmatpush1.msra.mxu0 0.0
      %895 = vmatprep.subr.mxu0 0.0
      %896 = vmatpush1.msra.mxu0 0.0
      %897 = vmatprep.subr.mxu0 0.0
      %898 = vmatpush1.msra.mxu0 0.0
      %899 = vmatprep.subr.mxu0 0.0
      %900 = vmatpush1.msra.mxu0 0.0
      %901 = vmatprep.subr.mxu0 0.0
      %902 = vmatpush1.msra.mxu0 0.0
      %903 = vmatprep.mubr.f32.mxu0 0.0
      %904 = vmatmul.mubr.f32.gmra.mrb[0].mxu0 %v810
      %v905 = vpop.f32.mrb[0].mxu0
      %v906 = vadd.f32 0.0, %v905
      %v907 = vpop.f32.mrb[0].mxu0
      %908 = vmatprep.mubr.f32.mxu0 0.0
      %909 = vmatmul.mubr.f32.gmra.mrb[0].mxu0 %v813
      %v910 = vpop.f32.mrb[0].mxu0
      %v911 = vadd.f32 0.0, %v910
      %v912 = vpop.f32.mrb[0].mxu0
      %913 = vmatprep.mubr.f32.mxu0 0.0
      %914 = vmatmul.mubr.f32.gmra.mrb[0].mxu0 %v816
      %v915 = vpop.f32.mrb[0].mxu0
      %v916 = vadd.f32 0.0, %v915
      %v917 = vpop.f32.mrb[0].mxu0
      %918 = vmatprep.mubr.f32.mxu0 0.0
      %919 = vmatmul.mubr.f32.gmra.mrb[0].mxu0 %v819
      %v920 = vpop.f32.mrb[0].mxu0
      %v921 = vadd.f32 0.0, %v920
      %v922 = vpop.f32.mrb[0].mxu0
      %923 = vmatprep.mubr.f32.mxu0 0.0
      %924 = vmatmul.mubr.f32.gmra.mrb[0].mxu0 %v822
      %v925 = vpop.f32.mrb[0].mxu0
      %v926 = vadd.f32 0.0, %v925
      %v927 = vpop.f32.mrb[0].mxu0
      %928 = vmatprep.mubr.f32.mxu0 0.0
      %929 = vmatmul.mubr.f32.gmra.mrb[0].mxu0 %v825
      %v930 = vpop.f32.mrb[0].mxu0
      %v931 = vadd.f32 0.0, %v930
      %v932 = vpop.f32.mrb[0].mxu0
      %933 = vmatprep.mubr.f32.mxu0 0.0
      %934 = vmatmul.mubr.f32.gmra.mrb[0].mxu0 %v828
      %v935 = vpop.f32.mrb[0].mxu0
      %v936 = vadd.f32 0.0, %v935
      %v937 = vpop.f32.mrb[0].mxu0
      %938 = vmatprep.mubr.f32.mxu0 0.0
      %939 = vmatmul.mubr.f32.gmra.mrb[0].mxu0 %v831
      %v940 = vpop.f32.mrb[0].mxu0
      %v941 = vadd.f32 0.0, %v940
      %v942 = vpop.f32.mrb[0].mxu0
      %943 = vmatprep.mubr.f32.mxu0 0.0
      %944 = vmatmul.mubr.f32.gmra.mrb[0].mxu0 %v834
      %v945 = vpop.f32.mrb[0].mxu0
      %v946 = vadd.f32 0.0, %v945
      %v947 = vpop.f32.mrb[0].mxu0
      %948 = vmatprep.mubr.f32.mxu0 0.0
      %949 = vmatmul.mubr.f32.gmra.mrb[0].mxu0 %v837
      %v950 = vpop.f32.mrb[0].mxu0
      %v951 = vadd.f32 0.0, %v950
      %v952 = vpop.f32.mrb[0].mxu0
      %953 = vdwg.mxu0
      %v954 = vadd.f32 %v786, %v906
      %v955 = vadd.f32 %v787, %v911
      %v956 = vadd.f32 %v788, %v916
      %v957 = vadd.f32 %v789, %v921
      %v958 = vadd.f32 %v790, %v926
      %v959 = vadd.f32 %v791, %v931
      %v960 = vadd.f32 %v792, %v936
      %v961 = vadd.f32 %v793, %v941
      %v962 = vadd.f32 %v794, %v946
      %v963 = vadd.f32 %v795, %v951
      %v964 = vld [vmem:[%s138 + $0xc] sm:$0xff]
      %v965 = vld [vmem:[%s138 + $0x14] sm:$0xff]
      %v966 = vld [vmem:[%s138 + $0x1c] sm:$0xff]
      %v967 = vld [vmem:[%s138 + $0x24] sm:$0xff]
      %v968 = vld [vmem:[%s138 + $0x2c] sm:$0xff]
      %v969 = vld [vmem:[%s138 + $0x34] sm:$0xff]
      %v970 = vld [vmem:[%s138 + $0x3c] sm:$0xff]
      %v971 = vld [vmem:[%s138 + $0x44] sm:$0xff]
      %v972 = vld [vmem:[%s138 + $0x4c] sm:$0xff]
      %v973 = vld [vmem:[%s138 + $0x54] sm:$0xff]
      %s974 = scalar_lea.vmem %s1, 80
      %v975 = vld [vmem:[%s974] sm:$0xff]
      %v976 = vld [vmem:[%s974 + $0x8] sm:$0xff]
      %v978 = vsel %vm169, %v964, 0
      %v981 = vsel %vm169, %v965, 0
      %v984 = vsel %vm169, %v966, 0
      %v987 = vsel %vm169, %v967, 0
      %v990 = vsel %vm169, %v968, 0
      %v993 = vsel %vm169, %v969, 0
      %v996 = vsel %vm169, %v970, 0
      %v999 = vsel %vm169, %v971, 0
      %v1002 = vsel %vm169, %v972, 0
      %v1005 = vsel %vm169, %v973, 0
      %1007 = vmatprep.subr.mxu0 0.0
      %1008 = vmatpush1.msra.mxu0 %v975
      %1009 = vmatprep.subr.mxu0 0.0
      %1010 = vmatpush1.msra.mxu0 %v976
      %1011 = vmatprep.subr.mxu0 0.0
      %1012 = vmatpush1.msra.mxu0 0.0
      %1013 = vmatprep.subr.mxu0 0.0
      %1014 = vmatpush1.msra.mxu0 0.0
      %1015 = vmatprep.subr.mxu0 0.0
      %1016 = vmatpush1.msra.mxu0 0.0
      %1017 = vmatprep.subr.mxu0 0.0
      %1018 = vmatpush1.msra.mxu0 0.0
      %1019 = vmatprep.subr.mxu0 0.0
      %1020 = vmatpush1.msra.mxu0 0.0
      %1021 = vmatprep.subr.mxu0 0.0
      %1022 = vmatpush1.msra.mxu0 0.0
      %1023 = vmatprep.subr.mxu0 0.0
      %1024 = vmatpush1.msra.mxu0 0.0
      %1025 = vmatprep.subr.mxu0 0.0
      %1026 = vmatpush1.msra.mxu0 0.0
      %1027 = vmatprep.subr.mxu0 0.0
      %1028 = vmatpush1.msra.mxu0 0.0
      %1029 = vmatprep.subr.mxu0 0.0
      %1030 = vmatpush1.msra.mxu0 0.0
      %1031 = vmatprep.subr.mxu0 0.0
      %1032 = vmatpush1.msra.mxu0 0.0
      %1033 = vmatprep.subr.mxu0 0.0
      %1034 = vmatpush1.msra.mxu0 0.0
      %1035 = vmatprep.subr.mxu0 0.0
      %1036 = vmatpush1.msra.mxu0 0.0
      %1037 = vmatprep.subr.mxu0 0.0
      %1038 = vmatpush1.msra.mxu0 0.0
      %1039 = vmatprep.subr.mxu0 0.0
      %1040 = vmatpush1.msra.mxu0 0.0
      %1041 = vmatprep.subr.mxu0 0.0
      %1042 = vmatpush1.msra.mxu0 0.0
      %1043 = vmatprep.subr.mxu0 0.0
      %1044 = vmatpush1.msra.mxu0 0.0
      %1045 = vmatprep.subr.mxu0 0.0
      %1046 = vmatpush1.msra.mxu0 0.0
      %1047 = vmatprep.subr.mxu0 0.0
      %1048 = vmatpush1.msra.mxu0 0.0
      %1049 = vmatprep.subr.mxu0 0.0
      %1050 = vmatpush1.msra.mxu0 0.0
      %1051 = vmatprep.subr.mxu0 0.0
      %1052 = vmatpush1.msra.mxu0 0.0
      %1053 = vmatprep.subr.mxu0 0.0
      %1054 = vmatpush1.msra.mxu0 0.0
      %1055 = vmatprep.subr.mxu0 0.0
      %1056 = vmatpush1.msra.mxu0 0.0
      %1057 = vmatprep.subr.mxu0 0.0
      %1058 = vmatpush1.msra.mxu0 0.0
      %1059 = vmatprep.subr.mxu0 0.0
      %1060 = vmatpush1.msra.mxu0 0.0
      %1061 = vmatprep.subr.mxu0 0.0
      %1062 = vmatpush1.msra.mxu0 0.0
      %1063 = vmatprep.subr.mxu0 0.0
      %1064 = vmatpush1.msra.mxu0 0.0
      %1065 = vmatprep.subr.mxu0 0.0
      %1066 = vmatpush1.msra.mxu0 0.0
      %1067 = vmatprep.subr.mxu0 0.0
      %1068 = vmatpush1.msra.mxu0 0.0
      %1069 = vmatprep.subr.mxu0 0.0
      %1070 = vmatpush1.msra.mxu0 0.0
      %1071 = vmatprep.mubr.f32.mxu0 0.0
      %1072 = vmatmul.mubr.f32.gmra.mrb[0].mxu0 %v978
      %v1073 = vpop.f32.mrb[0].mxu0
      %v1074 = vadd.f32 0.0, %v1073
      %v1075 = vpop.f32.mrb[0].mxu0
      %1076 = vmatprep.mubr.f32.mxu0 0.0
      %1077 = vmatmul.mubr.f32.gmra.mrb[0].mxu0 %v981
      %v1078 = vpop.f32.mrb[0].mxu0
      %v1079 = vadd.f32 0.0, %v1078
      %v1080 = vpop.f32.mrb[0].mxu0
      %1081 = vmatprep.mubr.f32.mxu0 0.0
      %1082 = vmatmul.mubr.f32.gmra.mrb[0].mxu0 %v984
      %v1083 = vpop.f32.mrb[0].mxu0
      %v1084 = vadd.f32 0.0, %v1083
      %v1085 = vpop.f32.mrb[0].mxu0
      %1086 = vmatprep.mubr.f32.mxu0 0.0
      %1087 = vmatmul.mubr.f32.gmra.mrb[0].mxu0 %v987
      %v1088 = vpop.f32.mrb[0].mxu0
      %v1089 = vadd.f32 0.0, %v1088
      %v1090 = vpop.f32.mrb[0].mxu0
      %1091 = vmatprep.mubr.f32.mxu0 0.0
      %1092 = vmatmul.mubr.f32.gmra.mrb[0].mxu0 %v990
      %v1093 = vpop.f32.mrb[0].mxu0
      %v1094 = vadd.f32 0.0, %v1093
      %v1095 = vpop.f32.mrb[0].mxu0
      %1096 = vmatprep.mubr.f32.mxu0 0.0
      %1097 = vmatmul.mubr.f32.gmra.mrb[0].mxu0 %v993
      %v1098 = vpop.f32.mrb[0].mxu0
      %v1099 = vadd.f32 0.0, %v1098
      %v1100 = vpop.f32.mrb[0].mxu0
      %1101 = vmatprep.mubr.f32.mxu0 0.0
      %1102 = vmatmul.mubr.f32.gmra.mrb[0].mxu0 %v996
      %v1103 = vpop.f32.mrb[0].mxu0
      %v1104 = vadd.f32 0.0, %v1103
      %v1105 = vpop.f32.mrb[0].mxu0
      %1106 = vmatprep.mubr.f32.mxu0 0.0
      %1107 = vmatmul.mubr.f32.gmra.mrb[0].mxu0 %v999
      %v1108 = vpop.f32.mrb[0].mxu0
      %v1109 = vadd.f32 0.0, %v1108
      %v1110 = vpop.f32.mrb[0].mxu0
      %1111 = vmatprep.mubr.f32.mxu0 0.0
      %1112 = vmatmul.mubr.f32.gmra.mrb[0].mxu0 %v1002
      %v1113 = vpop.f32.mrb[0].mxu0
      %v1114 = vadd.f32 0.0, %v1113
      %v1115 = vpop.f32.mrb[0].mxu0
      %1116 = vmatprep.mubr.f32.mxu0 0.0
      %1117 = vmatmul.mubr.f32.gmra.mrb[0].mxu0 %v1005
      %v1118 = vpop.f32.mrb[0].mxu0
      %v1119 = vadd.f32 0.0, %v1118
      %v1120 = vpop.f32.mrb[0].mxu0
      %1121 = vdwg.mxu0
      %v1122 = vadd.f32 %v954, %v1074
      %v1123 = vadd.f32 %v955, %v1079
      %v1124 = vadd.f32 %v956, %v1084
      %v1125 = vadd.f32 %v957, %v1089
      %v1126 = vadd.f32 %v958, %v1094
      %v1127 = vadd.f32 %v959, %v1099
      %v1128 = vadd.f32 %v960, %v1104
      %v1129 = vadd.f32 %v961, %v1109
      %v1130 = vadd.f32 %v962, %v1114
      %v1131 = vadd.f32 %v963, %v1119
      %v1132 = vld [vmem:[%s138 + $0x14] sm:$0xff]
      %v1133 = vld [vmem:[%s138 + $0x1c] sm:$0xff]
      %v1134 = vld [vmem:[%s138 + $0x24] sm:$0xff]
      %v1135 = vld [vmem:[%s138 + $0x2c] sm:$0xff]
      %v1136 = vld [vmem:[%s138 + $0x34] sm:$0xff]
      %v1137 = vld [vmem:[%s138 + $0x3c] sm:$0xff]
      %v1138 = vld [vmem:[%s138 + $0x44] sm:$0xff]
      %v1139 = vld [vmem:[%s138 + $0x4c] sm:$0xff]
      %v1140 = vld [vmem:[%s138 + $0x54] sm:$0xff]
      %v1141 = vld [vmem:[%s138 + $0x5c] sm:$0xff]
      %s1142 = scalar_lea.vmem %s1, 96
      %v1143 = vld [vmem:[%s1142] sm:$0xff]
      %v1144 = vld [vmem:[%s1142 + $0x8] sm:$0xff]
      %v1146 = vsel %vm169, %v1132, 0
      %v1149 = vsel %vm169, %v1133, 0
      %v1152 = vsel %vm169, %v1134, 0
      %v1155 = vsel %vm169, %v1135, 0
      %v1158 = vsel %vm169, %v1136, 0
      %v1161 = vsel %vm169, %v1137, 0
      %v1164 = vsel %vm169, %v1138, 0
      %v1167 = vsel %vm169, %v1139, 0
      %v1170 = vsel %vm169, %v1140, 0
      %v1173 = vsel %vm169, %v1141, 0
      %1175 = vmatprep.subr.mxu0 0.0
      %1176 = vmatpush1.msra.mxu0 %v1143
      %1177 = vmatprep.subr.mxu0 0.0
      %1178 = vmatpush1.msra.mxu0 %v1144
      %1179 = vmatprep.subr.mxu0 0.0
      %1180 = vmatpush1.msra.mxu0 0.0
      %1181 = vmatprep.subr.mxu0 0.0
      %1182 = vmatpush1.msra.mxu0 0.0
      %1183 = vmatprep.subr.mxu0 0.0
      %1184 = vmatpush1.msra.mxu0 0.0
      %1185 = vmatprep.subr.mxu0 0.0
      %1186 = vmatpush1.msra.mxu0 0.0
      %1187 = vmatprep.subr.mxu0 0.0
      %1188 = vmatpush1.msra.mxu0 0.0
      %1189 = vmatprep.subr.mxu0 0.0
      %1190 = vmatpush1.msra.mxu0 0.0
      %1191 = vmatprep.subr.mxu0 0.0
      %1192 = vmatpush1.msra.mxu0 0.0
      %1193 = vmatprep.subr.mxu0 0.0
      %1194 = vmatpush1.msra.mxu0 0.0
      %1195 = vmatprep.subr.mxu0 0.0
      %1196 = vmatpush1.msra.mxu0 0.0
      %1197 = vmatprep.subr.mxu0 0.0
      %1198 = vmatpush1.msra.mxu0 0.0
      %1199 = vmatprep.subr.mxu0 0.0
      %1200 = vmatpush1.msra.mxu0 0.0
      %1201 = vmatprep.subr.mxu0 0.0
      %1202 = vmatpush1.msra.mxu0 0.0
      %1203 = vmatprep.subr.mxu0 0.0
      %1204 = vmatpush1.msra.mxu0 0.0
      %1205 = vmatprep.subr.mxu0 0.0
      %1206 = vmatpush1.msra.mxu0 0.0
      %1207 = vmatprep.subr.mxu0 0.0
      %1208 = vmatpush1.msra.mxu0 0.0
      %1209 = vmatprep.subr.mxu0 0.0
      %1210 = vmatpush1.msra.mxu0 0.0
      %1211 = vmatprep.subr.mxu0 0.0
      %1212 = vmatpush1.msra.mxu0 0.0
      %1213 = vmatprep.subr.mxu0 0.0
      %1214 = vmatpush1.msra.mxu0 0.0
      %1215 = vmatprep.subr.mxu0 0.0
      %1216 = vmatpush1.msra.mxu0 0.0
      %1217 = vmatprep.subr.mxu0 0.0
      %1218 = vmatpush1.msra.mxu0 0.0
      %1219 = vmatprep.subr.mxu0 0.0
      %1220 = vmatpush1.msra.mxu0 0.0
      %1221 = vmatprep.subr.mxu0 0.0
      %1222 = vmatpush1.msra.mxu0 0.0
      %1223 = vmatprep.subr.mxu0 0.0
      %1224 = vmatpush1.msra.mxu0 0.0
      %1225 = vmatprep.subr.mxu0 0.0
      %1226 = vmatpush1.msra.mxu0 0.0
      %1227 = vmatprep.subr.mxu0 0.0
      %1228 = vmatpush1.msra.mxu0 0.0
      %1229 = vmatprep.subr.mxu0 0.0
      %1230 = vmatpush1.msra.mxu0 0.0
      %1231 = vmatprep.subr.mxu0 0.0
      %1232 = vmatpush1.msra.mxu0 0.0
      %1233 = vmatprep.subr.mxu0 0.0
      %1234 = vmatpush1.msra.mxu0 0.0
      %1235 = vmatprep.subr.mxu0 0.0
      %1236 = vmatpush1.msra.mxu0 0.0
      %1237 = vmatprep.subr.mxu0 0.0
      %1238 = vmatpush1.msra.mxu0 0.0
      %1239 = vmatprep.mubr.f32.mxu0 0.0
      %1240 = vmatmul.mubr.f32.gmra.mrb[0].mxu0 %v1146
      %v1241 = vpop.f32.mrb[0].mxu0
      %v1242 = vadd.f32 0.0, %v1241
      %v1243 = vpop.f32.mrb[0].mxu0
      %1244 = vmatprep.mubr.f32.mxu0 0.0
      %1245 = vmatmul.mubr.f32.gmra.mrb[0].mxu0 %v1149
      %v1246 = vpop.f32.mrb[0].mxu0
      %v1247 = vadd.f32 0.0, %v1246
      %v1248 = vpop.f32.mrb[0].mxu0
      %1249 = vmatprep.mubr.f32.mxu0 0.0
      %1250 = vmatmul.mubr.f32.gmra.mrb[0].mxu0 %v1152
      %v1251 = vpop.f32.mrb[0].mxu0
      %v1252 = vadd.f32 0.0, %v1251
      %v1253 = vpop.f32.mrb[0].mxu0
      %1254 = vmatprep.mubr.f32.mxu0 0.0
      %1255 = vmatmul.mubr.f32.gmra.mrb[0].mxu0 %v1155
      %v1256 = vpop.f32.mrb[0].mxu0
      %v1257 = vadd.f32 0.0, %v1256
      %v1258 = vpop.f32.mrb[0].mxu0
      %1259 = vmatprep.mubr.f32.mxu0 0.0
      %1260 = vmatmul.mubr.f32.gmra.mrb[0].mxu0 %v1158
      %v1261 = vpop.f32.mrb[0].mxu0
      %v1262 = vadd.f32 0.0, %v1261
      %v1263 = vpop.f32.mrb[0].mxu0
      %1264 = vmatprep.mubr.f32.mxu0 0.0
      %1265 = vmatmul.mubr.f32.gmra.mrb[0].mxu0 %v1161
      %v1266 = vpop.f32.mrb[0].mxu0
      %v1267 = vadd.f32 0.0, %v1266
      %v1268 = vpop.f32.mrb[0].mxu0
      %1269 = vmatprep.mubr.f32.mxu0 0.0
      %1270 = vmatmul.mubr.f32.gmra.mrb[0].mxu0 %v1164
      %v1271 = vpop.f32.mrb[0].mxu0
      %v1272 = vadd.f32 0.0, %v1271
      %v1273 = vpop.f32.mrb[0].mxu0
      %1274 = vmatprep.mubr.f32.mxu0 0.0
      %1275 = vmatmul.mubr.f32.gmra.mrb[0].mxu0 %v1167
      %v1276 = vpop.f32.mrb[0].mxu0
      %v1277 = vadd.f32 0.0, %v1276
      %v1278 = vpop.f32.mrb[0].mxu0
      %1279 = vmatprep.mubr.f32.mxu0 0.0
      %1280 = vmatmul.mubr.f32.gmra.mrb[0].mxu0 %v1170
      %v1281 = vpop.f32.mrb[0].mxu0
      %v1282 = vadd.f32 0.0, %v1281
      %v1283 = vpop.f32.mrb[0].mxu0
      %1284 = vmatprep.mubr.f32.mxu0 0.0
      %1285 = vmatmul.mubr.f32.gmra.mrb[0].mxu0 %v1173
      %v1286 = vpop.f32.mrb[0].mxu0
      %v1287 = vadd.f32 0.0, %v1286
      %v1288 = vpop.f32.mrb[0].mxu0
      %1289 = vdwg.mxu0
      %v1290 = vadd.f32 %v1122, %v1242
      %v1291 = vadd.f32 %v1123, %v1247
      %v1292 = vadd.f32 %v1124, %v1252
      %v1293 = vadd.f32 %v1125, %v1257
      %v1294 = vadd.f32 %v1126, %v1262
      %v1295 = vadd.f32 %v1127, %v1267
      %v1296 = vadd.f32 %v1128, %v1272
      %v1297 = vadd.f32 %v1129, %v1277
      %v1298 = vadd.f32 %v1130, %v1282
      %v1299 = vadd.f32 %v1131, %v1287
      %v1300 = vld [vmem:[%s138 + $0x15] sm:$0xff]
      %v1301 = vld [vmem:[%s138 + $0x1d] sm:$0xff]
      %v1302 = vld [vmem:[%s138 + $0x25] sm:$0xff]
      %v1303 = vld [vmem:[%s138 + $0x2d] sm:$0xff]
      %v1304 = vld [vmem:[%s138 + $0x35] sm:$0xff]
      %v1305 = vld [vmem:[%s138 + $0x3d] sm:$0xff]
      %v1306 = vld [vmem:[%s138 + $0x45] sm:$0xff]
      %v1307 = vld [vmem:[%s138 + $0x4d] sm:$0xff]
      %v1308 = vld [vmem:[%s138 + $0x55] sm:$0xff]
      %v1309 = vld [vmem:[%s138 + $0x5d] sm:$0xff]
      %s1310 = scalar_lea.vmem %s1, 112
      %v1311 = vld [vmem:[%s1310] sm:$0xff]
      %v1312 = vld [vmem:[%s1310 + $0x8] sm:$0xff]
      %v1314 = vsel %vm169, %v1300, 0
      %v1317 = vsel %vm169, %v1301, 0
      %v1320 = vsel %vm169, %v1302, 0
      %v1323 = vsel %vm169, %v1303, 0
      %v1326 = vsel %vm169, %v1304, 0
      %v1329 = vsel %vm169, %v1305, 0
      %v1332 = vsel %vm169, %v1306, 0
      %v1335 = vsel %vm169, %v1307, 0
      %v1338 = vsel %vm169, %v1308, 0
      %v1341 = vsel %vm169, %v1309, 0
      %1343 = vmatprep.subr.mxu0 0.0
      %1344 = vmatpush1.msra.mxu0 %v1311
      %1345 = vmatprep.subr.mxu0 0.0
      %1346 = vmatpush1.msra.mxu0 %v1312
      %1347 = vmatprep.subr.mxu0 0.0
      %1348 = vmatpush1.msra.mxu0 0.0
      %1349 = vmatprep.subr.mxu0 0.0
      %1350 = vmatpush1.msra.mxu0 0.0
      %1351 = vmatprep.subr.mxu0 0.0
      %1352 = vmatpush1.msra.mxu0 0.0
      %1353 = vmatprep.subr.mxu0 0.0
      %1354 = vmatpush1.msra.mxu0 0.0
      %1355 = vmatprep.subr.mxu0 0.0
      %1356 = vmatpush1.msra.mxu0 0.0
      %1357 = vmatprep.subr.mxu0 0.0
      %1358 = vmatpush1.msra.mxu0 0.0
      %1359 = vmatprep.subr.mxu0 0.0
      %1360 = vmatpush1.msra.mxu0 0.0
      %1361 = vmatprep.subr.mxu0 0.0
      %1362 = vmatpush1.msra.mxu0 0.0
      %1363 = vmatprep.subr.mxu0 0.0
      %1364 = vmatpush1.msra.mxu0 0.0
      %1365 = vmatprep.subr.mxu0 0.0
      %1366 = vmatpush1.msra.mxu0 0.0
      %1367 = vmatprep.subr.mxu0 0.0
      %1368 = vmatpush1.msra.mxu0 0.0
      %1369 = vmatprep.subr.mxu0 0.0
      %1370 = vmatpush1.msra.mxu0 0.0
      %1371 = vmatprep.subr.mxu0 0.0
      %1372 = vmatpush1.msra.mxu0 0.0
      %1373 = vmatprep.subr.mxu0 0.0
      %1374 = vmatpush1.msra.mxu0 0.0
      %1375 = vmatprep.subr.mxu0 0.0
      %1376 = vmatpush1.msra.mxu0 0.0
      %1377 = vmatprep.subr.mxu0 0.0
      %1378 = vmatpush1.msra.mxu0 0.0
      %1379 = vmatprep.subr.mxu0 0.0
      %1380 = vmatpush1.msra.mxu0 0.0
      %1381 = vmatprep.subr.mxu0 0.0
      %1382 = vmatpush1.msra.mxu0 0.0
      %1383 = vmatprep.subr.mxu0 0.0
      %1384 = vmatpush1.msra.mxu0 0.0
      %1385 = vmatprep.subr.mxu0 0.0
      %1386 = vmatpush1.msra.mxu0 0.0
      %1387 = vmatprep.subr.mxu0 0.0
      %1388 = vmatpush1.msra.mxu0 0.0
      %1389 = vmatprep.subr.mxu0 0.0
      %1390 = vmatpush1.msra.mxu0 0.0
      %1391 = vmatprep.subr.mxu0 0.0
      %1392 = vmatpush1.msra.mxu0 0.0
      %1393 = vmatprep.subr.mxu0 0.0
      %1394 = vmatpush1.msra.mxu0 0.0
      %1395 = vmatprep.subr.mxu0 0.0
      %1396 = vmatpush1.msra.mxu0 0.0
      %1397 = vmatprep.subr.mxu0 0.0
      %1398 = vmatpush1.msra.mxu0 0.0
      %1399 = vmatprep.subr.mxu0 0.0
      %1400 = vmatpush1.msra.mxu0 0.0
      %1401 = vmatprep.subr.mxu0 0.0
      %1402 = vmatpush1.msra.mxu0 0.0
      %1403 = vmatprep.subr.mxu0 0.0
      %1404 = vmatpush1.msra.mxu0 0.0
      %1405 = vmatprep.subr.mxu0 0.0
      %1406 = vmatpush1.msra.mxu0 0.0
      %1407 = vmatprep.mubr.f32.mxu0 0.0
      %1408 = vmatmul.mubr.f32.gmra.mrb[0].mxu0 %v1314
      %v1409 = vpop.f32.mrb[0].mxu0
      %v1410 = vadd.f32 0.0, %v1409
      %v1411 = vpop.f32.mrb[0].mxu0
      %1412 = vmatprep.mubr.f32.mxu0 0.0
      %1413 = vmatmul.mubr.f32.gmra.mrb[0].mxu0 %v1317
      %v1414 = vpop.f32.mrb[0].mxu0
      %v1415 = vadd.f32 0.0, %v1414
      %v1416 = vpop.f32.mrb[0].mxu0
      %1417 = vmatprep.mubr.f32.mxu0 0.0
      %1418 = vmatmul.mubr.f32.gmra.mrb[0].mxu0 %v1320
      %v1419 = vpop.f32.mrb[0].mxu0
      %v1420 = vadd.f32 0.0, %v1419
      %v1421 = vpop.f32.mrb[0].mxu0
      %1422 = vmatprep.mubr.f32.mxu0 0.0
      %1423 = vmatmul.mubr.f32.gmra.mrb[0].mxu0 %v1323
      %v1424 = vpop.f32.mrb[0].mxu0
      %v1425 = vadd.f32 0.0, %v1424
      %v1426 = vpop.f32.mrb[0].mxu0
      %1427 = vmatprep.mubr.f32.mxu0 0.0
      %1428 = vmatmul.mubr.f32.gmra.mrb[0].mxu0 %v1326
      %v1429 = vpop.f32.mrb[0].mxu0
      %v1430 = vadd.f32 0.0, %v1429
      %v1431 = vpop.f32.mrb[0].mxu0
      %1432 = vmatprep.mubr.f32.mxu0 0.0
      %1433 = vmatmul.mubr.f32.gmra.mrb[0].mxu0 %v1329
      %v1434 = vpop.f32.mrb[0].mxu0
      %v1435 = vadd.f32 0.0, %v1434
      %v1436 = vpop.f32.mrb[0].mxu0
      %1437 = vmatprep.mubr.f32.mxu0 0.0
      %1438 = vmatmul.mubr.f32.gmra.mrb[0].mxu0 %v1332
      %v1439 = vpop.f32.mrb[0].mxu0
      %v1440 = vadd.f32 0.0, %v1439
      %v1441 = vpop.f32.mrb[0].mxu0
      %1442 = vmatprep.mubr.f32.mxu0 0.0
      %1443 = vmatmul.mubr.f32.gmra.mrb[0].mxu0 %v1335
      %v1444 = vpop.f32.mrb[0].mxu0
      %v1445 = vadd.f32 0.0, %v1444
      %v1446 = vpop.f32.mrb[0].mxu0
      %1447 = vmatprep.mubr.f32.mxu0 0.0
      %1448 = vmatmul.mubr.f32.gmra.mrb[0].mxu0 %v1338
      %v1449 = vpop.f32.mrb[0].mxu0
      %v1450 = vadd.f32 0.0, %v1449
      %v1451 = vpop.f32.mrb[0].mxu0
      %1452 = vmatprep.mubr.f32.mxu0 0.0
      %1453 = vmatmul.mubr.f32.gmra.mrb[0].mxu0 %v1341
      %v1454 = vpop.f32.mrb[0].mxu0
      %v1455 = vadd.f32 0.0, %v1454
      %v1456 = vpop.f32.mrb[0].mxu0
      %1457 = vdwg.mxu0
      %v1458 = vadd.f32 %v1290, %v1410
      %v1459 = vadd.f32 %v1291, %v1415
      %v1460 = vadd.f32 %v1292, %v1420
      %v1461 = vadd.f32 %v1293, %v1425
      %v1462 = vadd.f32 %v1294, %v1430
      %v1463 = vadd.f32 %v1295, %v1435
      %v1464 = vadd.f32 %v1296, %v1440
      %v1465 = vadd.f32 %v1297, %v1445
      %v1466 = vadd.f32 %v1298, %v1450
      %v1467 = vadd.f32 %v1299, %v1455
      %v1468 = vld [vmem:[%s138 + $0x16] sm:$0xff]
      %v1469 = vld [vmem:[%s138 + $0x1e] sm:$0xff]
      %v1470 = vld [vmem:[%s138 + $0x26] sm:$0xff]
      %v1471 = vld [vmem:[%s138 + $0x2e] sm:$0xff]
      %v1472 = vld [vmem:[%s138 + $0x36] sm:$0xff]
      %v1473 = vld [vmem:[%s138 + $0x3e] sm:$0xff]
      %v1474 = vld [vmem:[%s138 + $0x46] sm:$0xff]
      %v1475 = vld [vmem:[%s138 + $0x4e] sm:$0xff]
      %v1476 = vld [vmem:[%s138 + $0x56] sm:$0xff]
      %v1477 = vld [vmem:[%s138 + $0x5e] sm:$0xff]
      %s1478 = scalar_lea.vmem %s1, 128
      %v1479 = vld [vmem:[%s1478] sm:$0xff]
      %v1480 = vld [vmem:[%s1478 + $0x8] sm:$0xff]
      %v1482 = vsel %vm169, %v1468, 0
      %v1485 = vsel %vm169, %v1469, 0
      %v1488 = vsel %vm169, %v1470, 0
      %v1491 = vsel %vm169, %v1471, 0
      %v1494 = vsel %vm169, %v1472, 0
      %v1497 = vsel %vm169, %v1473, 0
      %v1500 = vsel %vm169, %v1474, 0
      %v1503 = vsel %vm169, %v1475, 0
      %v1506 = vsel %vm169, %v1476, 0
      %v1509 = vsel %vm169, %v1477, 0
      %1511 = vmatprep.subr.mxu0 0.0
      %1512 = vmatpush1.msra.mxu0 %v1479
      %1513 = vmatprep.subr.mxu0 0.0
      %1514 = vmatpush1.msra.mxu0 %v1480
      %1515 = vmatprep.subr.mxu0 0.0
      %1516 = vmatpush1.msra.mxu0 0.0
      %1517 = vmatprep.subr.mxu0 0.0
      %1518 = vmatpush1.msra.mxu0 0.0
      %1519 = vmatprep.subr.mxu0 0.0
      %1520 = vmatpush1.msra.mxu0 0.0
      %1521 = vmatprep.subr.mxu0 0.0
      %1522 = vmatpush1.msra.mxu0 0.0
      %1523 = vmatprep.subr.mxu0 0.0
      %1524 = vmatpush1.msra.mxu0 0.0
      %1525 = vmatprep.subr.mxu0 0.0
      %1526 = vmatpush1.msra.mxu0 0.0
      %1527 = vmatprep.subr.mxu0 0.0
      %1528 = vmatpush1.msra.mxu0 0.0
      %1529 = vmatprep.subr.mxu0 0.0
      %1530 = vmatpush1.msra.mxu0 0.0
      %1531 = vmatprep.subr.mxu0 0.0
      %1532 = vmatpush1.msra.mxu0 0.0
      %1533 = vmatprep.subr.mxu0 0.0
      %1534 = vmatpush1.msra.mxu0 0.0
      %1535 = vmatprep.subr.mxu0 0.0
      %1536 = vmatpush1.msra.mxu0 0.0
      %1537 = vmatprep.subr.mxu0 0.0
      %1538 = vmatpush1.msra.mxu0 0.0
      %1539 = vmatprep.subr.mxu0 0.0
      %1540 = vmatpush1.msra.mxu0 0.0
      %1541 = vmatprep.subr.mxu0 0.0
      %1542 = vmatpush1.msra.mxu0 0.0
      %1543 = vmatprep.subr.mxu0 0.0
      %1544 = vmatpush1.msra.mxu0 0.0
      %1545 = vmatprep.subr.mxu0 0.0
      %1546 = vmatpush1.msra.mxu0 0.0
      %1547 = vmatprep.subr.mxu0 0.0
      %1548 = vmatpush1.msra.mxu0 0.0
      %1549 = vmatprep.subr.mxu0 0.0
      %1550 = vmatpush1.msra.mxu0 0.0
      %1551 = vmatprep.subr.mxu0 0.0
      %1552 = vmatpush1.msra.mxu0 0.0
      %1553 = vmatprep.subr.mxu0 0.0
      %1554 = vmatpush1.msra.mxu0 0.0
      %1555 = vmatprep.subr.mxu0 0.0
      %1556 = vmatpush1.msra.mxu0 0.0
      %1557 = vmatprep.subr.mxu0 0.0
      %1558 = vmatpush1.msra.mxu0 0.0
      %1559 = vmatprep.subr.mxu0 0.0
      %1560 = vmatpush1.msra.mxu0 0.0
      %1561 = vmatprep.subr.mxu0 0.0
      %1562 = vmatpush1.msra.mxu0 0.0
      %1563 = vmatprep.subr.mxu0 0.0
      %1564 = vmatpush1.msra.mxu0 0.0
      %1565 = vmatprep.subr.mxu0 0.0
      %1566 = vmatpush1.msra.mxu0 0.0
      %1567 = vmatprep.subr.mxu0 0.0
      %1568 = vmatpush1.msra.mxu0 0.0
      %1569 = vmatprep.subr.mxu0 0.0
      %1570 = vmatpush1.msra.mxu0 0.0
      %1571 = vmatprep.subr.mxu0 0.0
      %1572 = vmatpush1.msra.mxu0 0.0
      %1573 = vmatprep.subr.mxu0 0.0
      %1574 = vmatpush1.msra.mxu0 0.0
      %1575 = vmatprep.mubr.f32.mxu0 0.0
      %1576 = vmatmul.mubr.f32.gmra.mrb[0].mxu0 %v1482
      %v1577 = vpop.f32.mrb[0].mxu0
      %v1578 = vadd.f32 0.0, %v1577
      %v1579 = vpop.f32.mrb[0].mxu0
      %1580 = vmatprep.mubr.f32.mxu0 0.0
      %1581 = vmatmul.mubr.f32.gmra.mrb[0].mxu0 %v1485
      %v1582 = vpop.f32.mrb[0].mxu0
      %v1583 = vadd.f32 0.0, %v1582
      %v1584 = vpop.f32.mrb[0].mxu0
      %1585 = vmatprep.mubr.f32.mxu0 0.0
      %1586 = vmatmul.mubr.f32.gmra.mrb[0].mxu0 %v1488
      %v1587 = vpop.f32.mrb[0].mxu0
      %v1588 = vadd.f32 0.0, %v1587
      %v1589 = vpop.f32.mrb[0].mxu0
      %1590 = vmatprep.mubr.f32.mxu0 0.0
      %1591 = vmatmul.mubr.f32.gmra.mrb[0].mxu0 %v1491
      %v1592 = vpop.f32.mrb[0].mxu0
      %v1593 = vadd.f32 0.0, %v1592
      %v1594 = vpop.f32.mrb[0].mxu0
      %1595 = vmatprep.mubr.f32.mxu0 0.0
      %1596 = vmatmul.mubr.f32.gmra.mrb[0].mxu0 %v1494
      %v1597 = vpop.f32.mrb[0].mxu0
      %v1598 = vadd.f32 0.0, %v1597
      %v1599 = vpop.f32.mrb[0].mxu0
      %1600 = vmatprep.mubr.f32.mxu0 0.0
      %1601 = vmatmul.mubr.f32.gmra.mrb[0].mxu0 %v1497
      %v1602 = vpop.f32.mrb[0].mxu0
      %v1603 = vadd.f32 0.0, %v1602
      %v1604 = vpop.f32.mrb[0].mxu0
      %1605 = vmatprep.mubr.f32.mxu0 0.0
      %1606 = vmatmul.mubr.f32.gmra.mrb[0].mxu0 %v1500
      %v1607 = vpop.f32.mrb[0].mxu0
      %v1608 = vadd.f32 0.0, %v1607
      %v1609 = vpop.f32.mrb[0].mxu0
      %1610 = vmatprep.mubr.f32.mxu0 0.0
      %1611 = vmatmul.mubr.f32.gmra.mrb[0].mxu0 %v1503
      %v1612 = vpop.f32.mrb[0].mxu0
      %v1613 = vadd.f32 0.0, %v1612
      %v1614 = vpop.f32.mrb[0].mxu0
      %1615 = vmatprep.mubr.f32.mxu0 0.0
      %1616 = vmatmul.mubr.f32.gmra.mrb[0].mxu0 %v1506
      %v1617 = vpop.f32.mrb[0].mxu0
      %v1618 = vadd.f32 0.0, %v1617
      %v1619 = vpop.f32.mrb[0].mxu0
      %1620 = vmatprep.mubr.f32.mxu0 0.0
      %1621 = vmatmul.mubr.f32.gmra.mrb[0].mxu0 %v1509
      %v1622 = vpop.f32.mrb[0].mxu0
      %v1623 = vadd.f32 0.0, %v1622
      %v1624 = vpop.f32.mrb[0].mxu0
      %1625 = vdwg.mxu0
      %v1626 = vadd.f32 %v1458, %v1578
      %v1627 = vadd.f32 %v1459, %v1583
      %v1628 = vadd.f32 %v1460, %v1588
      %v1629 = vadd.f32 %v1461, %v1593
      %v1630 = vadd.f32 %v1462, %v1598
      %v1631 = vadd.f32 %v1463, %v1603
      %v1632 = vadd.f32 %v1464, %v1608
      %v1633 = vadd.f32 %v1465, %v1613
      %v1634 = vadd.f32 %v1466, %v1618
      %v1635 = vadd.f32 %v1467, %v1623
      %vm1636 = vcmask 64512
      %1637 = vst.msk [vmem:[%s143] sm:$0xff] %vm1636, %v1626
      %1638 = vst.msk [vmem:[%s143 + $0x8] sm:$0xff] %vm1636, %v1627
      %1639 = vst.msk [vmem:[%s143 + $0x10] sm:$0xff] %vm1636, %v1628
      %1640 = vst.msk [vmem:[%s143 + $0x18] sm:$0xff] %vm1636, %v1629
      %1641 = vst.msk [vmem:[%s143 + $0x20] sm:$0xff] %vm1636, %v1630
      %1642 = vst.msk [vmem:[%s143 + $0x28] sm:$0xff] %vm1636, %v1631
      %1643 = vst.msk [vmem:[%s143 + $0x30] sm:$0xff] %vm1636, %v1632
      %1644 = vst.msk [vmem:[%s143 + $0x38] sm:$0xff] %vm1636, %v1633
      %1645 = vst.msk [vmem:[%s143 + $0x40] sm:$0xff] %vm1636, %v1634
      %1646 = vst.msk [vmem:[%s143 + $0x48] sm:$0xff] %vm1636, %v1635
      %p1647 = scmp.lt.s32.totalorder %s13, 1
      %s1648 = scalar_select %p1647, %s13, 1
      %s1649 = smul.addr %s1648, 10
      %s1650 = smul.addr %s1649, 8
      %s1651 = scalar_lea.vmem %s2, %s1650
      // Predicated region
      $region29: #{densenet_forward.13} parent=27 // pred_check
        %p1652 = pneg %p78
      $region30: #{densenet_forward.13} parent=27 // pred_check_branch
        %1654 = sbr.rel (%p1652) target = $region32
      $region31: #{densenet_forward.13} parent=27 // pred_region
        _
      $region32: #{densenet_forward.13} parent=27 // pred_fallthru
        _
    $region28: #{densenet_forward.13} parent=5 // pred_fallthru
      _
    %p1655 = scmp.le.s32.totalorder 2, %s8
    // Predicated region
    $region33: #{densenet_forward.13} parent=5 // pred_check
      %p1656 = pneg %p1655
    $region34: #{densenet_forward.13} parent=5 // pred_check_branch
      %1658 = sbr.rel (%p1656) target = $region36
    $region35: #{densenet_forward.13} parent=5 // pred_region
      %s1659 = ssub.s32 %s8, 2
      // Predicated region
      $region37: #{densenet_forward.13} parent=35 // pred_check
        %p1660 = pneg %p84
      $region38: #{densenet_forward.13} parent=35 // pred_check_branch
        %1662 = sbr.rel (%p1660) target = $region40
      $region39: #{densenet_forward.13} parent=35 // pred_region
        %p1663 = scmp.lt.s32.totalorder %s14, 1
        %s1664 = scalar_select %p1663, %s14, 1
        %s1665 = smul.addr %s1664, 10
        %s1666 = smul.addr %s1665, 8
        %s1667 = scalar_lea.vmem %s2, %s1666
      $region40: #{densenet_forward.13} parent=35 // pred_fallthru
        _
    $region36: #{densenet_forward.13} parent=5 // pred_fallthru
      _
  $region6: #{densenet_forward.13} parent=0 // loop_footer
    %s12 = sadd.s32 1, %s8
  $region7: #{densenet_forward.13} parent=0 // loop_footer_branch
    %7 = sbr.rel target = $region3
  $region8: #{densenet_forward.13} parent=0 // loop_exit
    _

// kernel: densenet_forward.14
$region0: #{densenet_forward.14}
  #allocation0 [shape = 'u32[]', space=smem, size = 0x4, offset = 0x4, fixed_abs, tag = 'smem constant byte address 0x4 - core index']
  #allocation1 [shape = 'u32[144,128]{1,0:T(1,128)}', space=vmem, size = 0x12000, scoped, tag = 'internal scratch']
  %s0 = inlined_call_operand.vmem [shape: f32[128,24], index: 0, kind: input, shape index: {}]
  %s1 = inlined_call_operand.vmem [shape: f32[1,24], index: 1, kind: input, shape index: {}]
  %s2 = inlined_call_operand.vmem [shape: f32[1,24], index: 2, kind: input, shape index: {}]
  %s3 = inlined_call_operand.vmem [shape: f32[24,16], index: 3, kind: input, shape index: {}]
  %s4 = inlined_call_operand.vmem [shape: f32[1,16], index: 4, kind: input, shape index: {}]
  %s5 = inlined_call_operand.vmem [shape: f32[128,16], index: 5, kind: output, shape index: {}]
  %s6 = sld [smem:[#allocation0]]
  $region30: #{densenet_forward.14} parent=0
    _
  %s8 = ssub.s32 1, %s6
  %s9 = scalar_select 0, %s8, %s6
  // Predicated region
  $region2: #{densenet_forward.14} parent=0 // pred_check
    _
  $region3: #{densenet_forward.14} parent=0 // pred_check_branch
    %11 = sbr.rel (0) target = $region5
  $region4: #{densenet_forward.14} parent=0 // pred_region
    _
  $region5: #{densenet_forward.14} parent=0 // pred_fallthru
    _
  // Predicated region
  $region6: #{densenet_forward.14} parent=0 // pred_check
    _
  $region7: #{densenet_forward.14} parent=0 // pred_check_branch
    %13 = sbr.rel (0) target = $region9
  $region8: #{densenet_forward.14} parent=0 // pred_region
    _
  $region9: #{densenet_forward.14} parent=0 // pred_fallthru
    _
  // Predicated region
  $region10: #{densenet_forward.14} parent=0 // pred_check
    _
  $region11: #{densenet_forward.14} parent=0 // pred_check_branch
    %15 = sbr.rel (0) target = $region13
  $region12: #{densenet_forward.14} parent=0 // pred_region
    _
  $region13: #{densenet_forward.14} parent=0 // pred_fallthru
    _
  // Predicated region
  $region14: #{densenet_forward.14} parent=0 // pred_check
    _
  $region15: #{densenet_forward.14} parent=0 // pred_check_branch
    %17 = sbr.rel (0) target = $region17
  $region16: #{densenet_forward.14} parent=0 // pred_region
    _
  $region17: #{densenet_forward.14} parent=0 // pred_fallthru
    _
  // Predicated region
  $region18: #{densenet_forward.14} parent=0 // pred_check
    _
  $region19: #{densenet_forward.14} parent=0 // pred_check_branch
    %19 = sbr.rel (0) target = $region21
  $region20: #{densenet_forward.14} parent=0 // pred_region
    _
  $region21: #{densenet_forward.14} parent=0 // pred_fallthru
    _
  %v20 = vld [vmem:[%s0] sm:$0xff]
  %v21 = vld [vmem:[%s0 + $0x8] sm:$0xff]
  %v22 = vld [vmem:[%s0 + $0x10] sm:$0xff]
  %v23 = vld [vmem:[%s0 + $0x18] sm:$0xff]
  %v24 = vld [vmem:[%s0 + $0x20] sm:$0xff]
  %v25 = vld [vmem:[%s0 + $0x28] sm:$0xff]
  %v26 = vld [vmem:[%s0 + $0x30] sm:$0xff]
  %v27 = vld [vmem:[%s0 + $0x38] sm:$0xff]
  %v28 = vld [vmem:[%s0 + $0x40] sm:$0xff]
  %v29 = vld [vmem:[%s0 + $0x48] sm:$0xff]
  %v30 = vld [vmem:[%s0 + $0x50] sm:$0xff]
  %v31 = vld [vmem:[%s0 + $0x58] sm:$0xff]
  %v32 = vld [vmem:[%s0 + $0x60] sm:$0xff]
  %v33 = vld [vmem:[%s0 + $0x68] sm:$0xff]
  %v34 = vld [vmem:[%s0 + $0x70] sm:$0xff]
  %v35 = vld [vmem:[%s0 + $0x78] sm:$0xff]
  %v36 = vld [vmem:[%s1] sm:$0x1]
  %v38 = vlaneseq
  %v39 = vshrl.u32 %v38, 7
  %v40 = vsub.s32 0, %v39
  %v41 = vrot.slane %v36, %v40
  %v43 = vmul.f32 %v20, %v41
  %v44 = vmul.f32 %v21, %v41
  %v45 = vmul.f32 %v22, %v41
  %v46 = vmul.f32 %v23, %v41
  %v47 = vmul.f32 %v24, %v41
  %v48 = vmul.f32 %v25, %v41
  %v49 = vmul.f32 %v26, %v41
  %v50 = vmul.f32 %v27, %v41
  %v51 = vmul.f32 %v28, %v41
  %v52 = vmul.f32 %v29, %v41
  %v53 = vmul.f32 %v30, %v41
  %v54 = vmul.f32 %v31, %v41
  %v55 = vmul.f32 %v32, %v41
  %v56 = vmul.f32 %v33, %v41
  %v57 = vmul.f32 %v34, %v41
  %v58 = vmul.f32 %v35, %v41
  %v59 = vld [vmem:[%s2] sm:$0x1]
  %v61 = vlaneseq
  %v62 = vshrl.u32 %v61, 7
  %v63 = vsub.s32 0, %v62
  %v64 = vrot.slane %v59, %v63
  %v66 = vadd.f32 %v43, %v64
  %v67 = vadd.f32 %v44, %v64
  %v68 = vadd.f32 %v45, %v64
  %v69 = vadd.f32 %v46, %v64
  %v70 = vadd.f32 %v47, %v64
  %v71 = vadd.f32 %v48, %v64
  %v72 = vadd.f32 %v49, %v64
  %v73 = vadd.f32 %v50, %v64
  %v74 = vadd.f32 %v51, %v64
  %v75 = vadd.f32 %v52, %v64
  %v76 = vadd.f32 %v53, %v64
  %v77 = vadd.f32 %v54, %v64
  %v78 = vadd.f32 %v55, %v64
  %v79 = vadd.f32 %v56, %v64
  %v80 = vadd.f32 %v57, %v64
  %v81 = vadd.f32 %v58, %v64
  %v82 = vmax.f32 %v66, 0.0
  %v83 = vmax.f32 %v67, 0.0
  %v84 = vmax.f32 %v68, 0.0
  %v85 = vmax.f32 %v69, 0.0
  %v86 = vmax.f32 %v70, 0.0
  %v87 = vmax.f32 %v71, 0.0
  %v88 = vmax.f32 %v72, 0.0
  %v89 = vmax.f32 %v73, 0.0
  %v90 = vmax.f32 %v74, 0.0
  %v91 = vmax.f32 %v75, 0.0
  %v92 = vmax.f32 %v76, 0.0
  %v93 = vmax.f32 %v77, 0.0
  %v94 = vmax.f32 %v78, 0.0
  %v95 = vmax.f32 %v79, 0.0
  %v96 = vmax.f32 %v80, 0.0
  %v97 = vmax.f32 %v81, 0.0
  %v98 = vld [vmem:[%s3] sm:$0xff]
  %v99 = vld [vmem:[%s3 + $0x8] sm:$0xff]
  %v100 = vld [vmem:[%s3 + $0x10] sm:$0xff]
  %v101 = vld [vmem:[%s4] sm:$0x1]
  %v103 = vlaneseq
  %v104 = vshrl.u32 %v103, 7
  %v105 = vsub.s32 0, %v104
  %v106 = vrot.slane %v101, %v105
  %vm108 = vcmask 195584
  %v110 = vsel %vm108, %v82, 0
  %v113 = vsel %vm108, %v83, 0
  %v116 = vsel %vm108, %v84, 0
  %v119 = vsel %vm108, %v85, 0
  %v122 = vsel %vm108, %v86, 0
  %v125 = vsel %vm108, %v87, 0
  %v128 = vsel %vm108, %v88, 0
  %v131 = vsel %vm108, %v89, 0
  %v134 = vsel %vm108, %v90, 0
  %v137 = vsel %vm108, %v91, 0
  %v140 = vsel %vm108, %v92, 0
  %v143 = vsel %vm108, %v93, 0
  %v146 = vsel %vm108, %v94, 0
  %v149 = vsel %vm108, %v95, 0
  %v152 = vsel %vm108, %v96, 0
  %v155 = vsel %vm108, %v97, 0
  %157 = vmatprep.subr.mxu0 0.0
  %158 = vmatpush1.msra.mxu0 %v98
  %159 = vmatprep.subr.mxu0 0.0
  %160 = vmatpush1.msra.mxu0 %v99
  %161 = vmatprep.subr.mxu0 0.0
  %162 = vmatpush1.msra.mxu0 %v100
  %163 = vmatprep.subr.mxu0 0.0
  %164 = vmatpush1.msra.mxu0 0.0
  %165 = vmatprep.subr.mxu0 0.0
  %166 = vmatpush1.msra.mxu0 0.0
  %167 = vmatprep.subr.mxu0 0.0
  %168 = vmatpush1.msra.mxu0 0.0
  %169 = vmatprep.subr.mxu0 0.0
  %170 = vmatpush1.msra.mxu0 0.0
  %171 = vmatprep.subr.mxu0 0.0
  %172 = vmatpush1.msra.mxu0 0.0
  %173 = vmatprep.subr.mxu0 0.0
  %174 = vmatpush1.msra.mxu0 0.0
  %175 = vmatprep.subr.mxu0 0.0
  %176 = vmatpush1.msra.mxu0 0.0
  %177 = vmatprep.subr.mxu0 0.0
  %178 = vmatpush1.msra.mxu0 0.0
  %179 = vmatprep.subr.mxu0 0.0
  %180 = vmatpush1.msra.mxu0 0.0
  %181 = vmatprep.subr.mxu0 0.0
  %182 = vmatpush1.msra.mxu0 0.0
  %183 = vmatprep.subr.mxu0 0.0
  %184 = vmatpush1.msra.mxu0 0.0
  %185 = vmatprep.subr.mxu0 0.0
  %186 = vmatpush1.msra.mxu0 0.0
  %187 = vmatprep.subr.mxu0 0.0
  %188 = vmatpush1.msra.mxu0 0.0
  %189 = vmatprep.subr.mxu0 0.0
  %190 = vmatpush1.msra.mxu0 0.0
  %191 = vmatprep.subr.mxu0 0.0
  %192 = vmatpush1.msra.mxu0 0.0
  %193 = vmatprep.subr.mxu0 0.0
  %194 = vmatpush1.msra.mxu0 0.0
  %195 = vmatprep.subr.mxu0 0.0
  %196 = vmatpush1.msra.mxu0 0.0
  %197 = vmatprep.subr.mxu0 0.0
  %198 = vmatpush1.msra.mxu0 0.0
  %199 = vmatprep.subr.mxu0 0.0
  %200 = vmatpush1.msra.mxu0 0.0
  %201 = vmatprep.subr.mxu0 0.0
  %202 = vmatpush1.msra.mxu0 0.0
  %203 = vmatprep.subr.mxu0 0.0
  %204 = vmatpush1.msra.mxu0 0.0
  %205 = vmatprep.subr.mxu0 0.0
  %206 = vmatpush1.msra.mxu0 0.0
  %207 = vmatprep.subr.mxu0 0.0
  %208 = vmatpush1.msra.mxu0 0.0
  %209 = vmatprep.subr.mxu0 0.0
  %210 = vmatpush1.msra.mxu0 0.0
  %211 = vmatprep.subr.mxu0 0.0
  %212 = vmatpush1.msra.mxu0 0.0
  %213 = vmatprep.subr.mxu0 0.0
  %214 = vmatpush1.msra.mxu0 0.0
  %215 = vmatprep.subr.mxu0 0.0
  %216 = vmatpush1.msra.mxu0 0.0
  %217 = vmatprep.subr.mxu0 0.0
  %218 = vmatpush1.msra.mxu0 0.0
  %219 = vmatprep.subr.mxu0 0.0
  %220 = vmatpush1.msra.mxu0 0.0
  %221 = vmatprep.mubr.f32.mxu0 0.0
  %222 = vmatmul.mubr.f32.gmra.mrb[0].mxu0 %v110
  %v223 = vpop.f32.mrb[0].mxu0
  %v224 = vadd.f32 %v106, %v223
  %v225 = vpop.f32.mrb[0].mxu0
  %226 = vmatprep.mubr.f32.mxu0 0.0
  %227 = vmatmul.mubr.f32.gmra.mrb[0].mxu0 %v113
  %v228 = vpop.f32.mrb[0].mxu0
  %v229 = vadd.f32 %v106, %v228
  %v230 = vpop.f32.mrb[0].mxu0
  %231 = vmatprep.mubr.f32.mxu0 0.0
  %232 = vmatmul.mubr.f32.gmra.mrb[0].mxu0 %v116
  %v233 = vpop.f32.mrb[0].mxu0
  %v234 = vadd.f32 %v106, %v233
  %v235 = vpop.f32.mrb[0].mxu0
  %236 = vmatprep.mubr.f32.mxu0 0.0
  %237 = vmatmul.mubr.f32.gmra.mrb[0].mxu0 %v119
  %v238 = vpop.f32.mrb[0].mxu0
  %v239 = vadd.f32 %v106, %v238
  %v240 = vpop.f32.mrb[0].mxu0
  %241 = vmatprep.mubr.f32.mxu0 0.0
  %242 = vmatmul.mubr.f32.gmra.mrb[0].mxu0 %v122
  %v243 = vpop.f32.mrb[0].mxu0
  %v244 = vadd.f32 %v106, %v243
  %v245 = vpop.f32.mrb[0].mxu0
  %246 = vmatprep.mubr.f32.mxu0 0.0
  %247 = vmatmul.mubr.f32.gmra.mrb[0].mxu0 %v125
  %v248 = vpop.f32.mrb[0].mxu0
  %v249 = vadd.f32 %v106, %v248
  %v250 = vpop.f32.mrb[0].mxu0
  %251 = vmatprep.mubr.f32.mxu0 0.0
  %252 = vmatmul.mubr.f32.gmra.mrb[0].mxu0 %v128
  %v253 = vpop.f32.mrb[0].mxu0
  %v254 = vadd.f32 %v106, %v253
  %v255 = vpop.f32.mrb[0].mxu0
  %256 = vmatprep.mubr.f32.mxu0 0.0
  %257 = vmatmul.mubr.f32.gmra.mrb[0].mxu0 %v131
  %v258 = vpop.f32.mrb[0].mxu0
  %v259 = vadd.f32 %v106, %v258
  %v260 = vpop.f32.mrb[0].mxu0
  %261 = vmatprep.mubr.f32.mxu0 0.0
  %262 = vmatmul.mubr.f32.gmra.mrb[0].mxu0 %v134
  %v263 = vpop.f32.mrb[0].mxu0
  %v264 = vadd.f32 %v106, %v263
  %v265 = vpop.f32.mrb[0].mxu0
  %266 = vmatprep.mubr.f32.mxu0 0.0
  %267 = vmatmul.mubr.f32.gmra.mrb[0].mxu0 %v137
  %v268 = vpop.f32.mrb[0].mxu0
  %v269 = vadd.f32 %v106, %v268
  %v270 = vpop.f32.mrb[0].mxu0
  %271 = vmatprep.mubr.f32.mxu0 0.0
  %272 = vmatmul.mubr.f32.gmra.mrb[0].mxu0 %v140
  %v273 = vpop.f32.mrb[0].mxu0
  %v274 = vadd.f32 %v106, %v273
  %v275 = vpop.f32.mrb[0].mxu0
  %276 = vmatprep.mubr.f32.mxu0 0.0
  %277 = vmatmul.mubr.f32.gmra.mrb[0].mxu0 %v143
  %v278 = vpop.f32.mrb[0].mxu0
  %v279 = vadd.f32 %v106, %v278
  %v280 = vpop.f32.mrb[0].mxu0
  %281 = vmatprep.mubr.f32.mxu0 0.0
  %282 = vmatmul.mubr.f32.gmra.mrb[0].mxu0 %v146
  %v283 = vpop.f32.mrb[0].mxu0
  %v284 = vadd.f32 %v106, %v283
  %v285 = vpop.f32.mrb[0].mxu0
  %286 = vmatprep.mubr.f32.mxu0 0.0
  %287 = vmatmul.mubr.f32.gmra.mrb[0].mxu0 %v149
  %v288 = vpop.f32.mrb[0].mxu0
  %v289 = vadd.f32 %v106, %v288
  %v290 = vpop.f32.mrb[0].mxu0
  %291 = vmatprep.mubr.f32.mxu0 0.0
  %292 = vmatmul.mubr.f32.gmra.mrb[0].mxu0 %v152
  %v293 = vpop.f32.mrb[0].mxu0
  %v294 = vadd.f32 %v106, %v293
  %v295 = vpop.f32.mrb[0].mxu0
  %296 = vmatprep.mubr.f32.mxu0 0.0
  %297 = vmatmul.mubr.f32.gmra.mrb[0].mxu0 %v155
  %v298 = vpop.f32.mrb[0].mxu0
  %v299 = vadd.f32 %v106, %v298
  %v300 = vpop.f32.mrb[0].mxu0
  %301 = vdwg.mxu0
  %v302 = vmax.f32 %v224, 0.0
  %v303 = vmax.f32 %v229, 0.0
  %v304 = vmax.f32 %v234, 0.0
  %v305 = vmax.f32 %v239, 0.0
  %v306 = vmax.f32 %v244, 0.0
  %v307 = vmax.f32 %v249, 0.0
  %v308 = vmax.f32 %v254, 0.0
  %v309 = vmax.f32 %v259, 0.0
  %v310 = vmax.f32 %v264, 0.0
  %v311 = vmax.f32 %v269, 0.0
  %v312 = vmax.f32 %v274, 0.0
  %v313 = vmax.f32 %v279, 0.0
  %v314 = vmax.f32 %v284, 0.0
  %v315 = vmax.f32 %v289, 0.0
  %v316 = vmax.f32 %v294, 0.0
  %v317 = vmax.f32 %v299, 0.0
  %vm318 = vcmask 130048
  %319 = vst.msk [vmem:[%s5] sm:$0xff] %vm318, %v302
  %320 = vst.msk [vmem:[%s5 + $0x8] sm:$0xff] %vm318, %v303
  %321 = vst.msk [vmem:[%s5 + $0x10] sm:$0xff] %vm318, %v304
  %322 = vst.msk [vmem:[%s5 + $0x18] sm:$0xff] %vm318, %v305
  %323 = vst.msk [vmem:[%s5 + $0x20] sm:$0xff] %vm318, %v306
  %324 = vst.msk [vmem:[%s5 + $0x28] sm:$0xff] %vm318, %v307
  %325 = vst.msk [vmem:[%s5 + $0x30] sm:$0xff] %vm318, %v308
  %326 = vst.msk [vmem:[%s5 + $0x38] sm:$0xff] %vm318, %v309
  %327 = vst.msk [vmem:[%s5 + $0x40] sm:$0xff] %vm318, %v310
  %328 = vst.msk [vmem:[%s5 + $0x48] sm:$0xff] %vm318, %v311
  %329 = vst.msk [vmem:[%s5 + $0x50] sm:$0xff] %vm318, %v312
  %330 = vst.msk [vmem:[%s5 + $0x58] sm:$0xff] %vm318, %v313
  %331 = vst.msk [vmem:[%s5 + $0x60] sm:$0xff] %vm318, %v314
  %332 = vst.msk [vmem:[%s5 + $0x68] sm:$0xff] %vm318, %v315
  %333 = vst.msk [vmem:[%s5 + $0x70] sm:$0xff] %vm318, %v316
  %334 = vst.msk [vmem:[%s5 + $0x78] sm:$0xff] %vm318, %v317
  // Predicated region
  $region22: #{densenet_forward.14} parent=0 // pred_check
    _
  $region23: #{densenet_forward.14} parent=0 // pred_check_branch
    %336 = sbr.rel (0) target = $region25
  $region24: #{densenet_forward.14} parent=0 // pred_region
    _
  $region25: #{densenet_forward.14} parent=0 // pred_fallthru
    _
  // Predicated region
  $region26: #{densenet_forward.14} parent=0 // pred_check
    _
  $region27: #{densenet_forward.14} parent=0 // pred_check_branch
    %338 = sbr.rel (0) target = $region29
  $region28: #{densenet_forward.14} parent=0 // pred_region
    _
  $region29: #{densenet_forward.14} parent=0 // pred_fallthru
    _

// kernel: densenet_forward.16
$region0: #{densenet_forward.16}
  #allocation0 [shape = 'u32[]', space=smem, size = 0x4, offset = 0x4, fixed_abs, tag = 'smem constant byte address 0x4 - core index']
  #allocation1 [shape = 'u32[144,128]{1,0:T(1,128)}', space=vmem, size = 0x12000, scoped, tag = 'internal scratch']
  %s0 = inlined_call_operand.vmem [shape: f32[128,32], index: 0, kind: input, shape index: {}]
  %s1 = inlined_call_operand.vmem [shape: f32[1,32], index: 1, kind: input, shape index: {}]
  %s2 = inlined_call_operand.vmem [shape: f32[1,32], index: 2, kind: input, shape index: {}]
  %s3 = inlined_call_operand.vmem [shape: f32[32,16], index: 3, kind: input, shape index: {}]
  %s4 = inlined_call_operand.vmem [shape: f32[128,16], index: 4, kind: output, shape index: {}]
  %s5 = sld [smem:[#allocation0]]
  $region26: #{densenet_forward.16} parent=0
    _
  %s7 = ssub.s32 1, %s5
  %s8 = scalar_select 0, %s7, %s5
  // Predicated region
  $region2: #{densenet_forward.16} parent=0 // pred_check
    _
  $region3: #{densenet_forward.16} parent=0 // pred_check_branch
    %10 = sbr.rel (0) target = $region5
  $region4: #{densenet_forward.16} parent=0 // pred_region
    _
  $region5: #{densenet_forward.16} parent=0 // pred_fallthru
    _
  // Predicated region
  $region6: #{densenet_forward.16} parent=0 // pred_check
    _
  $region7: #{densenet_forward.16} parent=0 // pred_check_branch
    %12 = sbr.rel (0) target = $region9
  $region8: #{densenet_forward.16} parent=0 // pred_region
    _
  $region9: #{densenet_forward.16} parent=0 // pred_fallthru
    _
  // Predicated region
  $region10: #{densenet_forward.16} parent=0 // pred_check
    _
  $region11: #{densenet_forward.16} parent=0 // pred_check_branch
    %14 = sbr.rel (0) target = $region13
  $region12: #{densenet_forward.16} parent=0 // pred_region
    _
  $region13: #{densenet_forward.16} parent=0 // pred_fallthru
    _
  // Predicated region
  $region14: #{densenet_forward.16} parent=0 // pred_check
    _
  $region15: #{densenet_forward.16} parent=0 // pred_check_branch
    %16 = sbr.rel (0) target = $region17
  $region16: #{densenet_forward.16} parent=0 // pred_region
    _
  $region17: #{densenet_forward.16} parent=0 // pred_fallthru
    _
  %v17 = vld [vmem:[%s0] sm:$0xff]
  %v18 = vld [vmem:[%s0 + $0x8] sm:$0xff]
  %v19 = vld [vmem:[%s0 + $0x10] sm:$0xff]
  %v20 = vld [vmem:[%s0 + $0x18] sm:$0xff]
  %v21 = vld [vmem:[%s0 + $0x20] sm:$0xff]
  %v22 = vld [vmem:[%s0 + $0x28] sm:$0xff]
  %v23 = vld [vmem:[%s0 + $0x30] sm:$0xff]
  %v24 = vld [vmem:[%s0 + $0x38] sm:$0xff]
  %v25 = vld [vmem:[%s0 + $0x40] sm:$0xff]
  %v26 = vld [vmem:[%s0 + $0x48] sm:$0xff]
  %v27 = vld [vmem:[%s0 + $0x50] sm:$0xff]
  %v28 = vld [vmem:[%s0 + $0x58] sm:$0xff]
  %v29 = vld [vmem:[%s0 + $0x60] sm:$0xff]
  %v30 = vld [vmem:[%s0 + $0x68] sm:$0xff]
  %v31 = vld [vmem:[%s0 + $0x70] sm:$0xff]
  %v32 = vld [vmem:[%s0 + $0x78] sm:$0xff]
  %v33 = vld [vmem:[%s1] sm:$0x1]
  %v35 = vlaneseq
  %v36 = vshrl.u32 %v35, 7
  %v37 = vsub.s32 0, %v36
  %v38 = vrot.slane %v33, %v37
  %v40 = vmul.f32 %v17, %v38
  %v41 = vmul.f32 %v18, %v38
  %v42 = vmul.f32 %v19, %v38
  %v43 = vmul.f32 %v20, %v38
  %v44 = vmul.f32 %v21, %v38
  %v45 = vmul.f32 %v22, %v38
  %v46 = vmul.f32 %v23, %v38
  %v47 = vmul.f32 %v24, %v38
  %v48 = vmul.f32 %v25, %v38
  %v49 = vmul.f32 %v26, %v38
  %v50 = vmul.f32 %v27, %v38
  %v51 = vmul.f32 %v28, %v38
  %v52 = vmul.f32 %v29, %v38
  %v53 = vmul.f32 %v30, %v38
  %v54 = vmul.f32 %v31, %v38
  %v55 = vmul.f32 %v32, %v38
  %v56 = vld [vmem:[%s2] sm:$0x1]
  %v58 = vlaneseq
  %v59 = vshrl.u32 %v58, 7
  %v60 = vsub.s32 0, %v59
  %v61 = vrot.slane %v56, %v60
  %v63 = vadd.f32 %v40, %v61
  %v64 = vadd.f32 %v41, %v61
  %v65 = vadd.f32 %v42, %v61
  %v66 = vadd.f32 %v43, %v61
  %v67 = vadd.f32 %v44, %v61
  %v68 = vadd.f32 %v45, %v61
  %v69 = vadd.f32 %v46, %v61
  %v70 = vadd.f32 %v47, %v61
  %v71 = vadd.f32 %v48, %v61
  %v72 = vadd.f32 %v49, %v61
  %v73 = vadd.f32 %v50, %v61
  %v74 = vadd.f32 %v51, %v61
  %v75 = vadd.f32 %v52, %v61
  %v76 = vadd.f32 %v53, %v61
  %v77 = vadd.f32 %v54, %v61
  %v78 = vadd.f32 %v55, %v61
  %v79 = vmax.f32 %v63, 0.0
  %v80 = vmax.f32 %v64, 0.0
  %v81 = vmax.f32 %v65, 0.0
  %v82 = vmax.f32 %v66, 0.0
  %v83 = vmax.f32 %v67, 0.0
  %v84 = vmax.f32 %v68, 0.0
  %v85 = vmax.f32 %v69, 0.0
  %v86 = vmax.f32 %v70, 0.0
  %v87 = vmax.f32 %v71, 0.0
  %v88 = vmax.f32 %v72, 0.0
  %v89 = vmax.f32 %v73, 0.0
  %v90 = vmax.f32 %v74, 0.0
  %v91 = vmax.f32 %v75, 0.0
  %v92 = vmax.f32 %v76, 0.0
  %v93 = vmax.f32 %v77, 0.0
  %v94 = vmax.f32 %v78, 0.0
  %v95 = vld [vmem:[%s3] sm:$0xff]
  %v96 = vld [vmem:[%s3 + $0x8] sm:$0xff]
  %v97 = vld [vmem:[%s3 + $0x10] sm:$0xff]
  %v98 = vld [vmem:[%s3 + $0x18] sm:$0xff]
  %vm99 = vcmask 261120
  %v101 = vsel %vm99, %v79, 0
  %v104 = vsel %vm99, %v80, 0
  %v107 = vsel %vm99, %v81, 0
  %v110 = vsel %vm99, %v82, 0
  %v113 = vsel %vm99, %v83, 0
  %v116 = vsel %vm99, %v84, 0
  %v119 = vsel %vm99, %v85, 0
  %v122 = vsel %vm99, %v86, 0
  %v125 = vsel %vm99, %v87, 0
  %v128 = vsel %vm99, %v88, 0
  %v131 = vsel %vm99, %v89, 0
  %v134 = vsel %vm99, %v90, 0
  %v137 = vsel %vm99, %v91, 0
  %v140 = vsel %vm99, %v92, 0
  %v143 = vsel %vm99, %v93, 0
  %v146 = vsel %vm99, %v94, 0
  %148 = vmatprep.subr.mxu0 0.0
  %149 = vmatpush1.msra.mxu0 %v95
  %150 = vmatprep.subr.mxu0 0.0
  %151 = vmatpush1.msra.mxu0 %v96
  %152 = vmatprep.subr.mxu0 0.0
  %153 = vmatpush1.msra.mxu0 %v97
  %154 = vmatprep.subr.mxu0 0.0
  %155 = vmatpush1.msra.mxu0 %v98
  %156 = vmatprep.subr.mxu0 0.0
  %157 = vmatpush1.msra.mxu0 0.0
  %158 = vmatprep.subr.mxu0 0.0
  %159 = vmatpush1.msra.mxu0 0.0
  %160 = vmatprep.subr.mxu0 0.0
  %161 = vmatpush1.msra.mxu0 0.0
  %162 = vmatprep.subr.mxu0 0.0
  %163 = vmatpush1.msra.mxu0 0.0
  %164 = vmatprep.subr.mxu0 0.0
  %165 = vmatpush1.msra.mxu0 0.0
  %166 = vmatprep.subr.mxu0 0.0
  %167 = vmatpush1.msra.mxu0 0.0
  %168 = vmatprep.subr.mxu0 0.0
  %169 = vmatpush1.msra.mxu0 0.0
  %170 = vmatprep.subr.mxu0 0.0
  %171 = vmatpush1.msra.mxu0 0.0
  %172 = vmatprep.subr.mxu0 0.0
  %173 = vmatpush1.msra.mxu0 0.0
  %174 = vmatprep.subr.mxu0 0.0
  %175 = vmatpush1.msra.mxu0 0.0
  %176 = vmatprep.subr.mxu0 0.0
  %177 = vmatpush1.msra.mxu0 0.0
  %178 = vmatprep.subr.mxu0 0.0
  %179 = vmatpush1.msra.mxu0 0.0
  %180 = vmatprep.subr.mxu0 0.0
  %181 = vmatpush1.msra.mxu0 0.0
  %182 = vmatprep.subr.mxu0 0.0
  %183 = vmatpush1.msra.mxu0 0.0
  %184 = vmatprep.subr.mxu0 0.0
  %185 = vmatpush1.msra.mxu0 0.0
  %186 = vmatprep.subr.mxu0 0.0
  %187 = vmatpush1.msra.mxu0 0.0
  %188 = vmatprep.subr.mxu0 0.0
  %189 = vmatpush1.msra.mxu0 0.0
  %190 = vmatprep.subr.mxu0 0.0
  %191 = vmatpush1.msra.mxu0 0.0
  %192 = vmatprep.subr.mxu0 0.0
  %193 = vmatpush1.msra.mxu0 0.0
  %194 = vmatprep.subr.mxu0 0.0
  %195 = vmatpush1.msra.mxu0 0.0
  %196 = vmatprep.subr.mxu0 0.0
  %197 = vmatpush1.msra.mxu0 0.0
  %198 = vmatprep.subr.mxu0 0.0
  %199 = vmatpush1.msra.mxu0 0.0
  %200 = vmatprep.subr.mxu0 0.0
  %201 = vmatpush1.msra.mxu0 0.0
  %202 = vmatprep.subr.mxu0 0.0
  %203 = vmatpush1.msra.mxu0 0.0
  %204 = vmatprep.subr.mxu0 0.0
  %205 = vmatpush1.msra.mxu0 0.0
  %206 = vmatprep.subr.mxu0 0.0
  %207 = vmatpush1.msra.mxu0 0.0
  %208 = vmatprep.subr.mxu0 0.0
  %209 = vmatpush1.msra.mxu0 0.0
  %210 = vmatprep.subr.mxu0 0.0
  %211 = vmatpush1.msra.mxu0 0.0
  %212 = vmatprep.mubr.f32.mxu0 0.0
  %213 = vmatmul.mubr.f32.gmra.mrb[0].mxu0 %v101
  %v214 = vpop.f32.mrb[0].mxu0
  %v215 = vadd.f32 0.0, %v214
  %v216 = vpop.f32.mrb[0].mxu0
  %217 = vmatprep.mubr.f32.mxu0 0.0
  %218 = vmatmul.mubr.f32.gmra.mrb[0].mxu0 %v104
  %v219 = vpop.f32.mrb[0].mxu0
  %v220 = vadd.f32 0.0, %v219
  %v221 = vpop.f32.mrb[0].mxu0
  %222 = vmatprep.mubr.f32.mxu0 0.0
  %223 = vmatmul.mubr.f32.gmra.mrb[0].mxu0 %v107
  %v224 = vpop.f32.mrb[0].mxu0
  %v225 = vadd.f32 0.0, %v224
  %v226 = vpop.f32.mrb[0].mxu0
  %227 = vmatprep.mubr.f32.mxu0 0.0
  %228 = vmatmul.mubr.f32.gmra.mrb[0].mxu0 %v110
  %v229 = vpop.f32.mrb[0].mxu0
  %v230 = vadd.f32 0.0, %v229
  %v231 = vpop.f32.mrb[0].mxu0
  %232 = vmatprep.mubr.f32.mxu0 0.0
  %233 = vmatmul.mubr.f32.gmra.mrb[0].mxu0 %v113
  %v234 = vpop.f32.mrb[0].mxu0
  %v235 = vadd.f32 0.0, %v234
  %v236 = vpop.f32.mrb[0].mxu0
  %237 = vmatprep.mubr.f32.mxu0 0.0
  %238 = vmatmul.mubr.f32.gmra.mrb[0].mxu0 %v116
  %v239 = vpop.f32.mrb[0].mxu0
  %v240 = vadd.f32 0.0, %v239
  %v241 = vpop.f32.mrb[0].mxu0
  %242 = vmatprep.mubr.f32.mxu0 0.0
  %243 = vmatmul.mubr.f32.gmra.mrb[0].mxu0 %v119
  %v244 = vpop.f32.mrb[0].mxu0
  %v245 = vadd.f32 0.0, %v244
  %v246 = vpop.f32.mrb[0].mxu0
  %247 = vmatprep.mubr.f32.mxu0 0.0
  %248 = vmatmul.mubr.f32.gmra.mrb[0].mxu0 %v122
  %v249 = vpop.f32.mrb[0].mxu0
  %v250 = vadd.f32 0.0, %v249
  %v251 = vpop.f32.mrb[0].mxu0
  %252 = vmatprep.mubr.f32.mxu0 0.0
  %253 = vmatmul.mubr.f32.gmra.mrb[0].mxu0 %v125
  %v254 = vpop.f32.mrb[0].mxu0
  %v255 = vadd.f32 0.0, %v254
  %v256 = vpop.f32.mrb[0].mxu0
  %257 = vmatprep.mubr.f32.mxu0 0.0
  %258 = vmatmul.mubr.f32.gmra.mrb[0].mxu0 %v128
  %v259 = vpop.f32.mrb[0].mxu0
  %v260 = vadd.f32 0.0, %v259
  %v261 = vpop.f32.mrb[0].mxu0
  %262 = vmatprep.mubr.f32.mxu0 0.0
  %263 = vmatmul.mubr.f32.gmra.mrb[0].mxu0 %v131
  %v264 = vpop.f32.mrb[0].mxu0
  %v265 = vadd.f32 0.0, %v264
  %v266 = vpop.f32.mrb[0].mxu0
  %267 = vmatprep.mubr.f32.mxu0 0.0
  %268 = vmatmul.mubr.f32.gmra.mrb[0].mxu0 %v134
  %v269 = vpop.f32.mrb[0].mxu0
  %v270 = vadd.f32 0.0, %v269
  %v271 = vpop.f32.mrb[0].mxu0
  %272 = vmatprep.mubr.f32.mxu0 0.0
  %273 = vmatmul.mubr.f32.gmra.mrb[0].mxu0 %v137
  %v274 = vpop.f32.mrb[0].mxu0
  %v275 = vadd.f32 0.0, %v274
  %v276 = vpop.f32.mrb[0].mxu0
  %277 = vmatprep.mubr.f32.mxu0 0.0
  %278 = vmatmul.mubr.f32.gmra.mrb[0].mxu0 %v140
  %v279 = vpop.f32.mrb[0].mxu0
  %v280 = vadd.f32 0.0, %v279
  %v281 = vpop.f32.mrb[0].mxu0
  %282 = vmatprep.mubr.f32.mxu0 0.0
  %283 = vmatmul.mubr.f32.gmra.mrb[0].mxu0 %v143
  %v284 = vpop.f32.mrb[0].mxu0
  %v285 = vadd.f32 0.0, %v284
  %v286 = vpop.f32.mrb[0].mxu0
  %287 = vmatprep.mubr.f32.mxu0 0.0
  %288 = vmatmul.mubr.f32.gmra.mrb[0].mxu0 %v146
  %v289 = vpop.f32.mrb[0].mxu0
  %v290 = vadd.f32 0.0, %v289
  %v291 = vpop.f32.mrb[0].mxu0
  %292 = vdwg.mxu0
  %vm293 = vcmask 130048
  %294 = vst.msk [vmem:[%s4] sm:$0xff] %vm293, %v215
  %295 = vst.msk [vmem:[%s4 + $0x8] sm:$0xff] %vm293, %v220
  %296 = vst.msk [vmem:[%s4 + $0x10] sm:$0xff] %vm293, %v225
  %297 = vst.msk [vmem:[%s4 + $0x18] sm:$0xff] %vm293, %v230
  %298 = vst.msk [vmem:[%s4 + $0x20] sm:$0xff] %vm293, %v235
  %299 = vst.msk [vmem:[%s4 + $0x28] sm:$0xff] %vm293, %v240
  %300 = vst.msk [vmem:[%s4 + $0x30] sm:$0xff] %vm293, %v245
  %301 = vst.msk [vmem:[%s4 + $0x38] sm:$0xff] %vm293, %v250
  %302 = vst.msk [vmem:[%s4 + $0x40] sm:$0xff] %vm293, %v255
  %303 = vst.msk [vmem:[%s4 + $0x48] sm:$0xff] %vm293, %v260
  %304 = vst.msk [vmem:[%s4 + $0x50] sm:$0xff] %vm293, %v265
  %305 = vst.msk [vmem:[%s4 + $0x58] sm:$0xff] %vm293, %v270
  %306 = vst.msk [vmem:[%s4 + $0x60] sm:$0xff] %vm293, %v275
  %307 = vst.msk [vmem:[%s4 + $0x68] sm:$0xff] %vm293, %v280
  %308 = vst.msk [vmem:[%s4 + $0x70] sm:$0xff] %vm293, %v285
  %309 = vst.msk [vmem:[%s4 + $0x78] sm:$0xff] %vm293, %v290
  // Predicated region
  $region18: #{densenet_forward.16} parent=0 // pred_check
    _
  $region19: #{densenet_forward.16} parent=0 // pred_check_branch
    %311 = sbr.rel (0) target = $region21
  $region20: #{densenet_forward.16} parent=0 // pred_region
    _
  $region21: #{densenet_forward.16} parent=0 // pred_fallthru
    _
  // Predicated region
  $region22: #{densenet_forward.16} parent=0 // pred_check
    _
  $region23: #{densenet_forward.16} parent=0 // pred_check_branch
    %313 = sbr.rel (0) target = $region25
  $region24: #{densenet_forward.16} parent=0 // pred_region
    _
  $region25: #{densenet_forward.16} parent=0 // pred_fallthru
    _

// kernel: densenet_forward.17
$region0: #{densenet_forward.17}
  #allocation0 [shape = 'u32[]', space=smem, size = 0x4, offset = 0x4, fixed_abs, tag = 'smem constant byte address 0x4 - core index']
  #allocation1 [shape = 'u32[144,128]{1,0:T(1,128)}', space=vmem, size = 0x12000, scoped, tag = 'internal scratch']
  %s0 = inlined_call_operand.vmem [shape: f32[32,16], index: 0, kind: input, shape index: {}]
  %s1 = inlined_call_operand.vmem [shape: f32[1,16], index: 1, kind: input, shape index: {}]
  %s2 = inlined_call_operand.vmem [shape: f32[1,16], index: 2, kind: input, shape index: {}, may-alias: {2,4}]
  %s3 = inlined_call_operand.vmem [shape: f32[16,16], index: 3, kind: input, shape index: {}]
  %s4 = inlined_call_operand.vmem [shape: f32[1,16], index: 4, kind: input, shape index: {}, may-alias: {2,4}]
  %s5 = inlined_call_operand.vmem [shape: f32[32,16], index: 5, kind: output, shape index: {}]
  %s6 = sld [smem:[#allocation0]]
  $region30: #{densenet_forward.17} parent=0
    _
  %s8 = ssub.s32 1, %s6
  %s9 = scalar_select 0, %s8, %s6
  // Predicated region
  $region2: #{densenet_forward.17} parent=0 // pred_check
    _
  $region3: #{densenet_forward.17} parent=0 // pred_check_branch
    %11 = sbr.rel (0) target = $region5
  $region4: #{densenet_forward.17} parent=0 // pred_region
    _
  $region5: #{densenet_forward.17} parent=0 // pred_fallthru
    _
  // Predicated region
  $region6: #{densenet_forward.17} parent=0 // pred_check
    _
  $region7: #{densenet_forward.17} parent=0 // pred_check_branch
    %13 = sbr.rel (0) target = $region9
  $region8: #{densenet_forward.17} parent=0 // pred_region
    _
  $region9: #{densenet_forward.17} parent=0 // pred_fallthru
    _
  // Predicated region
  $region10: #{densenet_forward.17} parent=0 // pred_check
    _
  $region11: #{densenet_forward.17} parent=0 // pred_check_branch
    %15 = sbr.rel (0) target = $region13
  $region12: #{densenet_forward.17} parent=0 // pred_region
    _
  $region13: #{densenet_forward.17} parent=0 // pred_fallthru
    _
  // Predicated region
  $region14: #{densenet_forward.17} parent=0 // pred_check
    _
  $region15: #{densenet_forward.17} parent=0 // pred_check_branch
    %17 = sbr.rel (0) target = $region17
  $region16: #{densenet_forward.17} parent=0 // pred_region
    _
  $region17: #{densenet_forward.17} parent=0 // pred_fallthru
    _
  // Predicated region
  $region18: #{densenet_forward.17} parent=0 // pred_check
    _
  $region19: #{densenet_forward.17} parent=0 // pred_check_branch
    %19 = sbr.rel (0) target = $region21
  $region20: #{densenet_forward.17} parent=0 // pred_region
    _
  $region21: #{densenet_forward.17} parent=0 // pred_fallthru
    _
  %v20 = vld [vmem:[%s0] sm:$0xff]
  %v21 = vld [vmem:[%s0 + $0x8] sm:$0xff]
  %v22 = vld [vmem:[%s0 + $0x10] sm:$0xff]
  %v23 = vld [vmem:[%s0 + $0x18] sm:$0xff]
  %v24 = vld [vmem:[%s1] sm:$0x1]
  %v26 = vlaneseq
  %v27 = vshrl.u32 %v26, 7
  %v28 = vsub.s32 0, %v27
  %v29 = vrot.slane %v24, %v28
  %v31 = vmul.f32 %v20, %v29
  %v32 = vmul.f32 %v21, %v29
  %v33 = vmul.f32 %v22, %v29
  %v34 = vmul.f32 %v23, %v29
  %v35 = vld [vmem:[%s2] sm:$0x1]
  %v37 = vlaneseq
  %v38 = vshrl.u32 %v37, 7
  %v39 = vsub.s32 0, %v38
  %v40 = vrot.slane %v35, %v39
  %v42 = vadd.f32 %v31, %v40
  %v43 = vadd.f32 %v32, %v40
  %v44 = vadd.f32 %v33, %v40
  %v45 = vadd.f32 %v34, %v40
  %v46 = vmax.f32 %v42, 0.0
  %v47 = vmax.f32 %v43, 0.0
  %v48 = vmax.f32 %v44, 0.0
  %v49 = vmax.f32 %v45, 0.0
  %v50 = vld [vmem:[%s3] sm:$0xff]
  %v51 = vld [vmem:[%s3 + $0x8] sm:$0xff]
  %v52 = vld [vmem:[%s4] sm:$0x1]
  %v54 = vlaneseq
  %v55 = vshrl.u32 %v54, 7
  %v56 = vsub.s32 0, %v55
  %v57 = vrot.slane %v52, %v56
  %vm59 = vcmask 130048
  %v61 = vsel %vm59, %v46, 0
  %v64 = vsel %vm59, %v47, 0
  %v67 = vsel %vm59, %v48, 0
  %v70 = vsel %vm59, %v49, 0
  %72 = vmatprep.subr.mxu0 0.0
  %73 = vmatpush1.msra.mxu0 %v50
  %74 = vmatprep.subr.mxu0 0.0
  %75 = vmatpush1.msra.mxu0 %v51
  %76 = vmatprep.subr.mxu0 0.0
  %77 = vmatpush1.msra.mxu0 0.0
  %78 = vmatprep.subr.mxu0 0.0
  %79 = vmatpush1.msra.mxu0 0.0
  %80 = vmatprep.subr.mxu0 0.0
  %81 = vmatpush1.msra.mxu0 0.0
  %82 = vmatprep.subr.mxu0 0.0
  %83 = vmatpush1.msra.mxu0 0.0
  %84 = vmatprep.subr.mxu0 0.0
  %85 = vmatpush1.msra.mxu0 0.0
  %86 = vmatprep.subr.mxu0 0.0
  %87 = vmatpush1.msra.mxu0 0.0
  %88 = vmatprep.subr.mxu0 0.0
  %89 = vmatpush1.msra.mxu0 0.0
  %90 = vmatprep.subr.mxu0 0.0
  %91 = vmatpush1.msra.mxu0 0.0
  %92 = vmatprep.subr.mxu0 0.0
  %93 = vmatpush1.msra.mxu0 0.0
  %94 = vmatprep.subr.mxu0 0.0
  %95 = vmatpush1.msra.mxu0 0.0
  %96 = vmatprep.subr.mxu0 0.0
  %97 = vmatpush1.msra.mxu0 0.0
  %98 = vmatprep.subr.mxu0 0.0
  %99 = vmatpush1.msra.mxu0 0.0
  %100 = vmatprep.subr.mxu0 0.0
  %101 = vmatpush1.msra.mxu0 0.0
  %102 = vmatprep.subr.mxu0 0.0
  %103 = vmatpush1.msra.mxu0 0.0
  %104 = vmatprep.subr.mxu0 0.0
  %105 = vmatpush1.msra.mxu0 0.0
  %106 = vmatprep.subr.mxu0 0.0
  %107 = vmatpush1.msra.mxu0 0.0
  %108 = vmatprep.subr.mxu0 0.0
  %109 = vmatpush1.msra.mxu0 0.0
  %110 = vmatprep.subr.mxu0 0.0
  %111 = vmatpush1.msra.mxu0 0.0
  %112 = vmatprep.subr.mxu0 0.0
  %113 = vmatpush1.msra.mxu0 0.0
  %114 = vmatprep.subr.mxu0 0.0
  %115 = vmatpush1.msra.mxu0 0.0
  %116 = vmatprep.subr.mxu0 0.0
  %117 = vmatpush1.msra.mxu0 0.0
  %118 = vmatprep.subr.mxu0 0.0
  %119 = vmatpush1.msra.mxu0 0.0
  %120 = vmatprep.subr.mxu0 0.0
  %121 = vmatpush1.msra.mxu0 0.0
  %122 = vmatprep.subr.mxu0 0.0
  %123 = vmatpush1.msra.mxu0 0.0
  %124 = vmatprep.subr.mxu0 0.0
  %125 = vmatpush1.msra.mxu0 0.0
  %126 = vmatprep.subr.mxu0 0.0
  %127 = vmatpush1.msra.mxu0 0.0
  %128 = vmatprep.subr.mxu0 0.0
  %129 = vmatpush1.msra.mxu0 0.0
  %130 = vmatprep.subr.mxu0 0.0
  %131 = vmatpush1.msra.mxu0 0.0
  %132 = vmatprep.subr.mxu0 0.0
  %133 = vmatpush1.msra.mxu0 0.0
  %134 = vmatprep.subr.mxu0 0.0
  %135 = vmatpush1.msra.mxu0 0.0
  %136 = vmatprep.mubr.f32.mxu0 0.0
  %137 = vmatmul.mubr.f32.gmra.mrb[0].mxu0 %v61
  %v138 = vpop.f32.mrb[0].mxu0
  %v139 = vadd.f32 %v57, %v138
  %v140 = vpop.f32.mrb[0].mxu0
  %141 = vmatprep.mubr.f32.mxu0 0.0
  %142 = vmatmul.mubr.f32.gmra.mrb[0].mxu0 %v64
  %v143 = vpop.f32.mrb[0].mxu0
  %v144 = vadd.f32 %v57, %v143
  %v145 = vpop.f32.mrb[0].mxu0
  %146 = vmatprep.mubr.f32.mxu0 0.0
  %147 = vmatmul.mubr.f32.gmra.mrb[0].mxu0 %v67
  %v148 = vpop.f32.mrb[0].mxu0
  %v149 = vadd.f32 %v57, %v148
  %v150 = vpop.f32.mrb[0].mxu0
  %151 = vmatprep.mubr.f32.mxu0 0.0
  %152 = vmatmul.mubr.f32.gmra.mrb[0].mxu0 %v70
  %v153 = vpop.f32.mrb[0].mxu0
  %v154 = vadd.f32 %v57, %v153
  %v155 = vpop.f32.mrb[0].mxu0
  %156 = vdwg.mxu0
  %v157 = vmax.f32 %v139, 0.0
  %v158 = vmax.f32 %v144, 0.0
  %v159 = vmax.f32 %v149, 0.0
  %v160 = vmax.f32 %v154, 0.0
  %161 = vst.msk [vmem:[%s5] sm:$0xff] %vm59, %v157
  %162 = vst.msk [vmem:[%s5 + $0x8] sm:$0xff] %vm59, %v158
  %163 = vst.msk [vmem:[%s5 + $0x10] sm:$0xff] %vm59, %v159
  %164 = vst.msk [vmem:[%s5 + $0x18] sm:$0xff] %vm59, %v160
  // Predicated region
  $region22: #{densenet_forward.17} parent=0 // pred_check
    _
  $region23: #{densenet_forward.17} parent=0 // pred_check_branch
    %166 = sbr.rel (0) target = $region25
  $region24: #{densenet_forward.17} parent=0 // pred_region
    _
  $region25: #{densenet_forward.17} parent=0 // pred_fallthru
    _
  // Predicated region
  $region26: #{densenet_forward.17} parent=0 // pred_check
    _
  $region27: #{densenet_forward.17} parent=0 // pred_check_branch
    %168 = sbr.rel (0) target = $region29
  $region28: #{densenet_forward.17} parent=0 // pred_region
    _
  $region29: #{densenet_forward.17} parent=0 // pred_fallthru
    _

// kernel: densenet_forward.18
$region0: #{densenet_forward.18}
  #allocation0 [shape = 'u32[]', space=smem, size = 0x4, offset = 0x4, fixed_abs, tag = 'smem constant byte address 0x4 - core index']
  #allocation1 [shape = 'u32[144,128]{1,0:T(1,128)}', space=vmem, size = 0x12000, scoped, tag = 'internal scratch']
  %s0 = inlined_call_operand.vmem [shape: f32[2,42,16], index: 0, kind: input, shape index: {}]
  %s1 = inlined_call_operand.vmem [shape: f32[9,16,8], index: 1, kind: input, shape index: {}]
  %s2 = inlined_call_operand.vmem [shape: f32[2,24,8], index: 2, kind: output, shape index: {}]
  %s3 = sld [smem:[#allocation0]]
  $region41: #{densenet_forward.18} parent=0
    _
  %s5 = ssub.s32 1, %s3
  %s6 = scalar_select 0, %s5, %s3
  loop: start=0, step=1, limit=4
  $region2: #{densenet_forward.18} parent=0 // loop_pre_header
    _
  $region3: #{densenet_forward.18} parent=0 // loop_header
    %s8 = sphi 0, %s12
    %p9 = scmp.ge.s32.totalorder %s8, 4
    %s18 = sphi 0, %s20
    %s21 = sphi 0, %s18
    %s22 = sphi 0, %s21
    %s38 = sphi 0, %s22
    %s42 = sphi 0, %s42
    %s44 = sphi 0, %s42
    %s45 = sphi 0, %s44
    %s59 = sphi 0, %s45
    %s65 = sphi 0, %s67
    %s68 = sphi 0, %s65
    %s69 = sphi 0, %s68
    %s85 = sphi 0, %s69
  $region4: #{densenet_forward.18} parent=0 // loop_header_branch
    %11 = sbr.rel (%p9) target = $region8
  $region5: #{densenet_forward.18} parent=0 // loop_body
    %s13 = ssub.s32 %s8, 1
    %s14 = ssub.s32 %s8, 2
    %s15 = sadd.s32 %s8, 1
    %s16 = ssub.s32 %s8, %s15
    %p17 = scmp.eq.s32.totalorder %s16, 0
    %s19 = sadd.s32 %s18, 1
    %s20 = scalar_select %p17, %s18, %s19
    %p23 = pneg %p17
    %p24 = scmp.eq.s32.totalorder %s8, 1
    %p25 = por %p23, %p24
    %p26 = scmp.ne.s32.totalorder %s18, %s21
    %p27 = scmp.eq.s32.totalorder %s8, 0
    %p28 = por %p26, %p27
    %p29 = scmp.ne.s32.totalorder %s18, %s21
    %p30 = scmp.eq.s32.totalorder %s13, 1
    %p31 = por %p29, %p30
    %p32 = scmp.ne.s32.totalorder %s21, %s22
    %p33 = scmp.eq.s32.totalorder %s13, 0
    %p34 = por %p32, %p33
    %p35 = scmp.ne.s32.totalorder %s21, %s22
    %p36 = scmp.eq.s32.totalorder %s14, 1
    %p37 = por %p35, %p36
    %p39 = scmp.ne.s32.totalorder %s22, %s38
    %p40 = scmp.eq.s32.totalorder %s14, 0
    %p41 = por %p39, %p40
    %s43 = sadd.s32 %s42, 1
    %p46 = scmp.eq.s32.totalorder %s8, 1
    %p47 = scmp.ne.s32.totalorder %s42, %s44
    %p48 = scmp.eq.s32.totalorder %s8, 0
    %p49 = por %p47, %p48
    %p50 = scmp.ne.s32.totalorder %s42, %s44
    %p51 = scmp.eq.s32.totalorder %s13, 1
    %p52 = por %p50, %p51
    %p53 = scmp.ne.s32.totalorder %s44, %s45
    %p54 = scmp.eq.s32.totalorder %s13, 0
    %p55 = por %p53, %p54
    %p56 = scmp.ne.s32.totalorder %s44, %s45
    %p57 = scmp.eq.s32.totalorder %s14, 1
    %p58 = por %p56, %p57
    %p60 = scmp.ne.s32.totalorder %s45, %s59
    %p61 = scmp.eq.s32.totalorder %s14, 0
    %p62 = por %p60, %p61
    %s63 = ssub.s32 %s8, %s15
    %p64 = scmp.eq.s32.totalorder %s63, 0
    %s66 = sadd.s32 %s65, 1
    %s67 = scalar_select %p64, %s65, %s66
    %p70 = pneg %p64
    %p71 = scmp.eq.s32.totalorder %s8, 1
    %p72 = por %p70, %p71
    %p73 = scmp.ne.s32.totalorder %s65, %s68
    %p74 = scmp.eq.s32.totalorder %s8, 0
    %p75 = por %p73, %p74
    %p76 = scmp.ne.s32.totalorder %s65, %s68
    %p77 = scmp.eq.s32.totalorder %s13, 1
    %p78 = por %p76, %p77
    %p79 = scmp.ne.s32.totalorder %s68, %s69
    %p80 = scmp.eq.s32.totalorder %s13, 0
    %p81 = por %p79, %p80
    %p82 = scmp.ne.s32.totalorder %s68, %s69
    %p83 = scmp.eq.s32.totalorder %s14, 1
    %p84 = por %p82, %p83
    %p86 = scmp.ne.s32.totalorder %s69, %s85
    %p87 = scmp.eq.s32.totalorder %s14, 0
    %p88 = por %p86, %p87
    %p89 = scmp.le.s32.totalorder 1, %s8
    %p90 = scmp.lt.s32.totalorder %s8, 3
    %p91 = pnand %p89, %p90
    %p92 = pneg %p91
    // Predicated region
    $region9: #{densenet_forward.18} parent=5 // pred_check
      _
    $region10: #{densenet_forward.18} parent=5 // pred_check_branch
      %94 = sbr.rel (%p91) target = $region12
    $region11: #{densenet_forward.18} parent=5 // pred_region
      %s95 = ssub.s32 %s8, 1
      // Predicated region
      $region13: #{densenet_forward.18} parent=11 // pred_check
        %p96 = pneg %p55
      $region14: #{densenet_forward.18} parent=11 // pred_check_branch
        %98 = sbr.rel (%p96) target = $region16
      $region15: #{densenet_forward.18} parent=11 // pred_region
        _
      $region16: #{densenet_forward.18} parent=11 // pred_fallthru
        _
    $region12: #{densenet_forward.18} parent=5 // pred_fallthru
      _
    %p99 = scmp.lt.s32.totalorder %s8, 2
    // Predicated region
    $region17: #{densenet_forward.18} parent=5 // pred_check
      %p100 = pneg %p99
    $region18: #{densenet_forward.18} parent=5 // pred_check_branch
      %102 = sbr.rel (%p100) target = $region20
    $region19: #{densenet_forward.18} parent=5 // pred_region
      // Predicated region
      $region21: #{densenet_forward.18} parent=19 // pred_check
        %p103 = pneg %p28
      $region22: #{densenet_forward.18} parent=19 // pred_check_branch
        %105 = sbr.rel (%p103) target = $region24
      $region23: #{densenet_forward.18} parent=19 // pred_region
        %p106 = scmp.lt.s32.totalorder %s8, 1
        %s107 = scalar_select %p106, %s8, 1
        %s108 = smul.addr %s107, 6
        %s109 = smul.addr %s108, 8
        %s110 = scalar_lea.vmem %s0, %s109
      $region24: #{densenet_forward.18} parent=19 // pred_fallthru
        _
    $region20: #{densenet_forward.18} parent=5 // pred_fallthru
      _
    %p111 = scmp.le.s32.totalorder 1, %s8
    %p112 = scmp.lt.s32.totalorder %s8, 3
    %p113 = pnand %p111, %p112
    %p114 = pneg %p113
    // Predicated region
    $region25: #{densenet_forward.18} parent=5 // pred_check
      _
    $region26: #{densenet_forward.18} parent=5 // pred_check_branch
      %116 = sbr.rel (%p113) target = $region28
    $region27: #{densenet_forward.18} parent=5 // pred_region
      %s117 = ssub.s32 %s8, 1
      %p118 = scmp.lt.s32.totalorder %s13, 1
      %s119 = scalar_select %p118, %s13, 1
      %s120 = smul.addr %s119, 6
      %s121 = smul.addr %s120, 8
      %s122 = scalar_lea.vmem %s0, %s121
      %p123 = pneg %p34
      %p124 = pneg %p31
      %p125 = pneg %p55
      %p126 = pneg %p52
      %p127 = pneg %p81
      %p128 = pneg %p78
      %p129 = scmp.lt.s32.totalorder %s13, 1
      %s130 = scalar_select %p129, %s13, 1
      %s131 = smul.addr %s130, 3
      %s132 = smul.addr %s131, 8
      %s133 = scalar_lea.vmem %s2, %s132
      %p134 = scmp.lt.s32.totalorder %s13, 1
      %s135 = scalar_select %p134, %s13, 1
      %s136 = smul.addr %s135, 6
      %s137 = smul.addr %s136, 8
      %s138 = scalar_lea.vmem %s0, %s137
      %p139 = scmp.lt.s32.totalorder %s13, 1
      %s140 = scalar_select %p139, %s13, 1
      %s141 = smul.addr %s140, 3
      %s142 = smul.addr %s141, 8
      %s143 = scalar_lea.vmem %s2, %s142
      %v144 = vld [vmem:[%s138] sm:$0xff]
      %v145 = vld [vmem:[%s138 + $0x8] sm:$0xff]
      %v146 = vld [vmem:[%s138 + $0x10] sm:$0xff]
      %v147 = vld [vmem:[%s1] sm:$0xff]
      %v148 = vld [vmem:[%s1 + $0x8] sm:$0xff]
      %v149 = vld [vmem:[%s138 + $0x1] sm:$0xff]
      %v150 = vld [vmem:[%s138 + $0x9] sm:$0xff]
      %v151 = vld [vmem:[%s138 + $0x11] sm:$0xff]
      %s152 = scalar_lea.vmem %s1, 16
      %v153 = vld [vmem:[%s152] sm:$0xff]
      %v154 = vld [vmem:[%s152 + $0x8] sm:$0xff]
      %vm155 = vcmask 130048
      %v157 = vsel %vm155, %v149, 0
      %v160 = vsel %vm155, %v150, 0
      %v163 = vsel %vm155, %v151, 0
      %165 = vmatprep.subr.mxu0 0.0
      %166 = vmatpush1.msra.mxu0 %v153
      %167 = vmatprep.subr.mxu0 0.0
      %168 = vmatpush1.msra.mxu0 %v154
      %169 = vmatprep.subr.mxu0 0.0
      %170 = vmatpush1.msra.mxu0 0.0
      %171 = vmatprep.subr.mxu0 0.0
      %172 = vmatpush1.msra.mxu0 0.0
      %173 = vmatprep.subr.mxu0 0.0
      %174 = vmatpush1.msra.mxu0 0.0
      %175 = vmatprep.subr.mxu0 0.0
      %176 = vmatpush1.msra.mxu0 0.0
      %177 = vmatprep.subr.mxu0 0.0
      %178 = vmatpush1.msra.mxu0 0.0
      %179 = vmatprep.subr.mxu0 0.0
      %180 = vmatpush1.msra.mxu0 0.0
      %181 = vmatprep.subr.mxu0 0.0
      %182 = vmatpush1.msra.mxu0 0.0
      %183 = vmatprep.subr.mxu0 0.0
      %184 = vmatpush1.msra.mxu0 0.0
      %185 = vmatprep.subr.mxu0 0.0
      %186 = vmatpush1.msra.mxu0 0.0
      %187 = vmatprep.subr.mxu0 0.0
      %188 = vmatpush1.msra.mxu0 0.0
      %189 = vmatprep.subr.mxu0 0.0
      %190 = vmatpush1.msra.mxu0 0.0
      %191 = vmatprep.subr.mxu0 0.0
      %192 = vmatpush1.msra.mxu0 0.0
      %193 = vmatprep.subr.mxu0 0.0
      %194 = vmatpush1.msra.mxu0 0.0
      %195 = vmatprep.subr.mxu0 0.0
      %196 = vmatpush1.msra.mxu0 0.0
      %197 = vmatprep.subr.mxu0 0.0
      %198 = vmatpush1.msra.mxu0 0.0
      %199 = vmatprep.subr.mxu0 0.0
      %200 = vmatpush1.msra.mxu0 0.0
      %201 = vmatprep.subr.mxu0 0.0
      %202 = vmatpush1.msra.mxu0 0.0
      %203 = vmatprep.subr.mxu0 0.0
      %204 = vmatpush1.msra.mxu0 0.0
      %205 = vmatprep.subr.mxu0 0.0
      %206 = vmatpush1.msra.mxu0 0.0
      %207 = vmatprep.subr.mxu0 0.0
      %208 = vmatpush1.msra.mxu0 0.0
      %209 = vmatprep.subr.mxu0 0.0
      %210 = vmatpush1.msra.mxu0 0.0
      %211 = vmatprep.subr.mxu0 0.0
      %212 = vmatpush1.msra.mxu0 0.0
      %213 = vmatprep.subr.mxu0 0.0
      %214 = vmatpush1.msra.mxu0 0.0
      %215 = vmatprep.subr.mxu0 0.0
      %216 = vmatpush1.msra.mxu0 0.0
      %217 = vmatprep.subr.mxu0 0.0
      %218 = vmatpush1.msra.mxu0 0.0
      %219 = vmatprep.subr.mxu0 0.0
      %220 = vmatpush1.msra.mxu0 0.0
      %221 = vmatprep.subr.mxu0 0.0
      %222 = vmatpush1.msra.mxu0 0.0
      %223 = vmatprep.subr.mxu0 0.0
      %224 = vmatpush1.msra.mxu0 0.0
      %225 = vmatprep.subr.mxu0 0.0
      %226 = vmatpush1.msra.mxu0 0.0
      %227 = vmatprep.subr.mxu0 0.0
      %228 = vmatpush1.msra.mxu0 0.0
      %229 = vmatprep.mubr.f32.mxu0 0.0
      %230 = vmatmul.mubr.f32.gmra.mrb[0].mxu0 %v157
      %v231 = vpop.f32.mrb[0].mxu0
      %v232 = vadd.f32 0.0, %v231
      %v233 = vpop.f32.mrb[0].mxu0
      %234 = vmatprep.mubr.f32.mxu0 0.0
      %235 = vmatmul.mubr.f32.gmra.mrb[0].mxu0 %v160
      %v236 = vpop.f32.mrb[0].mxu0
      %v237 = vadd.f32 0.0, %v236
      %v238 = vpop.f32.mrb[0].mxu0
      %239 = vmatprep.mubr.f32.mxu0 0.0
      %240 = vmatmul.mubr.f32.gmra.mrb[0].mxu0 %v163
      %v241 = vpop.f32.mrb[0].mxu0
      %v242 = vadd.f32 0.0, %v241
      %v243 = vpop.f32.mrb[0].mxu0
      %244 = vdwg.mxu0
      %v246 = vsel %vm155, %v144, 0
      %v249 = vsel %vm155, %v145, 0
      %v252 = vsel %vm155, %v146, 0
      %254 = vmatprep.subr.mxu0 0.0
      %255 = vmatpush1.msra.mxu0 %v147
      %256 = vmatprep.subr.mxu0 0.0
      %257 = vmatpush1.msra.mxu0 %v148
      %258 = vmatprep.subr.mxu0 0.0
      %259 = vmatpush1.msra.mxu0 0.0
      %260 = vmatprep.subr.mxu0 0.0
      %261 = vmatpush1.msra.mxu0 0.0
      %262 = vmatprep.subr.mxu0 0.0
      %263 = vmatpush1.msra.mxu0 0.0
      %264 = vmatprep.subr.mxu0 0.0
      %265 = vmatpush1.msra.mxu0 0.0
      %266 = vmatprep.subr.mxu0 0.0
      %267 = vmatpush1.msra.mxu0 0.0
      %268 = vmatprep.subr.mxu0 0.0
      %269 = vmatpush1.msra.mxu0 0.0
      %270 = vmatprep.subr.mxu0 0.0
      %271 = vmatpush1.msra.mxu0 0.0
      %272 = vmatprep.subr.mxu0 0.0
      %273 = vmatpush1.msra.mxu0 0.0
      %274 = vmatprep.subr.mxu0 0.0
      %275 = vmatpush1.msra.mxu0 0.0
      %276 = vmatprep.subr.mxu0 0.0
      %277 = vmatpush1.msra.mxu0 0.0
      %278 = vmatprep.subr.mxu0 0.0
      %279 = vmatpush1.msra.mxu0 0.0
      %280 = vmatprep.subr.mxu0 0.0
      %281 = vmatpush1.msra.mxu0 0.0
      %282 = vmatprep.subr.mxu0 0.0
      %283 = vmatpush1.msra.mxu0 0.0
      %284 = vmatprep.subr.mxu0 0.0
      %285 = vmatpush1.msra.mxu0 0.0
      %286 = vmatprep.subr.mxu0 0.0
      %287 = vmatpush1.msra.mxu0 0.0
      %288 = vmatprep.subr.mxu0 0.0
      %289 = vmatpush1.msra.mxu0 0.0
      %290 = vmatprep.subr.mxu0 0.0
      %291 = vmatpush1.msra.mxu0 0.0
      %292 = vmatprep.subr.mxu0 0.0
      %293 = vmatpush1.msra.mxu0 0.0
      %294 = vmatprep.subr.mxu0 0.0
      %295 = vmatpush1.msra.mxu0 0.0
      %296 = vmatprep.subr.mxu0 0.0
      %297 = vmatpush1.msra.mxu0 0.0
      %298 = vmatprep.subr.mxu0 0.0
      %299 = vmatpush1.msra.mxu0 0.0
      %300 = vmatprep.subr.mxu0 0.0
      %301 = vmatpush1.msra.mxu0 0.0
      %302 = vmatprep.subr.mxu0 0.0
      %303 = vmatpush1.msra.mxu0 0.0
      %304 = vmatprep.subr.mxu0 0.0
      %305 = vmatpush1.msra.mxu0 0.0
      %306 = vmatprep.subr.mxu0 0.0
      %307 = vmatpush1.msra.mxu0 0.0
      %308 = vmatprep.subr.mxu0 0.0
      %309 = vmatpush1.msra.mxu0 0.0
      %310 = vmatprep.subr.mxu0 0.0
      %311 = vmatpush1.msra.mxu0 0.0
      %312 = vmatprep.subr.mxu0 0.0
      %313 = vmatpush1.msra.mxu0 0.0
      %314 = vmatprep.subr.mxu0 0.0
      %315 = vmatpush1.msra.mxu0 0.0
      %316 = vmatprep.subr.mxu0 0.0
      %317 = vmatpush1.msra.mxu0 0.0
      %318 = vmatprep.mubr.f32.mxu0 0.0
      %319 = vmatmul.mubr.f32.gmra.mrb[0].mxu0 %v246
      %v320 = vpop.f32.mrb[0].mxu0
      %v321 = vadd.f32 %v232, %v320
      %v322 = vpop.f32.mrb[0].mxu0
      %323 = vmatprep.mubr.f32.mxu0 0.0
      %324 = vmatmul.mubr.f32.gmra.mrb[0].mxu0 %v249
      %v325 = vpop.f32.mrb[0].mxu0
      %v326 = vadd.f32 %v237, %v325
      %v327 = vpop.f32.mrb[0].mxu0
      %328 = vmatprep.mubr.f32.mxu0 0.0
      %329 = vmatmul.mubr.f32.gmra.mrb[0].mxu0 %v252
      %v330 = vpop.f32.mrb[0].mxu0
      %v331 = vadd.f32 %v242, %v330
      %v332 = vpop.f32.mrb[0].mxu0
      %333 = vdwg.mxu0
      %v334 = vld [vmem:[%s138 + $0x2] sm:$0xff]
      %v335 = vld [vmem:[%s138 + $0xa] sm:$0xff]
      %v336 = vld [vmem:[%s138 + $0x12] sm:$0xff]
      %s337 = scalar_lea.vmem %s1, 32
      %v338 = vld [vmem:[%s337] sm:$0xff]
      %v339 = vld [vmem:[%s337 + $0x8] sm:$0xff]
      %v341 = vsel %vm155, %v334, 0
      %v344 = vsel %vm155, %v335, 0
      %v347 = vsel %vm155, %v336, 0
      %349 = vmatprep.subr.mxu0 0.0
      %350 = vmatpush1.msra.mxu0 %v338
      %351 = vmatprep.subr.mxu0 0.0
      %352 = vmatpush1.msra.mxu0 %v339
      %353 = vmatprep.subr.mxu0 0.0
      %354 = vmatpush1.msra.mxu0 0.0
      %355 = vmatprep.subr.mxu0 0.0
      %356 = vmatpush1.msra.mxu0 0.0
      %357 = vmatprep.subr.mxu0 0.0
      %358 = vmatpush1.msra.mxu0 0.0
      %359 = vmatprep.subr.mxu0 0.0
      %360 = vmatpush1.msra.mxu0 0.0
      %361 = vmatprep.subr.mxu0 0.0
      %362 = vmatpush1.msra.mxu0 0.0
      %363 = vmatprep.subr.mxu0 0.0
      %364 = vmatpush1.msra.mxu0 0.0
      %365 = vmatprep.subr.mxu0 0.0
      %366 = vmatpush1.msra.mxu0 0.0
      %367 = vmatprep.subr.mxu0 0.0
      %368 = vmatpush1.msra.mxu0 0.0
      %369 = vmatprep.subr.mxu0 0.0
      %370 = vmatpush1.msra.mxu0 0.0
      %371 = vmatprep.subr.mxu0 0.0
      %372 = vmatpush1.msra.mxu0 0.0
      %373 = vmatprep.subr.mxu0 0.0
      %374 = vmatpush1.msra.mxu0 0.0
      %375 = vmatprep.subr.mxu0 0.0
      %376 = vmatpush1.msra.mxu0 0.0
      %377 = vmatprep.subr.mxu0 0.0
      %378 = vmatpush1.msra.mxu0 0.0
      %379 = vmatprep.subr.mxu0 0.0
      %380 = vmatpush1.msra.mxu0 0.0
      %381 = vmatprep.subr.mxu0 0.0
      %382 = vmatpush1.msra.mxu0 0.0
      %383 = vmatprep.subr.mxu0 0.0
      %384 = vmatpush1.msra.mxu0 0.0
      %385 = vmatprep.subr.mxu0 0.0
      %386 = vmatpush1.msra.mxu0 0.0
      %387 = vmatprep.subr.mxu0 0.0
      %388 = vmatpush1.msra.mxu0 0.0
      %389 = vmatprep.subr.mxu0 0.0
      %390 = vmatpush1.msra.mxu0 0.0
      %391 = vmatprep.subr.mxu0 0.0
      %392 = vmatpush1.msra.mxu0 0.0
      %393 = vmatprep.subr.mxu0 0.0
      %394 = vmatpush1.msra.mxu0 0.0
      %395 = vmatprep.subr.mxu0 0.0
      %396 = vmatpush1.msra.mxu0 0.0
      %397 = vmatprep.subr.mxu0 0.0
      %398 = vmatpush1.msra.mxu0 0.0
      %399 = vmatprep.subr.mxu0 0.0
      %400 = vmatpush1.msra.mxu0 0.0
      %401 = vmatprep.subr.mxu0 0.0
      %402 = vmatpush1.msra.mxu0 0.0
      %403 = vmatprep.subr.mxu0 0.0
      %404 = vmatpush1.msra.mxu0 0.0
      %405 = vmatprep.subr.mxu0 0.0
      %406 = vmatpush1.msra.mxu0 0.0
      %407 = vmatprep.subr.mxu0 0.0
      %408 = vmatpush1.msra.mxu0 0.0
      %409 = vmatprep.subr.mxu0 0.0
      %410 = vmatpush1.msra.mxu0 0.0
      %411 = vmatprep.subr.mxu0 0.0
      %412 = vmatpush1.msra.mxu0 0.0
      %413 = vmatprep.mubr.f32.mxu0 0.0
      %414 = vmatmul.mubr.f32.gmra.mrb[0].mxu0 %v341
      %v415 = vpop.f32.mrb[0].mxu0
      %v416 = vadd.f32 0.0, %v415
      %v417 = vpop.f32.mrb[0].mxu0
      %418 = vmatprep.mubr.f32.mxu0 0.0
      %419 = vmatmul.mubr.f32.gmra.mrb[0].mxu0 %v344
      %v420 = vpop.f32.mrb[0].mxu0
      %v421 = vadd.f32 0.0, %v420
      %v422 = vpop.f32.mrb[0].mxu0
      %423 = vmatprep.mubr.f32.mxu0 0.0
      %424 = vmatmul.mubr.f32.gmra.mrb[0].mxu0 %v347
      %v425 = vpop.f32.mrb[0].mxu0
      %v426 = vadd.f32 0.0, %v425
      %v427 = vpop.f32.mrb[0].mxu0
      %428 = vdwg.mxu0
      %v429 = vadd.f32 %v321, %v416
      %v430 = vadd.f32 %v326, %v421
      %v431 = vadd.f32 %v331, %v426
      %v432 = vld [vmem:[%s138 + $0x6] sm:$0xff]
      %v433 = vld [vmem:[%s138 + $0xe] sm:$0xff]
      %v434 = vld [vmem:[%s138 + $0x16] sm:$0xff]
      %s435 = scalar_lea.vmem %s1, 48
      %v436 = vld [vmem:[%s435] sm:$0xff]
      %v437 = vld [vmem:[%s435 + $0x8] sm:$0xff]
      %v439 = vsel %vm155, %v432, 0
      %v442 = vsel %vm155, %v433, 0
      %v445 = vsel %vm155, %v434, 0
      %447 = vmatprep.subr.mxu0 0.0
      %448 = vmatpush1.msra.mxu0 %v436
      %449 = vmatprep.subr.mxu0 0.0
      %450 = vmatpush1.msra.mxu0 %v437
      %451 = vmatprep.subr.mxu0 0.0
      %452 = vmatpush1.msra.mxu0 0.0
      %453 = vmatprep.subr.mxu0 0.0
      %454 = vmatpush1.msra.mxu0 0.0
      %455 = vmatprep.subr.mxu0 0.0
      %456 = vmatpush1.msra.mxu0 0.0
      %457 = vmatprep.subr.mxu0 0.0
      %458 = vmatpush1.msra.mxu0 0.0
      %459 = vmatprep.subr.mxu0 0.0
      %460 = vmatpush1.msra.mxu0 0.0
      %461 = vmatprep.subr.mxu0 0.0
      %462 = vmatpush1.msra.mxu0 0.0
      %463 = vmatprep.subr.mxu0 0.0
      %464 = vmatpush1.msra.mxu0 0.0
      %465 = vmatprep.subr.mxu0 0.0
      %466 = vmatpush1.msra.mxu0 0.0
      %467 = vmatprep.subr.mxu0 0.0
      %468 = vmatpush1.msra.mxu0 0.0
      %469 = vmatprep.subr.mxu0 0.0
      %470 = vmatpush1.msra.mxu0 0.0
      %471 = vmatprep.subr.mxu0 0.0
      %472 = vmatpush1.msra.mxu0 0.0
      %473 = vmatprep.subr.mxu0 0.0
      %474 = vmatpush1.msra.mxu0 0.0
      %475 = vmatprep.subr.mxu0 0.0
      %476 = vmatpush1.msra.mxu0 0.0
      %477 = vmatprep.subr.mxu0 0.0
      %478 = vmatpush1.msra.mxu0 0.0
      %479 = vmatprep.subr.mxu0 0.0
      %480 = vmatpush1.msra.mxu0 0.0
      %481 = vmatprep.subr.mxu0 0.0
      %482 = vmatpush1.msra.mxu0 0.0
      %483 = vmatprep.subr.mxu0 0.0
      %484 = vmatpush1.msra.mxu0 0.0
      %485 = vmatprep.subr.mxu0 0.0
      %486 = vmatpush1.msra.mxu0 0.0
      %487 = vmatprep.subr.mxu0 0.0
      %488 = vmatpush1.msra.mxu0 0.0
      %489 = vmatprep.subr.mxu0 0.0
      %490 = vmatpush1.msra.mxu0 0.0
      %491 = vmatprep.subr.mxu0 0.0
      %492 = vmatpush1.msra.mxu0 0.0
      %493 = vmatprep.subr.mxu0 0.0
      %494 = vmatpush1.msra.mxu0 0.0
      %495 = vmatprep.subr.mxu0 0.0
      %496 = vmatpush1.msra.mxu0 0.0
      %497 = vmatprep.subr.mxu0 0.0
      %498 = vmatpush1.msra.mxu0 0.0
      %499 = vmatprep.subr.mxu0 0.0
      %500 = vmatpush1.msra.mxu0 0.0
      %501 = vmatprep.subr.mxu0 0.0
      %502 = vmatpush1.msra.mxu0 0.0
      %503 = vmatprep.subr.mxu0 0.0
      %504 = vmatpush1.msra.mxu0 0.0
      %505 = vmatprep.subr.mxu0 0.0
      %506 = vmatpush1.msra.mxu0 0.0
      %507 = vmatprep.subr.mxu0 0.0
      %508 = vmatpush1.msra.mxu0 0.0
      %509 = vmatprep.subr.mxu0 0.0
      %510 = vmatpush1.msra.mxu0 0.0
      %511 = vmatprep.mubr.f32.mxu0 0.0
      %512 = vmatmul.mubr.f32.gmra.mrb[0].mxu0 %v439
      %v513 = vpop.f32.mrb[0].mxu0
      %v514 = vadd.f32 0.0, %v513
      %v515 = vpop.f32.mrb[0].mxu0
      %516 = vmatprep.mubr.f32.mxu0 0.0
      %517 = vmatmul.mubr.f32.gmra.mrb[0].mxu0 %v442
      %v518 = vpop.f32.mrb[0].mxu0
      %v519 = vadd.f32 0.0, %v518
      %v520 = vpop.f32.mrb[0].mxu0
      %521 = vmatprep.mubr.f32.mxu0 0.0
      %522 = vmatmul.mubr.f32.gmra.mrb[0].mxu0 %v445
      %v523 = vpop.f32.mrb[0].mxu0
      %v524 = vadd.f32 0.0, %v523
      %v525 = vpop.f32.mrb[0].mxu0
      %526 = vdwg.mxu0
      %v527 = vadd.f32 %v429, %v514
      %v528 = vadd.f32 %v430, %v519
      %v529 = vadd.f32 %v431, %v524
      %v530 = vld [vmem:[%s138 + $0x7] sm:$0xff]
      %v531 = vld [vmem:[%s138 + $0xf] sm:$0xff]
      %v532 = vld [vmem:[%s138 + $0x17] sm:$0xff]
      %s533 = scalar_lea.vmem %s1, 64
      %v534 = vld [vmem:[%s533] sm:$0xff]
      %v535 = vld [vmem:[%s533 + $0x8] sm:$0xff]
      %v537 = vsel %vm155, %v530, 0
      %v540 = vsel %vm155, %v531, 0
      %v543 = vsel %vm155, %v532, 0
      %545 = vmatprep.subr.mxu0 0.0
      %546 = vmatpush1.msra.mxu0 %v534
      %547 = vmatprep.subr.mxu0 0.0
      %548 = vmatpush1.msra.mxu0 %v535
      %549 = vmatprep.subr.mxu0 0.0
      %550 = vmatpush1.msra.mxu0 0.0
      %551 = vmatprep.subr.mxu0 0.0
      %552 = vmatpush1.msra.mxu0 0.0
      %553 = vmatprep.subr.mxu0 0.0
      %554 = vmatpush1.msra.mxu0 0.0
      %555 = vmatprep.subr.mxu0 0.0
      %556 = vmatpush1.msra.mxu0 0.0
      %557 = vmatprep.subr.mxu0 0.0
      %558 = vmatpush1.msra.mxu0 0.0
      %559 = vmatprep.subr.mxu0 0.0
      %560 = vmatpush1.msra.mxu0 0.0
      %561 = vmatprep.subr.mxu0 0.0
      %562 = vmatpush1.msra.mxu0 0.0
      %563 = vmatprep.subr.mxu0 0.0
      %564 = vmatpush1.msra.mxu0 0.0
      %565 = vmatprep.subr.mxu0 0.0
      %566 = vmatpush1.msra.mxu0 0.0
      %567 = vmatprep.subr.mxu0 0.0
      %568 = vmatpush1.msra.mxu0 0.0
      %569 = vmatprep.subr.mxu0 0.0
      %570 = vmatpush1.msra.mxu0 0.0
      %571 = vmatprep.subr.mxu0 0.0
      %572 = vmatpush1.msra.mxu0 0.0
      %573 = vmatprep.subr.mxu0 0.0
      %574 = vmatpush1.msra.mxu0 0.0
      %575 = vmatprep.subr.mxu0 0.0
      %576 = vmatpush1.msra.mxu0 0.0
      %577 = vmatprep.subr.mxu0 0.0
      %578 = vmatpush1.msra.mxu0 0.0
      %579 = vmatprep.subr.mxu0 0.0
      %580 = vmatpush1.msra.mxu0 0.0
      %581 = vmatprep.subr.mxu0 0.0
      %582 = vmatpush1.msra.mxu0 0.0
      %583 = vmatprep.subr.mxu0 0.0
      %584 = vmatpush1.msra.mxu0 0.0
      %585 = vmatprep.subr.mxu0 0.0
      %586 = vmatpush1.msra.mxu0 0.0
      %587 = vmatprep.subr.mxu0 0.0
      %588 = vmatpush1.msra.mxu0 0.0
      %589 = vmatprep.subr.mxu0 0.0
      %590 = vmatpush1.msra.mxu0 0.0
      %591 = vmatprep.subr.mxu0 0.0
      %592 = vmatpush1.msra.mxu0 0.0
      %593 = vmatprep.subr.mxu0 0.0
      %594 = vmatpush1.msra.mxu0 0.0
      %595 = vmatprep.subr.mxu0 0.0
      %596 = vmatpush1.msra.mxu0 0.0
      %597 = vmatprep.subr.mxu0 0.0
      %598 = vmatpush1.msra.mxu0 0.0
      %599 = vmatprep.subr.mxu0 0.0
      %600 = vmatpush1.msra.mxu0 0.0
      %601 = vmatprep.subr.mxu0 0.0
      %602 = vmatpush1.msra.mxu0 0.0
      %603 = vmatprep.subr.mxu0 0.0
      %604 = vmatpush1.msra.mxu0 0.0
      %605 = vmatprep.subr.mxu0 0.0
      %606 = vmatpush1.msra.mxu0 0.0
      %607 = vmatprep.subr.mxu0 0.0
      %608 = vmatpush1.msra.mxu0 0.0
      %609 = vmatprep.mubr.f32.mxu0 0.0
      %610 = vmatmul.mubr.f32.gmra.mrb[0].mxu0 %v537
      %v611 = vpop.f32.mrb[0].mxu0
      %v612 = vadd.f32 0.0, %v611
      %v613 = vpop.f32.mrb[0].mxu0
      %614 = vmatprep.mubr.f32.mxu0 0.0
      %615 = vmatmul.mubr.f32.gmra.mrb[0].mxu0 %v540
      %v616 = vpop.f32.mrb[0].mxu0
      %v617 = vadd.f32 0.0, %v616
      %v618 = vpop.f32.mrb[0].mxu0
      %619 = vmatprep.mubr.f32.mxu0 0.0
      %620 = vmatmul.mubr.f32.gmra.mrb[0].mxu0 %v543
      %v621 = vpop.f32.mrb[0].mxu0
      %v622 = vadd.f32 0.0, %v621
      %v623 = vpop.f32.mrb[0].mxu0
      %624 = vdwg.mxu0
      %v625 = vadd.f32 %v527, %v612
      %v626 = vadd.f32 %v528, %v617
      %v627 = vadd.f32 %v529, %v622
      %v628 = vld [vmem:[%s138 + $0x8] sm:$0xff]
      %v629 = vld [vmem:[%s138 + $0x10] sm:$0xff]
      %v630 = vld [vmem:[%s138 + $0x18] sm:$0xff]
      %s631 = scalar_lea.vmem %s1, 80
      %v632 = vld [vmem:[%s631] sm:$0xff]
      %v633 = vld [vmem:[%s631 + $0x8] sm:$0xff]
      %v635 = vsel %vm155, %v628, 0
      %v638 = vsel %vm155, %v629, 0
      %v641 = vsel %vm155, %v630, 0
      %643 = vmatprep.subr.mxu0 0.0
      %644 = vmatpush1.msra.mxu0 %v632
      %645 = vmatprep.subr.mxu0 0.0
      %646 = vmatpush1.msra.mxu0 %v633
      %647 = vmatprep.subr.mxu0 0.0
      %648 = vmatpush1.msra.mxu0 0.0
      %649 = vmatprep.subr.mxu0 0.0
      %650 = vmatpush1.msra.mxu0 0.0
      %651 = vmatprep.subr.mxu0 0.0
      %652 = vmatpush1.msra.mxu0 0.0
      %653 = vmatprep.subr.mxu0 0.0
      %654 = vmatpush1.msra.mxu0 0.0
      %655 = vmatprep.subr.mxu0 0.0
      %656 = vmatpush1.msra.mxu0 0.0
      %657 = vmatprep.subr.mxu0 0.0
      %658 = vmatpush1.msra.mxu0 0.0
      %659 = vmatprep.subr.mxu0 0.0
      %660 = vmatpush1.msra.mxu0 0.0
      %661 = vmatprep.subr.mxu0 0.0
      %662 = vmatpush1.msra.mxu0 0.0
      %663 = vmatprep.subr.mxu0 0.0
      %664 = vmatpush1.msra.mxu0 0.0
      %665 = vmatprep.subr.mxu0 0.0
      %666 = vmatpush1.msra.mxu0 0.0
      %667 = vmatprep.subr.mxu0 0.0
      %668 = vmatpush1.msra.mxu0 0.0
      %669 = vmatprep.subr.mxu0 0.0
      %670 = vmatpush1.msra.mxu0 0.0
      %671 = vmatprep.subr.mxu0 0.0
      %672 = vmatpush1.msra.mxu0 0.0
      %673 = vmatprep.subr.mxu0 0.0
      %674 = vmatpush1.msra.mxu0 0.0
      %675 = vmatprep.subr.mxu0 0.0
      %676 = vmatpush1.msra.mxu0 0.0
      %677 = vmatprep.subr.mxu0 0.0
      %678 = vmatpush1.msra.mxu0 0.0
      %679 = vmatprep.subr.mxu0 0.0
      %680 = vmatpush1.msra.mxu0 0.0
      %681 = vmatprep.subr.mxu0 0.0
      %682 = vmatpush1.msra.mxu0 0.0
      %683 = vmatprep.subr.mxu0 0.0
      %684 = vmatpush1.msra.mxu0 0.0
      %685 = vmatprep.subr.mxu0 0.0
      %686 = vmatpush1.msra.mxu0 0.0
      %687 = vmatprep.subr.mxu0 0.0
      %688 = vmatpush1.msra.mxu0 0.0
      %689 = vmatprep.subr.mxu0 0.0
      %690 = vmatpush1.msra.mxu0 0.0
      %691 = vmatprep.subr.mxu0 0.0
      %692 = vmatpush1.msra.mxu0 0.0
      %693 = vmatprep.subr.mxu0 0.0
      %694 = vmatpush1.msra.mxu0 0.0
      %695 = vmatprep.subr.mxu0 0.0
      %696 = vmatpush1.msra.mxu0 0.0
      %697 = vmatprep.subr.mxu0 0.0
      %698 = vmatpush1.msra.mxu0 0.0
      %699 = vmatprep.subr.mxu0 0.0
      %700 = vmatpush1.msra.mxu0 0.0
      %701 = vmatprep.subr.mxu0 0.0
      %702 = vmatpush1.msra.mxu0 0.0
      %703 = vmatprep.subr.mxu0 0.0
      %704 = vmatpush1.msra.mxu0 0.0
      %705 = vmatprep.subr.mxu0 0.0
      %706 = vmatpush1.msra.mxu0 0.0
      %707 = vmatprep.mubr.f32.mxu0 0.0
      %708 = vmatmul.mubr.f32.gmra.mrb[0].mxu0 %v635
      %v709 = vpop.f32.mrb[0].mxu0
      %v710 = vadd.f32 0.0, %v709
      %v711 = vpop.f32.mrb[0].mxu0
      %712 = vmatprep.mubr.f32.mxu0 0.0
      %713 = vmatmul.mubr.f32.gmra.mrb[0].mxu0 %v638
      %v714 = vpop.f32.mrb[0].mxu0
      %v715 = vadd.f32 0.0, %v714
      %v716 = vpop.f32.mrb[0].mxu0
      %717 = vmatprep.mubr.f32.mxu0 0.0
      %718 = vmatmul.mubr.f32.gmra.mrb[0].mxu0 %v641
      %v719 = vpop.f32.mrb[0].mxu0
      %v720 = vadd.f32 0.0, %v719
      %v721 = vpop.f32.mrb[0].mxu0
      %722 = vdwg.mxu0
      %v723 = vadd.f32 %v625, %v710
      %v724 = vadd.f32 %v626, %v715
      %v725 = vadd.f32 %v627, %v720
      %v726 = vld [vmem:[%s138 + $0xc] sm:$0xff]
      %v727 = vld [vmem:[%s138 + $0x14] sm:$0xff]
      %v728 = vld [vmem:[%s138 + $0x1c] sm:$0xff]
      %s729 = scalar_lea.vmem %s1, 96
      %v730 = vld [vmem:[%s729] sm:$0xff]
      %v731 = vld [vmem:[%s729 + $0x8] sm:$0xff]
      %v733 = vsel %vm155, %v726, 0
      %v736 = vsel %vm155, %v727, 0
      %v739 = vsel %vm155, %v728, 0
      %741 = vmatprep.subr.mxu0 0.0
      %742 = vmatpush1.msra.mxu0 %v730
      %743 = vmatprep.subr.mxu0 0.0
      %744 = vmatpush1.msra.mxu0 %v731
      %745 = vmatprep.subr.mxu0 0.0
      %746 = vmatpush1.msra.mxu0 0.0
      %747 = vmatprep.subr.mxu0 0.0
      %748 = vmatpush1.msra.mxu0 0.0
      %749 = vmatprep.subr.mxu0 0.0
      %750 = vmatpush1.msra.mxu0 0.0
      %751 = vmatprep.subr.mxu0 0.0
      %752 = vmatpush1.msra.mxu0 0.0
      %753 = vmatprep.subr.mxu0 0.0
      %754 = vmatpush1.msra.mxu0 0.0
      %755 = vmatprep.subr.mxu0 0.0
      %756 = vmatpush1.msra.mxu0 0.0
      %757 = vmatprep.subr.mxu0 0.0
      %758 = vmatpush1.msra.mxu0 0.0
      %759 = vmatprep.subr.mxu0 0.0
      %760 = vmatpush1.msra.mxu0 0.0
      %761 = vmatprep.subr.mxu0 0.0
      %762 = vmatpush1.msra.mxu0 0.0
      %763 = vmatprep.subr.mxu0 0.0
      %764 = vmatpush1.msra.mxu0 0.0
      %765 = vmatprep.subr.mxu0 0.0
      %766 = vmatpush1.msra.mxu0 0.0
      %767 = vmatprep.subr.mxu0 0.0
      %768 = vmatpush1.msra.mxu0 0.0
      %769 = vmatprep.subr.mxu0 0.0
      %770 = vmatpush1.msra.mxu0 0.0
      %771 = vmatprep.subr.mxu0 0.0
      %772 = vmatpush1.msra.mxu0 0.0
      %773 = vmatprep.subr.mxu0 0.0
      %774 = vmatpush1.msra.mxu0 0.0
      %775 = vmatprep.subr.mxu0 0.0
      %776 = vmatpush1.msra.mxu0 0.0
      %777 = vmatprep.subr.mxu0 0.0
      %778 = vmatpush1.msra.mxu0 0.0
      %779 = vmatprep.subr.mxu0 0.0
      %780 = vmatpush1.msra.mxu0 0.0
      %781 = vmatprep.subr.mxu0 0.0
      %782 = vmatpush1.msra.mxu0 0.0
      %783 = vmatprep.subr.mxu0 0.0
      %784 = vmatpush1.msra.mxu0 0.0
      %785 = vmatprep.subr.mxu0 0.0
      %786 = vmatpush1.msra.mxu0 0.0
      %787 = vmatprep.subr.mxu0 0.0
      %788 = vmatpush1.msra.mxu0 0.0
      %789 = vmatprep.subr.mxu0 0.0
      %790 = vmatpush1.msra.mxu0 0.0
      %791 = vmatprep.subr.mxu0 0.0
      %792 = vmatpush1.msra.mxu0 0.0
      %793 = vmatprep.subr.mxu0 0.0
      %794 = vmatpush1.msra.mxu0 0.0
      %795 = vmatprep.subr.mxu0 0.0
      %796 = vmatpush1.msra.mxu0 0.0
      %797 = vmatprep.subr.mxu0 0.0
      %798 = vmatpush1.msra.mxu0 0.0
      %799 = vmatprep.subr.mxu0 0.0
      %800 = vmatpush1.msra.mxu0 0.0
      %801 = vmatprep.subr.mxu0 0.0
      %802 = vmatpush1.msra.mxu0 0.0
      %803 = vmatprep.subr.mxu0 0.0
      %804 = vmatpush1.msra.mxu0 0.0
      %805 = vmatprep.mubr.f32.mxu0 0.0
      %806 = vmatmul.mubr.f32.gmra.mrb[0].mxu0 %v733
      %v807 = vpop.f32.mrb[0].mxu0
      %v808 = vadd.f32 0.0, %v807
      %v809 = vpop.f32.mrb[0].mxu0
      %810 = vmatprep.mubr.f32.mxu0 0.0
      %811 = vmatmul.mubr.f32.gmra.mrb[0].mxu0 %v736
      %v812 = vpop.f32.mrb[0].mxu0
      %v813 = vadd.f32 0.0, %v812
      %v814 = vpop.f32.mrb[0].mxu0
      %815 = vmatprep.mubr.f32.mxu0 0.0
      %816 = vmatmul.mubr.f32.gmra.mrb[0].mxu0 %v739
      %v817 = vpop.f32.mrb[0].mxu0
      %v818 = vadd.f32 0.0, %v817
      %v819 = vpop.f32.mrb[0].mxu0
      %820 = vdwg.mxu0
      %v821 = vadd.f32 %v723, %v808
      %v822 = vadd.f32 %v724, %v813
      %v823 = vadd.f32 %v725, %v818
      %v824 = vld [vmem:[%s138 + $0xd] sm:$0xff]
      %v825 = vld [vmem:[%s138 + $0x15] sm:$0xff]
      %v826 = vld [vmem:[%s138 + $0x1d] sm:$0xff]
      %s827 = scalar_lea.vmem %s1, 112
      %v828 = vld [vmem:[%s827] sm:$0xff]
      %v829 = vld [vmem:[%s827 + $0x8] sm:$0xff]
      %v831 = vsel %vm155, %v824, 0
      %v834 = vsel %vm155, %v825, 0
      %v837 = vsel %vm155, %v826, 0
      %839 = vmatprep.subr.mxu0 0.0
      %840 = vmatpush1.msra.mxu0 %v828
      %841 = vmatprep.subr.mxu0 0.0
      %842 = vmatpush1.msra.mxu0 %v829
      %843 = vmatprep.subr.mxu0 0.0
      %844 = vmatpush1.msra.mxu0 0.0
      %845 = vmatprep.subr.mxu0 0.0
      %846 = vmatpush1.msra.mxu0 0.0
      %847 = vmatprep.subr.mxu0 0.0
      %848 = vmatpush1.msra.mxu0 0.0
      %849 = vmatprep.subr.mxu0 0.0
      %850 = vmatpush1.msra.mxu0 0.0
      %851 = vmatprep.subr.mxu0 0.0
      %852 = vmatpush1.msra.mxu0 0.0
      %853 = vmatprep.subr.mxu0 0.0
      %854 = vmatpush1.msra.mxu0 0.0
      %855 = vmatprep.subr.mxu0 0.0
      %856 = vmatpush1.msra.mxu0 0.0
      %857 = vmatprep.subr.mxu0 0.0
      %858 = vmatpush1.msra.mxu0 0.0
      %859 = vmatprep.subr.mxu0 0.0
      %860 = vmatpush1.msra.mxu0 0.0
      %861 = vmatprep.subr.mxu0 0.0
      %862 = vmatpush1.msra.mxu0 0.0
      %863 = vmatprep.subr.mxu0 0.0
      %864 = vmatpush1.msra.mxu0 0.0
      %865 = vmatprep.subr.mxu0 0.0
      %866 = vmatpush1.msra.mxu0 0.0
      %867 = vmatprep.subr.mxu0 0.0
      %868 = vmatpush1.msra.mxu0 0.0
      %869 = vmatprep.subr.mxu0 0.0
      %870 = vmatpush1.msra.mxu0 0.0
      %871 = vmatprep.subr.mxu0 0.0
      %872 = vmatpush1.msra.mxu0 0.0
      %873 = vmatprep.subr.mxu0 0.0
      %874 = vmatpush1.msra.mxu0 0.0
      %875 = vmatprep.subr.mxu0 0.0
      %876 = vmatpush1.msra.mxu0 0.0
      %877 = vmatprep.subr.mxu0 0.0
      %878 = vmatpush1.msra.mxu0 0.0
      %879 = vmatprep.subr.mxu0 0.0
      %880 = vmatpush1.msra.mxu0 0.0
      %881 = vmatprep.subr.mxu0 0.0
      %882 = vmatpush1.msra.mxu0 0.0
      %883 = vmatprep.subr.mxu0 0.0
      %884 = vmatpush1.msra.mxu0 0.0
      %885 = vmatprep.subr.mxu0 0.0
      %886 = vmatpush1.msra.mxu0 0.0
      %887 = vmatprep.subr.mxu0 0.0
      %888 = vmatpush1.msra.mxu0 0.0
      %889 = vmatprep.subr.mxu0 0.0
      %890 = vmatpush1.msra.mxu0 0.0
      %891 = vmatprep.subr.mxu0 0.0
      %892 = vmatpush1.msra.mxu0 0.0
      %893 = vmatprep.subr.mxu0 0.0
      %894 = vmatpush1.msra.mxu0 0.0
      %895 = vmatprep.subr.mxu0 0.0
      %896 = vmatpush1.msra.mxu0 0.0
      %897 = vmatprep.subr.mxu0 0.0
      %898 = vmatpush1.msra.mxu0 0.0
      %899 = vmatprep.subr.mxu0 0.0
      %900 = vmatpush1.msra.mxu0 0.0
      %901 = vmatprep.subr.mxu0 0.0
      %902 = vmatpush1.msra.mxu0 0.0
      %903 = vmatprep.mubr.f32.mxu0 0.0
      %904 = vmatmul.mubr.f32.gmra.mrb[0].mxu0 %v831
      %v905 = vpop.f32.mrb[0].mxu0
      %v906 = vadd.f32 0.0, %v905
      %v907 = vpop.f32.mrb[0].mxu0
      %908 = vmatprep.mubr.f32.mxu0 0.0
      %909 = vmatmul.mubr.f32.gmra.mrb[0].mxu0 %v834
      %v910 = vpop.f32.mrb[0].mxu0
      %v911 = vadd.f32 0.0, %v910
      %v912 = vpop.f32.mrb[0].mxu0
      %913 = vmatprep.mubr.f32.mxu0 0.0
      %914 = vmatmul.mubr.f32.gmra.mrb[0].mxu0 %v837
      %v915 = vpop.f32.mrb[0].mxu0
      %v916 = vadd.f32 0.0, %v915
      %v917 = vpop.f32.mrb[0].mxu0
      %918 = vdwg.mxu0
      %v919 = vadd.f32 %v821, %v906
      %v920 = vadd.f32 %v822, %v911
      %v921 = vadd.f32 %v823, %v916
      %v922 = vld [vmem:[%s138 + $0xe] sm:$0xff]
      %v923 = vld [vmem:[%s138 + $0x16] sm:$0xff]
      %v924 = vld [vmem:[%s138 + $0x1e] sm:$0xff]
      %s925 = scalar_lea.vmem %s1, 128
      %v926 = vld [vmem:[%s925] sm:$0xff]
      %v927 = vld [vmem:[%s925 + $0x8] sm:$0xff]
      %v929 = vsel %vm155, %v922, 0
      %v932 = vsel %vm155, %v923, 0
      %v935 = vsel %vm155, %v924, 0
      %937 = vmatprep.subr.mxu0 0.0
      %938 = vmatpush1.msra.mxu0 %v926
      %939 = vmatprep.subr.mxu0 0.0
      %940 = vmatpush1.msra.mxu0 %v927
      %941 = vmatprep.subr.mxu0 0.0
      %942 = vmatpush1.msra.mxu0 0.0
      %943 = vmatprep.subr.mxu0 0.0
      %944 = vmatpush1.msra.mxu0 0.0
      %945 = vmatprep.subr.mxu0 0.0
      %946 = vmatpush1.msra.mxu0 0.0
      %947 = vmatprep.subr.mxu0 0.0
      %948 = vmatpush1.msra.mxu0 0.0
      %949 = vmatprep.subr.mxu0 0.0
      %950 = vmatpush1.msra.mxu0 0.0
      %951 = vmatprep.subr.mxu0 0.0
      %952 = vmatpush1.msra.mxu0 0.0
      %953 = vmatprep.subr.mxu0 0.0
      %954 = vmatpush1.msra.mxu0 0.0
      %955 = vmatprep.subr.mxu0 0.0
      %956 = vmatpush1.msra.mxu0 0.0
      %957 = vmatprep.subr.mxu0 0.0
      %958 = vmatpush1.msra.mxu0 0.0
      %959 = vmatprep.subr.mxu0 0.0
      %960 = vmatpush1.msra.mxu0 0.0
      %961 = vmatprep.subr.mxu0 0.0
      %962 = vmatpush1.msra.mxu0 0.0
      %963 = vmatprep.subr.mxu0 0.0
      %964 = vmatpush1.msra.mxu0 0.0
      %965 = vmatprep.subr.mxu0 0.0
      %966 = vmatpush1.msra.mxu0 0.0
      %967 = vmatprep.subr.mxu0 0.0
      %968 = vmatpush1.msra.mxu0 0.0
      %969 = vmatprep.subr.mxu0 0.0
      %970 = vmatpush1.msra.mxu0 0.0
      %971 = vmatprep.subr.mxu0 0.0
      %972 = vmatpush1.msra.mxu0 0.0
      %973 = vmatprep.subr.mxu0 0.0
      %974 = vmatpush1.msra.mxu0 0.0
      %975 = vmatprep.subr.mxu0 0.0
      %976 = vmatpush1.msra.mxu0 0.0
      %977 = vmatprep.subr.mxu0 0.0
      %978 = vmatpush1.msra.mxu0 0.0
      %979 = vmatprep.subr.mxu0 0.0
      %980 = vmatpush1.msra.mxu0 0.0
      %981 = vmatprep.subr.mxu0 0.0
      %982 = vmatpush1.msra.mxu0 0.0
      %983 = vmatprep.subr.mxu0 0.0
      %984 = vmatpush1.msra.mxu0 0.0
      %985 = vmatprep.subr.mxu0 0.0
      %986 = vmatpush1.msra.mxu0 0.0
      %987 = vmatprep.subr.mxu0 0.0
      %988 = vmatpush1.msra.mxu0 0.0
      %989 = vmatprep.subr.mxu0 0.0
      %990 = vmatpush1.msra.mxu0 0.0
      %991 = vmatprep.subr.mxu0 0.0
      %992 = vmatpush1.msra.mxu0 0.0
      %993 = vmatprep.subr.mxu0 0.0
      %994 = vmatpush1.msra.mxu0 0.0
      %995 = vmatprep.subr.mxu0 0.0
      %996 = vmatpush1.msra.mxu0 0.0
      %997 = vmatprep.subr.mxu0 0.0
      %998 = vmatpush1.msra.mxu0 0.0
      %999 = vmatprep.subr.mxu0 0.0
      %1000 = vmatpush1.msra.mxu0 0.0
      %1001 = vmatprep.mubr.f32.mxu0 0.0
      %1002 = vmatmul.mubr.f32.gmra.mrb[0].mxu0 %v929
      %v1003 = vpop.f32.mrb[0].mxu0
      %v1004 = vadd.f32 0.0, %v1003
      %v1005 = vpop.f32.mrb[0].mxu0
      %1006 = vmatprep.mubr.f32.mxu0 0.0
      %1007 = vmatmul.mubr.f32.gmra.mrb[0].mxu0 %v932
      %v1008 = vpop.f32.mrb[0].mxu0
      %v1009 = vadd.f32 0.0, %v1008
      %v1010 = vpop.f32.mrb[0].mxu0
      %1011 = vmatprep.mubr.f32.mxu0 0.0
      %1012 = vmatmul.mubr.f32.gmra.mrb[0].mxu0 %v935
      %v1013 = vpop.f32.mrb[0].mxu0
      %v1014 = vadd.f32 0.0, %v1013
      %v1015 = vpop.f32.mrb[0].mxu0
      %1016 = vdwg.mxu0
      %v1017 = vadd.f32 %v919, %v1004
      %v1018 = vadd.f32 %v920, %v1009
      %v1019 = vadd.f32 %v921, %v1014
      %vm1020 = vcmask 64512
      %1021 = vst.msk [vmem:[%s143] sm:$0xff] %vm1020, %v1017
      %1022 = vst.msk [vmem:[%s143 + $0x8] sm:$0xff] %vm1020, %v1018
      %1023 = vst.msk [vmem:[%s143 + $0x10] sm:$0xff] %vm1020, %v1019
      %p1024 = scmp.lt.s32.totalorder %s13, 1
      %s1025 = scalar_select %p1024, %s13, 1
      %s1026 = smul.addr %s1025, 3
      %s1027 = smul.addr %s1026, 8
      %s1028 = scalar_lea.vmem %s2, %s1027
      // Predicated region
      $region29: #{densenet_forward.18} parent=27 // pred_check
        %p1029 = pneg %p78
      $region30: #{densenet_forward.18} parent=27 // pred_check_branch
        %1031 = sbr.rel (%p1029) target = $region32
      $region31: #{densenet_forward.18} parent=27 // pred_region
        _
      $region32: #{densenet_forward.18} parent=27 // pred_fallthru
        _
    $region28: #{densenet_forward.18} parent=5 // pred_fallthru
      _
    %p1032 = scmp.le.s32.totalorder 2, %s8
    // Predicated region
    $region33: #{densenet_forward.18} parent=5 // pred_check
      %p1033 = pneg %p1032
    $region34: #{densenet_forward.18} parent=5 // pred_check_branch
      %1035 = sbr.rel (%p1033) target = $region36
    $region35: #{densenet_forward.18} parent=5 // pred_region
      %s1036 = ssub.s32 %s8, 2
      // Predicated region
      $region37: #{densenet_forward.18} parent=35 // pred_check
        %p1037 = pneg %p84
      $region38: #{densenet_forward.18} parent=35 // pred_check_branch
        %1039 = sbr.rel (%p1037) target = $region40
      $region39: #{densenet_forward.18} parent=35 // pred_region
        %p1040 = scmp.lt.s32.totalorder %s14, 1
        %s1041 = scalar_select %p1040, %s14, 1
        %s1042 = smul.addr %s1041, 3
        %s1043 = smul.addr %s1042, 8
        %s1044 = scalar_lea.vmem %s2, %s1043
      $region40: #{densenet_forward.18} parent=35 // pred_fallthru
        _
    $region36: #{densenet_forward.18} parent=5 // pred_fallthru
      _
  $region6: #{densenet_forward.18} parent=0 // loop_footer
    %s12 = sadd.s32 1, %s8
  $region7: #{densenet_forward.18} parent=0 // loop_footer_branch
    %7 = sbr.rel target = $region3
  $region8: #{densenet_forward.18} parent=0 // loop_exit
    _

// kernel: densenet_forward.19
$region0: #{densenet_forward.19}
  #allocation0 [shape = 'u32[]', space=smem, size = 0x4, offset = 0x4, fixed_abs, tag = 'smem constant byte address 0x4 - core index']
  #allocation1 [shape = 'u32[144,128]{1,0:T(1,128)}', space=vmem, size = 0x12000, scoped, tag = 'internal scratch']
  %s0 = inlined_call_operand.vmem [shape: f32[32,24], index: 0, kind: input, shape index: {}]
  %s1 = inlined_call_operand.vmem [shape: f32[1,24], index: 1, kind: input, shape index: {}]
  %s2 = inlined_call_operand.vmem [shape: f32[1,24], index: 2, kind: input, shape index: {}]
  %s3 = inlined_call_operand.vmem [shape: f32[24,16], index: 3, kind: input, shape index: {}]
  %s4 = inlined_call_operand.vmem [shape: f32[1,16], index: 4, kind: input, shape index: {}]
  %s5 = inlined_call_operand.vmem [shape: f32[32,16], index: 5, kind: output, shape index: {}]
  %s6 = sld [smem:[#allocation0]]
  $region30: #{densenet_forward.19} parent=0
    _
  %s8 = ssub.s32 1, %s6
  %s9 = scalar_select 0, %s8, %s6
  // Predicated region
  $region2: #{densenet_forward.19} parent=0 // pred_check
    _
  $region3: #{densenet_forward.19} parent=0 // pred_check_branch
    %11 = sbr.rel (0) target = $region5
  $region4: #{densenet_forward.19} parent=0 // pred_region
    _
  $region5: #{densenet_forward.19} parent=0 // pred_fallthru
    _
  // Predicated region
  $region6: #{densenet_forward.19} parent=0 // pred_check
    _
  $region7: #{densenet_forward.19} parent=0 // pred_check_branch
    %13 = sbr.rel (0) target = $region9
  $region8: #{densenet_forward.19} parent=0 // pred_region
    _
  $region9: #{densenet_forward.19} parent=0 // pred_fallthru
    _
  // Predicated region
  $region10: #{densenet_forward.19} parent=0 // pred_check
    _
  $region11: #{densenet_forward.19} parent=0 // pred_check_branch
    %15 = sbr.rel (0) target = $region13
  $region12: #{densenet_forward.19} parent=0 // pred_region
    _
  $region13: #{densenet_forward.19} parent=0 // pred_fallthru
    _
  // Predicated region
  $region14: #{densenet_forward.19} parent=0 // pred_check
    _
  $region15: #{densenet_forward.19} parent=0 // pred_check_branch
    %17 = sbr.rel (0) target = $region17
  $region16: #{densenet_forward.19} parent=0 // pred_region
    _
  $region17: #{densenet_forward.19} parent=0 // pred_fallthru
    _
  // Predicated region
  $region18: #{densenet_forward.19} parent=0 // pred_check
    _
  $region19: #{densenet_forward.19} parent=0 // pred_check_branch
    %19 = sbr.rel (0) target = $region21
  $region20: #{densenet_forward.19} parent=0 // pred_region
    _
  $region21: #{densenet_forward.19} parent=0 // pred_fallthru
    _
  %v20 = vld [vmem:[%s0] sm:$0xff]
  %v21 = vld [vmem:[%s0 + $0x8] sm:$0xff]
  %v22 = vld [vmem:[%s0 + $0x10] sm:$0xff]
  %v23 = vld [vmem:[%s0 + $0x18] sm:$0xff]
  %v24 = vld [vmem:[%s1] sm:$0x1]
  %v26 = vlaneseq
  %v27 = vshrl.u32 %v26, 7
  %v28 = vsub.s32 0, %v27
  %v29 = vrot.slane %v24, %v28
  %v31 = vmul.f32 %v20, %v29
  %v32 = vmul.f32 %v21, %v29
  %v33 = vmul.f32 %v22, %v29
  %v34 = vmul.f32 %v23, %v29
  %v35 = vld [vmem:[%s2] sm:$0x1]
  %v37 = vlaneseq
  %v38 = vshrl.u32 %v37, 7
  %v39 = vsub.s32 0, %v38
  %v40 = vrot.slane %v35, %v39
  %v42 = vadd.f32 %v31, %v40
  %v43 = vadd.f32 %v32, %v40
  %v44 = vadd.f32 %v33, %v40
  %v45 = vadd.f32 %v34, %v40
  %v46 = vmax.f32 %v42, 0.0
  %v47 = vmax.f32 %v43, 0.0
  %v48 = vmax.f32 %v44, 0.0
  %v49 = vmax.f32 %v45, 0.0
  %v50 = vld [vmem:[%s3] sm:$0xff]
  %v51 = vld [vmem:[%s3 + $0x8] sm:$0xff]
  %v52 = vld [vmem:[%s3 + $0x10] sm:$0xff]
  %v53 = vld [vmem:[%s4] sm:$0x1]
  %v55 = vlaneseq
  %v56 = vshrl.u32 %v55, 7
  %v57 = vsub.s32 0, %v56
  %v58 = vrot.slane %v53, %v57
  %vm60 = vcmask 195584
  %v62 = vsel %vm60, %v46, 0
  %v65 = vsel %vm60, %v47, 0
  %v68 = vsel %vm60, %v48, 0
  %v71 = vsel %vm60, %v49, 0
  %73 = vmatprep.subr.mxu0 0.0
  %74 = vmatpush1.msra.mxu0 %v50
  %75 = vmatprep.subr.mxu0 0.0
  %76 = vmatpush1.msra.mxu0 %v51
  %77 = vmatprep.subr.mxu0 0.0
  %78 = vmatpush1.msra.mxu0 %v52
  %79 = vmatprep.subr.mxu0 0.0
  %80 = vmatpush1.msra.mxu0 0.0
  %81 = vmatprep.subr.mxu0 0.0
  %82 = vmatpush1.msra.mxu0 0.0
  %83 = vmatprep.subr.mxu0 0.0
  %84 = vmatpush1.msra.mxu0 0.0
  %85 = vmatprep.subr.mxu0 0.0
  %86 = vmatpush1.msra.mxu0 0.0
  %87 = vmatprep.subr.mxu0 0.0
  %88 = vmatpush1.msra.mxu0 0.0
  %89 = vmatprep.subr.mxu0 0.0
  %90 = vmatpush1.msra.mxu0 0.0
  %91 = vmatprep.subr.mxu0 0.0
  %92 = vmatpush1.msra.mxu0 0.0
  %93 = vmatprep.subr.mxu0 0.0
  %94 = vmatpush1.msra.mxu0 0.0
  %95 = vmatprep.subr.mxu0 0.0
  %96 = vmatpush1.msra.mxu0 0.0
  %97 = vmatprep.subr.mxu0 0.0
  %98 = vmatpush1.msra.mxu0 0.0
  %99 = vmatprep.subr.mxu0 0.0
  %100 = vmatpush1.msra.mxu0 0.0
  %101 = vmatprep.subr.mxu0 0.0
  %102 = vmatpush1.msra.mxu0 0.0
  %103 = vmatprep.subr.mxu0 0.0
  %104 = vmatpush1.msra.mxu0 0.0
  %105 = vmatprep.subr.mxu0 0.0
  %106 = vmatpush1.msra.mxu0 0.0
  %107 = vmatprep.subr.mxu0 0.0
  %108 = vmatpush1.msra.mxu0 0.0
  %109 = vmatprep.subr.mxu0 0.0
  %110 = vmatpush1.msra.mxu0 0.0
  %111 = vmatprep.subr.mxu0 0.0
  %112 = vmatpush1.msra.mxu0 0.0
  %113 = vmatprep.subr.mxu0 0.0
  %114 = vmatpush1.msra.mxu0 0.0
  %115 = vmatprep.subr.mxu0 0.0
  %116 = vmatpush1.msra.mxu0 0.0
  %117 = vmatprep.subr.mxu0 0.0
  %118 = vmatpush1.msra.mxu0 0.0
  %119 = vmatprep.subr.mxu0 0.0
  %120 = vmatpush1.msra.mxu0 0.0
  %121 = vmatprep.subr.mxu0 0.0
  %122 = vmatpush1.msra.mxu0 0.0
  %123 = vmatprep.subr.mxu0 0.0
  %124 = vmatpush1.msra.mxu0 0.0
  %125 = vmatprep.subr.mxu0 0.0
  %126 = vmatpush1.msra.mxu0 0.0
  %127 = vmatprep.subr.mxu0 0.0
  %128 = vmatpush1.msra.mxu0 0.0
  %129 = vmatprep.subr.mxu0 0.0
  %130 = vmatpush1.msra.mxu0 0.0
  %131 = vmatprep.subr.mxu0 0.0
  %132 = vmatpush1.msra.mxu0 0.0
  %133 = vmatprep.subr.mxu0 0.0
  %134 = vmatpush1.msra.mxu0 0.0
  %135 = vmatprep.subr.mxu0 0.0
  %136 = vmatpush1.msra.mxu0 0.0
  %137 = vmatprep.mubr.f32.mxu0 0.0
  %138 = vmatmul.mubr.f32.gmra.mrb[0].mxu0 %v62
  %v139 = vpop.f32.mrb[0].mxu0
  %v140 = vadd.f32 %v58, %v139
  %v141 = vpop.f32.mrb[0].mxu0
  %142 = vmatprep.mubr.f32.mxu0 0.0
  %143 = vmatmul.mubr.f32.gmra.mrb[0].mxu0 %v65
  %v144 = vpop.f32.mrb[0].mxu0
  %v145 = vadd.f32 %v58, %v144
  %v146 = vpop.f32.mrb[0].mxu0
  %147 = vmatprep.mubr.f32.mxu0 0.0
  %148 = vmatmul.mubr.f32.gmra.mrb[0].mxu0 %v68
  %v149 = vpop.f32.mrb[0].mxu0
  %v150 = vadd.f32 %v58, %v149
  %v151 = vpop.f32.mrb[0].mxu0
  %152 = vmatprep.mubr.f32.mxu0 0.0
  %153 = vmatmul.mubr.f32.gmra.mrb[0].mxu0 %v71
  %v154 = vpop.f32.mrb[0].mxu0
  %v155 = vadd.f32 %v58, %v154
  %v156 = vpop.f32.mrb[0].mxu0
  %157 = vdwg.mxu0
  %v158 = vmax.f32 %v140, 0.0
  %v159 = vmax.f32 %v145, 0.0
  %v160 = vmax.f32 %v150, 0.0
  %v161 = vmax.f32 %v155, 0.0
  %vm162 = vcmask 130048
  %163 = vst.msk [vmem:[%s5] sm:$0xff] %vm162, %v158
  %164 = vst.msk [vmem:[%s5 + $0x8] sm:$0xff] %vm162, %v159
  %165 = vst.msk [vmem:[%s5 + $0x10] sm:$0xff] %vm162, %v160
  %166 = vst.msk [vmem:[%s5 + $0x18] sm:$0xff] %vm162, %v161
  // Predicated region
  $region22: #{densenet_forward.19} parent=0 // pred_check
    _
  $region23: #{densenet_forward.19} parent=0 // pred_check_branch
    %168 = sbr.rel (0) target = $region25
  $region24: #{densenet_forward.19} parent=0 // pred_region
    _
  $region25: #{densenet_forward.19} parent=0 // pred_fallthru
    _
  // Predicated region
  $region26: #{densenet_forward.19} parent=0 // pred_check
    _
  $region27: #{densenet_forward.19} parent=0 // pred_check_branch
    %170 = sbr.rel (0) target = $region29
  $region28: #{densenet_forward.19} parent=0 // pred_region
    _
  $region29: #{densenet_forward.19} parent=0 // pred_fallthru
    _

// kernel: densenet_forward.21
$region0: #{densenet_forward.21}
  #allocation0 [shape = 'u32[]', space=smem, size = 0x4, offset = 0x4, fixed_abs, tag = 'smem constant byte address 0x4 - core index']
  #allocation1 [shape = 'u32[144,128]{1,0:T(1,128)}', space=vmem, size = 0x12000, scoped, tag = 'internal scratch']
  %s0 = inlined_call_operand.vmem [shape: f32[2,16,32], index: 0, kind: input, shape index: {}]
  %s1 = inlined_call_operand.vmem [shape: f32[1,32], index: 1, kind: input, shape index: {}]
  %s2 = inlined_call_operand.vmem [shape: f32[1,32], index: 2, kind: input, shape index: {}]
  %s3 = inlined_call_operand.vmem [shape: f32[32,10], index: 3, kind: input, shape index: {}]
  %s4 = inlined_call_operand.vmem [shape: f32[1,10], index: 4, kind: input, shape index: {}]
  %s5 = inlined_call_operand.hbm [shape: f32[2,32], index: 5, kind: output, shape index: {0}]
  %s6 = inlined_call_operand.hbm [shape: f32[2,10], index: 6, kind: output, shape index: {1}]
  %7 = xla_tuple %s5, %s6
  %s8 = sld [smem:[#allocation0]]
  $region38: #{densenet_forward.21} parent=0
    _
  %s10 = ssub.s32 1, %s8
  %s11 = scalar_select 0, %s10, %s8
  $region1: #{densenet_forward.21} parent=0
    #allocation2 [shape = 'u8[1024]{0}', space=vmem, size = 0x400, scoped, tag = 'output window, operand 0, single buffered']
    #allocation3 [shape = 's32[1]{0}', space=sflag, size = 0x4, scoped, tag = 'scoped memory for densenet_forward.21']
    #allocation4 [shape = 'u8[1024]{0}', space=vmem, size = 0x400, scoped, tag = 'output window, operand 1, single buffered']
    #allocation5 [shape = 's32[1]{0}', space=sflag, size = 0x4, scoped, tag = 'scoped memory for densenet_forward.21']
    %12 = vsyncpa [#allocation3], 0
    %13 = vsyncpa [#allocation5], 0
    // Predicated region
    $region2: #{densenet_forward.21} parent=1 // pred_check
      _
    $region3: #{densenet_forward.21} parent=1 // pred_check_branch
      %15 = sbr.rel (0) target = $region5
    $region4: #{densenet_forward.21} parent=1 // pred_region
      _
    $region5: #{densenet_forward.21} parent=1 // pred_fallthru
      _
    // Predicated region
    $region6: #{densenet_forward.21} parent=1 // pred_check
      _
    $region7: #{densenet_forward.21} parent=1 // pred_check_branch
      %17 = sbr.rel (0) target = $region9
    $region8: #{densenet_forward.21} parent=1 // pred_region
      _
    $region9: #{densenet_forward.21} parent=1 // pred_fallthru
      _
    // Predicated region
    $region10: #{densenet_forward.21} parent=1 // pred_check
      _
    $region11: #{densenet_forward.21} parent=1 // pred_check_branch
      %19 = sbr.rel (0) target = $region13
    $region12: #{densenet_forward.21} parent=1 // pred_region
      _
    $region13: #{densenet_forward.21} parent=1 // pred_fallthru
      _
    // Predicated region
    $region14: #{densenet_forward.21} parent=1 // pred_check
      _
    $region15: #{densenet_forward.21} parent=1 // pred_check_branch
      %21 = sbr.rel (0) target = $region17
    $region16: #{densenet_forward.21} parent=1 // pred_region
      _
    $region17: #{densenet_forward.21} parent=1 // pred_fallthru
      _
    // Predicated region
    $region18: #{densenet_forward.21} parent=1 // pred_check
      _
    $region19: #{densenet_forward.21} parent=1 // pred_check_branch
      %23 = sbr.rel (0) target = $region21
    $region20: #{densenet_forward.21} parent=1 // pred_region
      _
    $region21: #{densenet_forward.21} parent=1 // pred_fallthru
      _
    %v24 = vld [vmem:[%s0] sm:$0xff]
    %v25 = vld [vmem:[%s0 + $0x8] sm:$0xff]
    %v26 = vld [vmem:[%s0 + $0x10] sm:$0xff]
    %v27 = vld [vmem:[%s0 + $0x18] sm:$0xff]
    %v28 = vld [vmem:[%s1] sm:$0x1]
    %v30 = vlaneseq
    %v31 = vshrl.u32 %v30, 7
    %v32 = vsub.s32 0, %v31
    %v33 = vrot.slane %v28, %v32
    %v35 = vmul.f32 %v24, %v33
    %v36 = vmul.f32 %v25, %v33
    %v37 = vmul.f32 %v26, %v33
    %v38 = vmul.f32 %v27, %v33
    %v39 = vld [vmem:[%s2] sm:$0x1]
    %v41 = vlaneseq
    %v42 = vshrl.u32 %v41, 7
    %v43 = vsub.s32 0, %v42
    %v44 = vrot.slane %v39, %v43
    %v46 = vadd.f32 %v35, %v44
    %v47 = vadd.f32 %v36, %v44
    %v48 = vadd.f32 %v37, %v44
    %v49 = vadd.f32 %v38, %v44
    %v50 = vmax.f32 %v46, 0.0
    %v51 = vmax.f32 %v47, 0.0
    %v52 = vmax.f32 %v48, 0.0
    %v53 = vmax.f32 %v49, 0.0
    %vm54 = vcmask 261120
    %v55 = vsel %vm54, %v50, 0.0
    %v56 = vsel %vm54, %v51, 0.0
    %v57 = vadd.f32 %v55, %v56
    %v58 = vrot.slane %v57, 4
    %v59 = vadd.f32 %v57, %v58
    %v60 = vrot.slane %v59, 2
    %v61 = vadd.f32 %v59, %v60
    %v62 = vrot.slane %v61, 1
    %v63 = vadd.f32 %v61, %v62
    %v64 = vsel %vm54, %v52, 0.0
    %v65 = vsel %vm54, %v53, 0.0
    %v66 = vadd.f32 %v64, %v65
    %v67 = vrot.slane %v66, 4
    %v68 = vadd.f32 %v66, %v67
    %v69 = vrot.slane %v68, 2
    %v70 = vadd.f32 %v68, %v69
    %v71 = vrot.slane %v70, 1
    %v72 = vadd.f32 %v70, %v71
    %v73 = vrcp.pop 16.0
    %v74 = vmul.f32 %v63, %v73
    %v75 = vmul.f32 %v72, %v73
    %vm78 = vcmask 1041409
    %v79 = vsel %vm78, %v75, %v74
    %vm81 = vcmask 254976
    %82 = vst.msk [vmem:[#allocation2] sm:$0x3] %vm81, %v79
    %v83 = vld [vmem:[%s3] sm:$0xff]
    %v84 = vld [vmem:[%s3 + $0x8] sm:$0xff]
    %v85 = vld [vmem:[%s3 + $0x10] sm:$0xff]
    %v86 = vld [vmem:[%s3 + $0x18] sm:$0xff]
    %v87 = vld [vmem:[%s4] sm:$0x1]
    %v89 = vlaneseq
    %v90 = vshrl.u32 %v89, 7
    %v91 = vsub.s32 0, %v90
    %v92 = vrot.slane %v87, %v91
    %v94 = vsel %vm54, %v79, 0
    %96 = vmatprep.subr.mxu0 0.0
    %97 = vmatpush1.msra.mxu0 %v83
    %98 = vmatprep.subr.mxu0 0.0
    %99 = vmatpush1.msra.mxu0 %v84
    %100 = vmatprep.subr.mxu0 0.0
    %101 = vmatpush1.msra.mxu0 %v85
    %102 = vmatprep.subr.mxu0 0.0
    %103 = vmatpush1.msra.mxu0 %v86
    %104 = vmatprep.subr.mxu0 0.0
    %105 = vmatpush1.msra.mxu0 0.0
    %106 = vmatprep.subr.mxu0 0.0
    %107 = vmatpush1.msra.mxu0 0.0
    %108 = vmatprep.subr.mxu0 0.0
    %109 = vmatpush1.msra.mxu0 0.0
    %110 = vmatprep.subr.mxu0 0.0
    %111 = vmatpush1.msra.mxu0 0.0
    %112 = vmatprep.subr.mxu0 0.0
    %113 = vmatpush1.msra.mxu0 0.0
    %114 = vmatprep.subr.mxu0 0.0
    %115 = vmatpush1.msra.mxu0 0.0
    %116 = vmatprep.subr.mxu0 0.0
    %117 = vmatpush1.msra.mxu0 0.0
    %118 = vmatprep.subr.mxu0 0.0
    %119 = vmatpush1.msra.mxu0 0.0
    %120 = vmatprep.subr.mxu0 0.0
    %121 = vmatpush1.msra.mxu0 0.0
    %122 = vmatprep.subr.mxu0 0.0
    %123 = vmatpush1.msra.mxu0 0.0
    %124 = vmatprep.subr.mxu0 0.0
    %125 = vmatpush1.msra.mxu0 0.0
    %126 = vmatprep.subr.mxu0 0.0
    %127 = vmatpush1.msra.mxu0 0.0
    %128 = vmatprep.subr.mxu0 0.0
    %129 = vmatpush1.msra.mxu0 0.0
    %130 = vmatprep.subr.mxu0 0.0
    %131 = vmatpush1.msra.mxu0 0.0
    %132 = vmatprep.subr.mxu0 0.0
    %133 = vmatpush1.msra.mxu0 0.0
    %134 = vmatprep.subr.mxu0 0.0
    %135 = vmatpush1.msra.mxu0 0.0
    %136 = vmatprep.subr.mxu0 0.0
    %137 = vmatpush1.msra.mxu0 0.0
    %138 = vmatprep.subr.mxu0 0.0
    %139 = vmatpush1.msra.mxu0 0.0
    %140 = vmatprep.subr.mxu0 0.0
    %141 = vmatpush1.msra.mxu0 0.0
    %142 = vmatprep.subr.mxu0 0.0
    %143 = vmatpush1.msra.mxu0 0.0
    %144 = vmatprep.subr.mxu0 0.0
    %145 = vmatpush1.msra.mxu0 0.0
    %146 = vmatprep.subr.mxu0 0.0
    %147 = vmatpush1.msra.mxu0 0.0
    %148 = vmatprep.subr.mxu0 0.0
    %149 = vmatpush1.msra.mxu0 0.0
    %150 = vmatprep.subr.mxu0 0.0
    %151 = vmatpush1.msra.mxu0 0.0
    %152 = vmatprep.subr.mxu0 0.0
    %153 = vmatpush1.msra.mxu0 0.0
    %154 = vmatprep.subr.mxu0 0.0
    %155 = vmatpush1.msra.mxu0 0.0
    %156 = vmatprep.subr.mxu0 0.0
    %157 = vmatpush1.msra.mxu0 0.0
    %158 = vmatprep.subr.mxu0 0.0
    %159 = vmatpush1.msra.mxu0 0.0
    %160 = vmatprep.mubr.f32.mxu0 0.0
    %161 = vmatmul.mubr.f32.gmra.mrb[0].mxu0 %v94
    %v162 = vpop.f32.mrb[0].mxu0
    %v163 = vadd.f32 %v92, %v162
    %v164 = vpop.f32.mrb[0].mxu0
    %165 = vdwg.mxu0
    %vm166 = vcmask 74752
    %167 = vst.msk [vmem:[#allocation4] sm:$0x3] %vm166, %v163
    // Predicated region
    $region22: #{densenet_forward.21} parent=1 // pred_check
      _
    $region23: #{densenet_forward.21} parent=1 // pred_check_branch
      %169 = sbr.rel (0) target = $region25
    $region24: #{densenet_forward.21} parent=1 // pred_region
      %s171 = ssub.s32 32, 32
      %172 = vsyncadd [#allocation3], %s171
      %s174 = sshll.u32 [#allocation2], 4
      %s175 = int_to_ptr.vmem [resolvable:$true] %s174
      %177 = dma.vmem_to_hbm [thread:$0]  %s175, 32, %s5, [#allocation3]
    $region25: #{densenet_forward.21} parent=1 // pred_fallthru
      _
    // Predicated region
    $region26: #{densenet_forward.21} parent=1 // pred_check
      _
    $region27: #{densenet_forward.21} parent=1 // pred_check_branch
      %179 = sbr.rel (0) target = $region29
    $region28: #{densenet_forward.21} parent=1 // pred_region
      %s181 = ssub.s32 32, 32
      %182 = vsyncadd [#allocation5], %s181
      %s184 = sshll.u32 [#allocation4], 4
      %s185 = int_to_ptr.vmem [resolvable:$true] %s184
      %187 = dma.vmem_to_hbm [thread:$0]  %s185, 32, %s6, [#allocation5]
    $region29: #{densenet_forward.21} parent=1 // pred_fallthru
      _
    // Predicated region
    $region30: #{densenet_forward.21} parent=1 // pred_check
      _
    $region31: #{densenet_forward.21} parent=1 // pred_check_branch
      %189 = sbr.rel (0) target = $region33
    $region32: #{densenet_forward.21} parent=1 // pred_region
      %190 = dma.done [#allocation3], 32
    $region33: #{densenet_forward.21} parent=1 // pred_fallthru
      _
    // Predicated region
    $region34: #{densenet_forward.21} parent=1 // pred_check
      _
    $region35: #{densenet_forward.21} parent=1 // pred_check_branch
      %192 = sbr.rel (0) target = $region37
    $region36: #{densenet_forward.21} parent=1 // pred_region
      %193 = dma.done [#allocation5], 32
    $region37: #{densenet_forward.21} parent=1 // pred_fallthru
      _
    %194 = vsyncpa [#allocation3], 1
    %195 = vsyncpa [#allocation5], 1

</llo_original>
